<compile_context>
chip_gen: v7x
topology: tpu7x:2x2x1
jax: 0.10.0
libtpu: 0.0.40
codegen_flags: <defaults>
</compile_context>

<pallas_src>
import functools

import jax
import jax.numpy as jnp
from jax import lax
from jax.experimental import pallas as pl
from jax.experimental.pallas import tpu as pltpu


# -----------------------------------------------------------------------------
# Helpers: padding / layout prep (wrapper-side, plain JAX).
# -----------------------------------------------------------------------------
def _round_up(x, m):
    return (x + m - 1) // m * m


def _pad_gate_cols(w_t, h, hp):
    """(D, 3h) -> (D, 3hp): zero-pad each gate's column block from h to hp."""
    gates = [w_t[:, g * h:(g + 1) * h] for g in range(3)]
    return jnp.concatenate([jnp.pad(g, ((0, 0), (0, hp - h))) for g in gates],
                           axis=1)


def _pad_gate_vec(b, h, hp):
    """(3h,) -> (3hp,): zero-pad each gate's chunk from h to hp."""
    gates = [b[g * h:(g + 1) * h] for g in range(3)]
    return jnp.concatenate([jnp.pad(g, (0, hp - h)) for g in gates])


# -----------------------------------------------------------------------------
# Pallas kernel: all GRU layers, whole sequence, one invocation.
# -----------------------------------------------------------------------------
def fused_gru_kernel(n_layers, seq_len, bp, hp, x_ref, *refs):
    """Fused stacked-GRU forward.

    x_ref:        (T*Bp, Ep)   bf16  embedded inputs (batch -> Bp, embed -> Ep pads)
    per layer l (4 refs each):
      wih_ref:    (Dp_in, 3Hp) bf16  W_ih^T, gate-padded (rows zero-padded)
      whh_ref:    (Hp, 3Hp)    bf16  W_hh^T, gate-padded
      gxb_ref:    (1, 3Hp)     f32   folded bias [b_ir+b_hr, b_iz+b_hz, b_in]
      bhn_ref:    (1, Hp)      f32   b_hn (stays inside the r*(.) term)
    out_ref:      (T*Bp, Hp)   f32   last layer's per-step outputs
    hid_ref:      (L*Bp, Hp)   f32   final hidden state of every layer
    gx_s:         (T*Bp, 3Hp)  f32   scratch: hoisted input projection
    seq_s:        (T*Bp, Hp)   f32   scratch: inter-layer activations (stay in VMEM)
    h_s:          (Bp, Hp)     f32   scratch: recurrent hidden state
    """
    layer_refs = refs[:4 * n_layers]
    out_ref, hid_ref = refs[4 * n_layers], refs[4 * n_layers + 1]
    gx_s, seq_s, h_s = refs[4 * n_layers + 2:]

    for l in range(n_layers):
        wih_ref, whh_ref, gxb_ref, bhn_ref = layer_refs[4 * l:4 * l + 4]

        # ---- Hoisted input projection: ONE batched MXU matmul over all T*Bp rows.
        xin = x_ref[...] if l == 0 else seq_s[...].astype(jnp.bfloat16)
        gx_s[...] = (jnp.dot(xin, wih_ref[...],
                             preferred_element_type=jnp.float32)
                     + gxb_ref[...])

        # ---- Sequential recurrence (the only time-dependent work).
        h_s[...] = jnp.zeros_like(h_s)          # nn.GRU zero initial hidden
        dst = out_ref if l == n_layers - 1 else seq_s
        w_hh = whh_ref[...]                      # hoist resident weight load
        b_hn = bhn_ref[...]

        def step(t, carry, dst=dst, w_hh=w_hh, b_hn=b_hn):
            row = pl.multiple_of(t * bp, bp)
            gx = gx_s[pl.ds(row, bp), :]                         # (Bp, 3Hp) f32
            h_prev = h_s[...]                                    # (Bp, Hp)  f32
            gh = jnp.dot(h_prev.astype(jnp.bfloat16), w_hh,
                         preferred_element_type=jnp.float32)     # (Bp, 3Hp) f32
            # lane-aligned gate slices (each gate is a full Hp-wide chunk)
            r = jax.nn.sigmoid(gx[:, 0 * hp:1 * hp] + gh[:, 0 * hp:1 * hp])
            z = jax.nn.sigmoid(gx[:, 1 * hp:2 * hp] + gh[:, 1 * hp:2 * hp])
            n = jnp.tanh(gx[:, 2 * hp:3 * hp] + r * (gh[:, 2 * hp:3 * hp] + b_hn))
            h_new = (1.0 - z) * n + z * h_prev
            h_s[...] = h_new
            dst[pl.ds(row, bp), :] = h_new                       # outputs[t]
            return carry

        lax.fori_loop(0, seq_len, step, 0, unroll=True)

        # Final hidden of this layer, written exactly once.
        hid_ref[l * bp:(l + 1) * bp, :] = h_s[...]


# -----------------------------------------------------------------------------
# Wrapper: layout prep + pallas_call.
# -----------------------------------------------------------------------------
def gru_stack_forward(embed, layers):
    """embed: (T, B, E) f32; layers: list of torch-layout GRU weights.
    Returns (outputs (T, B, H), hidden (L, B, H))."""
    T, B, E = embed.shape
    L = len(layers)
    H = layers[0]["w_hh"].shape[1]            # w_hh: (3H, H) torch layout
    Hp = _round_up(H, 128)                    # lane-dense gates / outputs
    Bp = _round_up(B, 8)                      # sublane minimum
    Ep = _round_up(E, 128)                    # lane-dense embedded input

    x = jnp.pad(embed, ((0, 0), (0, Bp - B), (0, Ep - E)))
    x = x.reshape(T * Bp, Ep).astype(jnp.bfloat16)

    kernel_args = [x]
    in_specs = [pl.BlockSpec((T * Bp, Ep), lambda i: (0, 0))]
    for l, layer in enumerate(layers):
        w_ih_t = jnp.transpose(layer["w_ih"])             # (D_in, 3H)
        w_hh_t = jnp.transpose(layer["w_hh"])             # (H, 3H)
        d_in = w_ih_t.shape[0]
        d_in_p = Ep if l == 0 else Hp                     # padded input width

        w_ih_p = _pad_gate_cols(w_ih_t, H, Hp)            # (D_in, 3Hp)
        # zero-pad rows so padded lanes of the layer input contribute nothing
        w_ih_p = jnp.pad(w_ih_p, ((0, d_in_p - d_in), (0, 0)))
        w_hh_p = jnp.pad(_pad_gate_cols(w_hh_t, H, Hp), ((0, Hp - H), (0, 0)))

        b_ih, b_hh = layer["b_ih"], layer["b_hh"]
        # Fold b_hh into the hoisted projection for r/z gates; keep b_hn separate.
        b_fold = jnp.concatenate([b_ih[:2 * H] + b_hh[:2 * H], b_ih[2 * H:]])
        gxb = _pad_gate_vec(b_fold, H, Hp).reshape(1, 3 * Hp)
        bhn = jnp.pad(b_hh[2 * H:], (0, Hp - H)).reshape(1, Hp)

        kernel_args += [w_ih_p.astype(jnp.bfloat16),
                        w_hh_p.astype(jnp.bfloat16),
                        gxb.astype(jnp.float32),
                        bhn.astype(jnp.float32)]
        in_specs += [
            pl.BlockSpec((d_in_p, 3 * Hp), lambda i: (0, 0)),
            pl.BlockSpec((Hp, 3 * Hp), lambda i: (0, 0)),
            pl.BlockSpec((1, 3 * Hp), lambda i: (0, 0)),
            pl.BlockSpec((1, Hp), lambda i: (0, 0)),
        ]

    out_p, hid_p = pl.pallas_call(
        functools.partial(fused_gru_kernel, L, T, Bp, Hp),
        out_shape=(
            jax.ShapeDtypeStruct((T * Bp, Hp), jnp.float32),
            jax.ShapeDtypeStruct((L * Bp, Hp), jnp.float32),
        ),
        grid_spec=pltpu.PrefetchScalarGridSpec(
            num_scalar_prefetch=0,
            grid=(1,),                                   # time handled in-kernel
            in_specs=in_specs,
            out_specs=[
                pl.BlockSpec((T * Bp, Hp), lambda i: (0, 0)),
                pl.BlockSpec((L * Bp, Hp), lambda i: (0, 0)),
            ],
            scratch_shapes=[
                pltpu.VMEM((T * Bp, 3 * Hp), jnp.float32),   # hoisted projection
                pltpu.VMEM((T * Bp, Hp), jnp.float32),       # inter-layer activations
                pltpu.VMEM((Bp, Hp), jnp.float32),           # recurrent state
            ]),
        compiler_params=pltpu.CompilerParams(
            dimension_semantics=("arbitrary",)),         # recurrence is sequential
    )(*kernel_args)

    outputs = out_p.reshape(T, Bp, Hp)[:, :B, :H]
    hidden = hid_p.reshape(L, Bp, Hp)[:, :B, :H]
    return outputs, hidden


# -----------------------------------------------------------------------------
# EncoderAttention forward: embedding -> dropout(identity) -> stacked GRU.
# -----------------------------------------------------------------------------
def encoder_attention_forward(params, batch):
    """batch: (T, B) int32 token ids. Returns (outputs (T,B,H), hidden (L,B,H))."""
    embed = jnp.take(params["embedding"], batch, axis=0)    # (T, B, E) f32, glue
    # self.dropout(embed) -> identity (eval semantics)
    return gru_stack_forward(embed, params["gru_layers"])


# -----------------------------------------------------------------------------
# Pure-JAX reference (for a sanity check in __main__).
# -----------------------------------------------------------------------------
def _reference_forward(params, batch):
    embed = jnp.take(params["embedding"], batch, axis=0)
    H = params["gru_layers"][0]["w_hh"].shape[1]
    x = embed
    hiddens = []
    for layer in params["gru_layers"]:
        w_ih, w_hh = layer["w_ih"], layer["w_hh"]
        b_ih, b_hh = layer["b_ih"], layer["b_hh"]

        def step(h, x_t, w_ih=w_ih, w_hh=w_hh, b_ih=b_ih, b_hh=b_hh):
            gx = x_t @ w_ih.T + b_ih
            gh = h @ w_hh.T + b_hh
            r = jax.nn.sigmoid(gx[:, :H] + gh[:, :H])
            z = jax.nn.sigmoid(gx[:, H:2 * H] + gh[:, H:2 * H])
            n = jnp.tanh(gx[:, 2 * H:] + r * gh[:, 2 * H:])
            h_new = (1.0 - z) * n + z * h
            return h_new, h_new

        h0 = jnp.zeros((x.shape[1], H), jnp.float32)
        h_last, outs = lax.scan(step, h0, x)
        hiddens.append(h_last)
        x = outs
    return x, jnp.stack(hiddens, axis=0)


def init_params(key, vocab_length, embedding_dim, hidden_dim, n_layers):
    keys = jax.random.split(key, 1 + 4 * n_layers)
    params = {
        "embedding": jax.random.normal(
            keys[0], (vocab_length, embedding_dim), jnp.float32),
        "gru_layers": [],
    }
    k = 1.0 / jnp.sqrt(jnp.float32(hidden_dim))
    for l in range(n_layers):
        d_in = embedding_dim if l == 0 else hidden_dim
        kw = keys[1 + 4 * l: 1 + 4 * (l + 1)]
        params["gru_layers"].append({
            "w_ih": jax.random.uniform(kw[0], (3 * hidden_dim, d_in),
                                       jnp.float32, -k, k),
            "w_hh": jax.random.uniform(kw[1], (3 * hidden_dim, hidden_dim),
                                       jnp.float32, -k, k),
            "b_ih": jax.random.uniform(kw[2], (3 * hidden_dim,),
                                       jnp.float32, -k, k),
            "b_hh": jax.random.uniform(kw[3], (3 * hidden_dim,),
                                       jnp.float32, -k, k),
        })
    return params


if __name__ == "__main__":
    VOCAB = 50
    EMBED = 32
    HIDDEN = 32
    N_LAYERS = 2
    T, B = 8, 4

    key = jax.random.PRNGKey(0)
    k_params, k_tokens = jax.random.split(key)
    params = init_params(k_params, VOCAB, EMBED, HIDDEN, N_LAYERS)
    batch = jax.random.randint(k_tokens, (T, B), 0, VOCAB, dtype=jnp.int32)

    outputs, hidden = encoder_attention_forward(params, batch)
    jax.block_until_ready((outputs, hidden))

    assert outputs.shape == (T, B, HIDDEN)
    assert hidden.shape == (N_LAYERS, B, HIDDEN)

    # Loose correctness check vs a pure-JAX f32 reference (kernel uses bf16 matmuls).
    ref_out, ref_hid = _reference_forward(params, batch)
    max_err = float(jnp.max(jnp.abs(outputs - ref_out)))
    max_err_h = float(jnp.max(jnp.abs(hidden - ref_hid)))
    assert max_err < 0.1 and max_err_h < 0.1, (max_err, max_err_h)

    print("KERNEL_OK")
</pallas_src>

<mosaic_0001>
module attributes {stable_mosaic.version = 11 : i64} {
  func.func @fused_gru_kernel(%arg0: i32, %arg1: memref<64x128xbf16, #tpu.memory_space<vmem>>, %arg2: memref<128x384xbf16, #tpu.memory_space<vmem>>, %arg3: memref<128x384xbf16, #tpu.memory_space<vmem>>, %arg4: memref<1x384xf32, #tpu.memory_space<vmem>>, %arg5: memref<1x128xf32, #tpu.memory_space<vmem>>, %arg6: memref<128x384xbf16, #tpu.memory_space<vmem>>, %arg7: memref<128x384xbf16, #tpu.memory_space<vmem>>, %arg8: memref<1x384xf32, #tpu.memory_space<vmem>>, %arg9: memref<1x128xf32, #tpu.memory_space<vmem>>, %arg10: memref<64x128xf32, #tpu.memory_space<vmem>>, %arg11: memref<16x128xf32, #tpu.memory_space<vmem>>, %arg12: memref<64x384xf32, #tpu.memory_space<vmem>>, %arg13: memref<64x128xf32, #tpu.memory_space<vmem>>, %arg14: memref<8x128xf32, #tpu.memory_space<vmem>>) attributes {dimension_semantics = [#tpu.dimension_semantics<arbitrary>], iteration_bounds = array<i64: 1>, scalar_prefetch = 0 : i64, scratch_operands = 3 : i64, tpu.core_type = #tpu.core_type<tc>, window_params = [{pipeline_mode = #tpu.pipeline_mode<synchronous>, transform_indices = @transform_0, window_bounds = array<i64: 64, 128>}, {pipeline_mode = #tpu.pipeline_mode<synchronous>, transform_indices = @transform_1, window_bounds = array<i64: 128, 384>}, {pipeline_mode = #tpu.pipeline_mode<synchronous>, transform_indices = @transform_2, window_bounds = array<i64: 128, 384>}, {pipeline_mode = #tpu.pipeline_mode<synchronous>, transform_indices = @transform_3, window_bounds = array<i64: 1, 384>}, {pipeline_mode = #tpu.pipeline_mode<synchronous>, transform_indices = @transform_4, window_bounds = array<i64: 1, 128>}, {pipeline_mode = #tpu.pipeline_mode<synchronous>, transform_indices = @transform_5, window_bounds = array<i64: 128, 384>}, {pipeline_mode = #tpu.pipeline_mode<synchronous>, transform_indices = @transform_6, window_bounds = array<i64: 128, 384>}, {pipeline_mode = #tpu.pipeline_mode<synchronous>, transform_indices = @transform_7, window_bounds = array<i64: 1, 384>}, {pipeline_mode = #tpu.pipeline_mode<synchronous>, transform_indices = @transform_8, window_bounds = array<i64: 1, 128>}, {pipeline_mode = #tpu.pipeline_mode<synchronous>, transform_indices = @transform_9, window_bounds = array<i64: 64, 128>}, {pipeline_mode = #tpu.pipeline_mode<synchronous>, transform_indices = @transform_10, window_bounds = array<i64: 16, 128>}]} {
    %c0 = arith.constant 0 : index
    %c0_0 = arith.constant 0 : index
    %0 = vector.load %arg1[%c0, %c0_0] : memref<64x128xbf16, #tpu.memory_space<vmem>>, vector<64x128xbf16>
    %c0_1 = arith.constant 0 : index
    %c0_2 = arith.constant 0 : index
    %1 = vector.load %arg2[%c0_1, %c0_2] : memref<128x384xbf16, #tpu.memory_space<vmem>>, vector<128x384xbf16>
    %cst = arith.constant dense<0.000000e+00> : vector<64x384xf32>
    %2 = tpu.matmul %0, %1, %cst {dimension_numbers = #tpu.dot_dimension_numbers<[1], [0], [0], [1], [0, 0, 1, 1], [], []>} : vector<64x128xbf16>, vector<128x384xbf16>, vector<64x384xf32> -> vector<64x384xf32>
    %c0_3 = arith.constant 0 : index
    %c0_4 = arith.constant 0 : index
    %3 = vector.load %arg4[%c0_3, %c0_4] : memref<1x384xf32, #tpu.memory_space<vmem>>, vector<1x384xf32>
    %4 = vector.broadcast %3 : vector<1x384xf32> to vector<64x384xf32>
    %5 = arith.addf %2, %4 : vector<64x384xf32>
    %c0_5 = arith.constant 0 : index
    %c0_6 = arith.constant 0 : index
    %6 = vector.load %arg12[%c0_5, %c0_6] : memref<64x384xf32, #tpu.memory_space<vmem>>, vector<64x384xf32>
    tpu.vector_store %arg12[%c0_5, %c0_6], %5 {strides = array<i32>} : memref<64x384xf32, #tpu.memory_space<vmem>>, vector<64x384xf32>,
    %cst_7 = arith.constant 0.000000e+00 : f32
    %7 = vector.broadcast %cst_7 : f32 to vector<8x128xf32>
    %c0_8 = arith.constant 0 : index
    %c0_9 = arith.constant 0 : index
    %8 = vector.load %arg14[%c0_8, %c0_9] : memref<8x128xf32, #tpu.memory_space<vmem>>, vector<8x128xf32>
    tpu.vector_store %arg14[%c0_8, %c0_9], %7 {strides = array<i32>} : memref<8x128xf32, #tpu.memory_space<vmem>>, vector<8x128xf32>,
    %c0_10 = arith.constant 0 : index
    %c0_11 = arith.constant 0 : index
    %9 = vector.load %arg3[%c0_10, %c0_11] : memref<128x384xbf16, #tpu.memory_space<vmem>>, vector<128x384xbf16>
    %c0_12 = arith.constant 0 : index
    %c0_13 = arith.constant 0 : index
    %10 = vector.load %arg5[%c0_12, %c0_13] : memref<1x128xf32, #tpu.memory_space<vmem>>, vector<1x128xf32>
    %c0_i32 = arith.constant 0 : i32
    %c8_i32 = arith.constant 8 : i32
    %11 = arith.muli %c0_i32, %c8_i32 : i32
    %12 = tpu.assume_multiple %11, 8 : i32
    %13 = arith.index_cast %12 : i32 to index
    %c0_14 = arith.constant 0 : index
    %14 = vector.load %arg12[%13, %c0_14] : memref<64x384xf32, #tpu.memory_space<vmem>>, vector<8x384xf32>
    %c0_15 = arith.constant 0 : index
    %c0_16 = arith.constant 0 : index
    %15 = vector.load %arg14[%c0_15, %c0_16] : memref<8x128xf32, #tpu.memory_space<vmem>>, vector<8x128xf32>
    %16 = arith.truncf %15 : vector<8x128xf32> to vector<8x128xbf16>
    %cst_17 = arith.constant dense<0.000000e+00> : vector<8x384xf32>
    %17 = tpu.matmul %16, %9, %cst_17 {dimension_numbers = #tpu.dot_dimension_numbers<[1], [0], [0], [1], [0, 0, 1, 1], [], []>} : vector<8x128xbf16>, vector<128x384xbf16>, vector<8x384xf32> -> vector<8x384xf32>
    %18 = vector.extract_strided_slice %14 {offsets = [0, 0], sizes = [8, 128], strides = [1, 1]} : vector<8x384xf32> to vector<8x128xf32>
    %19 = vector.extract_strided_slice %17 {offsets = [0, 0], sizes = [8, 128], strides = [1, 1]} : vector<8x384xf32> to vector<8x128xf32>
    %20 = arith.addf %18, %19 : vector<8x128xf32>
    %21 = arith.negf %20 : vector<8x128xf32>
    %22 = math.exp %21 : vector<8x128xf32>
    %cst_18 = arith.constant 1.000000e+00 : f32
    %23 = vector.broadcast %cst_18 : f32 to vector<8x128xf32>
    %24 = arith.addf %23, %22 : vector<8x128xf32>
    %25 = arith.divf %23, %24 : vector<8x128xf32>
    %26 = vector.extract_strided_slice %14 {offsets = [0, 128], sizes = [8, 128], strides = [1, 1]} : vector<8x384xf32> to vector<8x128xf32>
    %27 = vector.extract_strided_slice %17 {offsets = [0, 128], sizes = [8, 128], strides = [1, 1]} : vector<8x384xf32> to vector<8x128xf32>
    %28 = arith.addf %26, %27 : vector<8x128xf32>
    %29 = arith.negf %28 : vector<8x128xf32>
    %30 = math.exp %29 : vector<8x128xf32>
    %cst_19 = arith.constant 1.000000e+00 : f32
    %31 = vector.broadcast %cst_19 : f32 to vector<8x128xf32>
    %32 = arith.addf %31, %30 : vector<8x128xf32>
    %33 = arith.divf %31, %32 : vector<8x128xf32>
    %34 = vector.extract_strided_slice %14 {offsets = [0, 256], sizes = [8, 128], strides = [1, 1]} : vector<8x384xf32> to vector<8x128xf32>
    %35 = vector.extract_strided_slice %17 {offsets = [0, 256], sizes = [8, 128], strides = [1, 1]} : vector<8x384xf32> to vector<8x128xf32>
    %36 = vector.broadcast %10 : vector<1x128xf32> to vector<8x128xf32>
    %37 = arith.addf %35, %36 : vector<8x128xf32>
    %38 = arith.mulf %25, %37 : vector<8x128xf32>
    %39 = arith.addf %34, %38 : vector<8x128xf32>
    %40 = math.tanh %39 : vector<8x128xf32>
    %cst_20 = arith.constant 1.000000e+00 : f32
    %41 = vector.broadcast %cst_20 : f32 to vector<8x128xf32>
    %42 = arith.subf %41, %33 : vector<8x128xf32>
    %43 = arith.mulf %42, %40 : vector<8x128xf32>
    %44 = arith.mulf %33, %15 : vector<8x128xf32>
    %45 = arith.addf %43, %44 : vector<8x128xf32>
    %c0_21 = arith.constant 0 : index
    %c0_22 = arith.constant 0 : index
    %46 = vector.load %arg14[%c0_21, %c0_22] : memref<8x128xf32, #tpu.memory_space<vmem>>, vector<8x128xf32>
    tpu.vector_store %arg14[%c0_21, %c0_22], %45 {strides = array<i32>} : memref<8x128xf32, #tpu.memory_space<vmem>>, vector<8x128xf32>,
    %47 = arith.index_cast %12 : i32 to index
    %c0_23 = arith.constant 0 : index
    %48 = vector.load %arg13[%47, %c0_23] : memref<64x128xf32, #tpu.memory_space<vmem>>, vector<8x128xf32>
    tpu.vector_store %arg13[%47, %c0_23], %45 {strides = array<i32>} : memref<64x128xf32, #tpu.memory_space<vmem>>, vector<8x128xf32>,
    %c1_i32 = arith.constant 1 : i32
    %c8_i32_24 = arith.constant 8 : i32
    %49 = arith.muli %c1_i32, %c8_i32_24 : i32
    %50 = tpu.assume_multiple %49, 8 : i32
    %51 = arith.index_cast %50 : i32 to index
    %c0_25 = arith.constant 0 : index
    %52 = vector.load %arg12[%51, %c0_25] : memref<64x384xf32, #tpu.memory_space<vmem>>, vector<8x384xf32>
    %c0_26 = arith.constant 0 : index
    %c0_27 = arith.constant 0 : index
    %53 = vector.load %arg14[%c0_26, %c0_27] : memref<8x128xf32, #tpu.memory_space<vmem>>, vector<8x128xf32>
    %54 = arith.truncf %53 : vector<8x128xf32> to vector<8x128xbf16>
    %cst_28 = arith.constant dense<0.000000e+00> : vector<8x384xf32>
    %55 = tpu.matmul %54, %9, %cst_28 {dimension_numbers = #tpu.dot_dimension_numbers<[1], [0], [0], [1], [0, 0, 1, 1], [], []>} : vector<8x128xbf16>, vector<128x384xbf16>, vector<8x384xf32> -> vector<8x384xf32>
    %56 = vector.extract_strided_slice %52 {offsets = [0, 0], sizes = [8, 128], strides = [1, 1]} : vector<8x384xf32> to vector<8x128xf32>
    %57 = vector.extract_strided_slice %55 {offsets = [0, 0], sizes = [8, 128], strides = [1, 1]} : vector<8x384xf32> to vector<8x128xf32>
    %58 = arith.addf %56, %57 : vector<8x128xf32>
    %59 = arith.negf %58 : vector<8x128xf32>
    %60 = math.exp %59 : vector<8x128xf32>
    %cst_29 = arith.constant 1.000000e+00 : f32
    %61 = vector.broadcast %cst_29 : f32 to vector<8x128xf32>
    %62 = arith.addf %61, %60 : vector<8x128xf32>
    %63 = arith.divf %61, %62 : vector<8x128xf32>
    %64 = vector.extract_strided_slice %52 {offsets = [0, 128], sizes = [8, 128], strides = [1, 1]} : vector<8x384xf32> to vector<8x128xf32>
    %65 = vector.extract_strided_slice %55 {offsets = [0, 128], sizes = [8, 128], strides = [1, 1]} : vector<8x384xf32> to vector<8x128xf32>
    %66 = arith.addf %64, %65 : vector<8x128xf32>
    %67 = arith.negf %66 : vector<8x128xf32>
    %68 = math.exp %67 : vector<8x128xf32>
    %cst_30 = arith.constant 1.000000e+00 : f32
    %69 = vector.broadcast %cst_30 : f32 to vector<8x128xf32>
    %70 = arith.addf %69, %68 : vector<8x128xf32>
    %71 = arith.divf %69, %70 : vector<8x128xf32>
    %72 = vector.extract_strided_slice %52 {offsets = [0, 256], sizes = [8, 128], strides = [1, 1]} : vector<8x384xf32> to vector<8x128xf32>
    %73 = vector.extract_strided_slice %55 {offsets = [0, 256], sizes = [8, 128], strides = [1, 1]} : vector<8x384xf32> to vector<8x128xf32>
    %74 = vector.broadcast %10 : vector<1x128xf32> to vector<8x128xf32>
    %75 = arith.addf %73, %74 : vector<8x128xf32>
    %76 = arith.mulf %63, %75 : vector<8x128xf32>
    %77 = arith.addf %72, %76 : vector<8x128xf32>
    %78 = math.tanh %77 : vector<8x128xf32>
    %cst_31 = arith.constant 1.000000e+00 : f32
    %79 = vector.broadcast %cst_31 : f32 to vector<8x128xf32>
    %80 = arith.subf %79, %71 : vector<8x128xf32>
    %81 = arith.mulf %80, %78 : vector<8x128xf32>
    %82 = arith.mulf %71, %53 : vector<8x128xf32>
    %83 = arith.addf %81, %82 : vector<8x128xf32>
    %c0_32 = arith.constant 0 : index
    %c0_33 = arith.constant 0 : index
    %84 = vector.load %arg14[%c0_32, %c0_33] : memref<8x128xf32, #tpu.memory_space<vmem>>, vector<8x128xf32>
    tpu.vector_store %arg14[%c0_32, %c0_33], %83 {strides = array<i32>} : memref<8x128xf32, #tpu.memory_space<vmem>>, vector<8x128xf32>,
    %85 = arith.index_cast %50 : i32 to index
    %c0_34 = arith.constant 0 : index
    %86 = vector.load %arg13[%85, %c0_34] : memref<64x128xf32, #tpu.memory_space<vmem>>, vector<8x128xf32>
    tpu.vector_store %arg13[%85, %c0_34], %83 {strides = array<i32>} : memref<64x128xf32, #tpu.memory_space<vmem>>, vector<8x128xf32>,
    %c2_i32 = arith.constant 2 : i32
    %c8_i32_35 = arith.constant 8 : i32
    %87 = arith.muli %c2_i32, %c8_i32_35 : i32
    %88 = tpu.assume_multiple %87, 8 : i32
    %89 = arith.index_cast %88 : i32 to index
    %c0_36 = arith.constant 0 : index
    %90 = vector.load %arg12[%89, %c0_36] : memref<64x384xf32, #tpu.memory_space<vmem>>, vector<8x384xf32>
    %c0_37 = arith.constant 0 : index
    %c0_38 = arith.constant 0 : index
    %91 = vector.load %arg14[%c0_37, %c0_38] : memref<8x128xf32, #tpu.memory_space<vmem>>, vector<8x128xf32>
    %92 = arith.truncf %91 : vector<8x128xf32> to vector<8x128xbf16>
    %cst_39 = arith.constant dense<0.000000e+00> : vector<8x384xf32>
    %93 = tpu.matmul %92, %9, %cst_39 {dimension_numbers = #tpu.dot_dimension_numbers<[1], [0], [0], [1], [0, 0, 1, 1], [], []>} : vector<8x128xbf16>, vector<128x384xbf16>, vector<8x384xf32> -> vector<8x384xf32>
    %94 = vector.extract_strided_slice %90 {offsets = [0, 0], sizes = [8, 128], strides = [1, 1]} : vector<8x384xf32> to vector<8x128xf32>
    %95 = vector.extract_strided_slice %93 {offsets = [0, 0], sizes = [8, 128], strides = [1, 1]} : vector<8x384xf32> to vector<8x128xf32>
    %96 = arith.addf %94, %95 : vector<8x128xf32>
    %97 = arith.negf %96 : vector<8x128xf32>
    %98 = math.exp %97 : vector<8x128xf32>
    %cst_40 = arith.constant 1.000000e+00 : f32
    %99 = vector.broadcast %cst_40 : f32 to vector<8x128xf32>
    %100 = arith.addf %99, %98 : vector<8x128xf32>
    %101 = arith.divf %99, %100 : vector<8x128xf32>
    %102 = vector.extract_strided_slice %90 {offsets = [0, 128], sizes = [8, 128], strides = [1, 1]} : vector<8x384xf32> to vector<8x128xf32>
    %103 = vector.extract_strided_slice %93 {offsets = [0, 128], sizes = [8, 128], strides = [1, 1]} : vector<8x384xf32> to vector<8x128xf32>
    %104 = arith.addf %102, %103 : vector<8x128xf32>
    %105 = arith.negf %104 : vector<8x128xf32>
    %106 = math.exp %105 : vector<8x128xf32>
    %cst_41 = arith.constant 1.000000e+00 : f32
    %107 = vector.broadcast %cst_41 : f32 to vector<8x128xf32>
    %108 = arith.addf %107, %106 : vector<8x128xf32>
    %109 = arith.divf %107, %108 : vector<8x128xf32>
    %110 = vector.extract_strided_slice %90 {offsets = [0, 256], sizes = [8, 128], strides = [1, 1]} : vector<8x384xf32> to vector<8x128xf32>
    %111 = vector.extract_strided_slice %93 {offsets = [0, 256], sizes = [8, 128], strides = [1, 1]} : vector<8x384xf32> to vector<8x128xf32>
    %112 = vector.broadcast %10 : vector<1x128xf32> to vector<8x128xf32>
    %113 = arith.addf %111, %112 : vector<8x128xf32>
    %114 = arith.mulf %101, %113 : vector<8x128xf32>
    %115 = arith.addf %110, %114 : vector<8x128xf32>
    %116 = math.tanh %115 : vector<8x128xf32>
    %cst_42 = arith.constant 1.000000e+00 : f32
    %117 = vector.broadcast %cst_42 : f32 to vector<8x128xf32>
    %118 = arith.subf %117, %109 : vector<8x128xf32>
    %119 = arith.mulf %118, %116 : vector<8x128xf32>
    %120 = arith.mulf %109, %91 : vector<8x128xf32>
    %121 = arith.addf %119, %120 : vector<8x128xf32>
    %c0_43 = arith.constant 0 : index
    %c0_44 = arith.constant 0 : index
    %122 = vector.load %arg14[%c0_43, %c0_44] : memref<8x128xf32, #tpu.memory_space<vmem>>, vector<8x128xf32>
    tpu.vector_store %arg14[%c0_43, %c0_44], %121 {strides = array<i32>} : memref<8x128xf32, #tpu.memory_space<vmem>>, vector<8x128xf32>,
    %123 = arith.index_cast %88 : i32 to index
    %c0_45 = arith.constant 0 : index
    %124 = vector.load %arg13[%123, %c0_45] : memref<64x128xf32, #tpu.memory_space<vmem>>, vector<8x128xf32>
    tpu.vector_store %arg13[%123, %c0_45], %121 {strides = array<i32>} : memref<64x128xf32, #tpu.memory_space<vmem>>, vector<8x128xf32>,
    %c3_i32 = arith.constant 3 : i32
    %c8_i32_46 = arith.constant 8 : i32
    %125 = arith.muli %c3_i32, %c8_i32_46 : i32
    %126 = tpu.assume_multiple %125, 8 : i32
    %127 = arith.index_cast %126 : i32 to index
    %c0_47 = arith.constant 0 : index
    %128 = vector.load %arg12[%127, %c0_47] : memref<64x384xf32, #tpu.memory_space<vmem>>, vector<8x384xf32>
    %c0_48 = arith.constant 0 : index
    %c0_49 = arith.constant 0 : index
    %129 = vector.load %arg14[%c0_48, %c0_49] : memref<8x128xf32, #tpu.memory_space<vmem>>, vector<8x128xf32>
    %130 = arith.truncf %129 : vector<8x128xf32> to vector<8x128xbf16>
    %cst_50 = arith.constant dense<0.000000e+00> : vector<8x384xf32>
    %131 = tpu.matmul %130, %9, %cst_50 {dimension_numbers = #tpu.dot_dimension_numbers<[1], [0], [0], [1], [0, 0, 1, 1], [], []>} : vector<8x128xbf16>, vector<128x384xbf16>, vector<8x384xf32> -> vector<8x384xf32>
    %132 = vector.extract_strided_slice %128 {offsets = [0, 0], sizes = [8, 128], strides = [1, 1]} : vector<8x384xf32> to vector<8x128xf32>
    %133 = vector.extract_strided_slice %131 {offsets = [0, 0], sizes = [8, 128], strides = [1, 1]} : vector<8x384xf32> to vector<8x128xf32>
    %134 = arith.addf %132, %133 : vector<8x128xf32>
    %135 = arith.negf %134 : vector<8x128xf32>
    %136 = math.exp %135 : vector<8x128xf32>
    %cst_51 = arith.constant 1.000000e+00 : f32
    %137 = vector.broadcast %cst_51 : f32 to vector<8x128xf32>
    %138 = arith.addf %137, %136 : vector<8x128xf32>
    %139 = arith.divf %137, %138 : vector<8x128xf32>
    %140 = vector.extract_strided_slice %128 {offsets = [0, 128], sizes = [8, 128], strides = [1, 1]} : vector<8x384xf32> to vector<8x128xf32>
    %141 = vector.extract_strided_slice %131 {offsets = [0, 128], sizes = [8, 128], strides = [1, 1]} : vector<8x384xf32> to vector<8x128xf32>
    %142 = arith.addf %140, %141 : vector<8x128xf32>
    %143 = arith.negf %142 : vector<8x128xf32>
    %144 = math.exp %143 : vector<8x128xf32>
    %cst_52 = arith.constant 1.000000e+00 : f32
    %145 = vector.broadcast %cst_52 : f32 to vector<8x128xf32>
    %146 = arith.addf %145, %144 : vector<8x128xf32>
    %147 = arith.divf %145, %146 : vector<8x128xf32>
    %148 = vector.extract_strided_slice %128 {offsets = [0, 256], sizes = [8, 128], strides = [1, 1]} : vector<8x384xf32> to vector<8x128xf32>
    %149 = vector.extract_strided_slice %131 {offsets = [0, 256], sizes = [8, 128], strides = [1, 1]} : vector<8x384xf32> to vector<8x128xf32>
    %150 = vector.broadcast %10 : vector<1x128xf32> to vector<8x128xf32>
    %151 = arith.addf %149, %150 : vector<8x128xf32>
    %152 = arith.mulf %139, %151 : vector<8x128xf32>
    %153 = arith.addf %148, %152 : vector<8x128xf32>
    %154 = math.tanh %153 : vector<8x128xf32>
    %cst_53 = arith.constant 1.000000e+00 : f32
    %155 = vector.broadcast %cst_53 : f32 to vector<8x128xf32>
    %156 = arith.subf %155, %147 : vector<8x128xf32>
    %157 = arith.mulf %156, %154 : vector<8x128xf32>
    %158 = arith.mulf %147, %129 : vector<8x128xf32>
    %159 = arith.addf %157, %158 : vector<8x128xf32>
    %c0_54 = arith.constant 0 : index
    %c0_55 = arith.constant 0 : index
    %160 = vector.load %arg14[%c0_54, %c0_55] : memref<8x128xf32, #tpu.memory_space<vmem>>, vector<8x128xf32>
    tpu.vector_store %arg14[%c0_54, %c0_55], %159 {strides = array<i32>} : memref<8x128xf32, #tpu.memory_space<vmem>>, vector<8x128xf32>,
    %161 = arith.index_cast %126 : i32 to index
    %c0_56 = arith.constant 0 : index
    %162 = vector.load %arg13[%161, %c0_56] : memref<64x128xf32, #tpu.memory_space<vmem>>, vector<8x128xf32>
    tpu.vector_store %arg13[%161, %c0_56], %159 {strides = array<i32>} : memref<64x128xf32, #tpu.memory_space<vmem>>, vector<8x128xf32>,
    %c4_i32 = arith.constant 4 : i32
    %c8_i32_57 = arith.constant 8 : i32
    %163 = arith.muli %c4_i32, %c8_i32_57 : i32
    %164 = tpu.assume_multiple %163, 8 : i32
    %165 = arith.index_cast %164 : i32 to index
    %c0_58 = arith.constant 0 : index
    %166 = vector.load %arg12[%165, %c0_58] : memref<64x384xf32, #tpu.memory_space<vmem>>, vector<8x384xf32>
    %c0_59 = arith.constant 0 : index
    %c0_60 = arith.constant 0 : index
    %167 = vector.load %arg14[%c0_59, %c0_60] : memref<8x128xf32, #tpu.memory_space<vmem>>, vector<8x128xf32>
    %168 = arith.truncf %167 : vector<8x128xf32> to vector<8x128xbf16>
    %cst_61 = arith.constant dense<0.000000e+00> : vector<8x384xf32>
    %169 = tpu.matmul %168, %9, %cst_61 {dimension_numbers = #tpu.dot_dimension_numbers<[1], [0], [0], [1], [0, 0, 1, 1], [], []>} : vector<8x128xbf16>, vector<128x384xbf16>, vector<8x384xf32> -> vector<8x384xf32>
    %170 = vector.extract_strided_slice %166 {offsets = [0, 0], sizes = [8, 128], strides = [1, 1]} : vector<8x384xf32> to vector<8x128xf32>
    %171 = vector.extract_strided_slice %169 {offsets = [0, 0], sizes = [8, 128], strides = [1, 1]} : vector<8x384xf32> to vector<8x128xf32>
    %172 = arith.addf %170, %171 : vector<8x128xf32>
    %173 = arith.negf %172 : vector<8x128xf32>
    %174 = math.exp %173 : vector<8x128xf32>
    %cst_62 = arith.constant 1.000000e+00 : f32
    %175 = vector.broadcast %cst_62 : f32 to vector<8x128xf32>
    %176 = arith.addf %175, %174 : vector<8x128xf32>
    %177 = arith.divf %175, %176 : vector<8x128xf32>
    %178 = vector.extract_strided_slice %166 {offsets = [0, 128], sizes = [8, 128], strides = [1, 1]} : vector<8x384xf32> to vector<8x128xf32>
    %179 = vector.extract_strided_slice %169 {offsets = [0, 128], sizes = [8, 128], strides = [1, 1]} : vector<8x384xf32> to vector<8x128xf32>
    %180 = arith.addf %178, %179 : vector<8x128xf32>
    %181 = arith.negf %180 : vector<8x128xf32>
    %182 = math.exp %181 : vector<8x128xf32>
    %cst_63 = arith.constant 1.000000e+00 : f32
    %183 = vector.broadcast %cst_63 : f32 to vector<8x128xf32>
    %184 = arith.addf %183, %182 : vector<8x128xf32>
    %185 = arith.divf %183, %184 : vector<8x128xf32>
    %186 = vector.extract_strided_slice %166 {offsets = [0, 256], sizes = [8, 128], strides = [1, 1]} : vector<8x384xf32> to vector<8x128xf32>
    %187 = vector.extract_strided_slice %169 {offsets = [0, 256], sizes = [8, 128], strides = [1, 1]} : vector<8x384xf32> to vector<8x128xf32>
    %188 = vector.broadcast %10 : vector<1x128xf32> to vector<8x128xf32>
    %189 = arith.addf %187, %188 : vector<8x128xf32>
    %190 = arith.mulf %177, %189 : vector<8x128xf32>
    %191 = arith.addf %186, %190 : vector<8x128xf32>
    %192 = math.tanh %191 : vector<8x128xf32>
    %cst_64 = arith.constant 1.000000e+00 : f32
    %193 = vector.broadcast %cst_64 : f32 to vector<8x128xf32>
    %194 = arith.subf %193, %185 : vector<8x128xf32>
    %195 = arith.mulf %194, %192 : vector<8x128xf32>
    %196 = arith.mulf %185, %167 : vector<8x128xf32>
    %197 = arith.addf %195, %196 : vector<8x128xf32>
    %c0_65 = arith.constant 0 : index
    %c0_66 = arith.constant 0 : index
    %198 = vector.load %arg14[%c0_65, %c0_66] : memref<8x128xf32, #tpu.memory_space<vmem>>, vector<8x128xf32>
    tpu.vector_store %arg14[%c0_65, %c0_66], %197 {strides = array<i32>} : memref<8x128xf32, #tpu.memory_space<vmem>>, vector<8x128xf32>,
    %199 = arith.index_cast %164 : i32 to index
    %c0_67 = arith.constant 0 : index
    %200 = vector.load %arg13[%199, %c0_67] : memref<64x128xf32, #tpu.memory_space<vmem>>, vector<8x128xf32>
    tpu.vector_store %arg13[%199, %c0_67], %197 {strides = array<i32>} : memref<64x128xf32, #tpu.memory_space<vmem>>, vector<8x128xf32>,
    %c5_i32 = arith.constant 5 : i32
    %c8_i32_68 = arith.constant 8 : i32
    %201 = arith.muli %c5_i32, %c8_i32_68 : i32
    %202 = tpu.assume_multiple %201, 8 : i32
    %203 = arith.index_cast %202 : i32 to index
    %c0_69 = arith.constant 0 : index
    %204 = vector.load %arg12[%203, %c0_69] : memref<64x384xf32, #tpu.memory_space<vmem>>, vector<8x384xf32>
    %c0_70 = arith.constant 0 : index
    %c0_71 = arith.constant 0 : index
    %205 = vector.load %arg14[%c0_70, %c0_71] : memref<8x128xf32, #tpu.memory_space<vmem>>, vector<8x128xf32>
    %206 = arith.truncf %205 : vector<8x128xf32> to vector<8x128xbf16>
    %cst_72 = arith.constant dense<0.000000e+00> : vector<8x384xf32>
    %207 = tpu.matmul %206, %9, %cst_72 {dimension_numbers = #tpu.dot_dimension_numbers<[1], [0], [0], [1], [0, 0, 1, 1], [], []>} : vector<8x128xbf16>, vector<128x384xbf16>, vector<8x384xf32> -> vector<8x384xf32>
    %208 = vector.extract_strided_slice %204 {offsets = [0, 0], sizes = [8, 128], strides = [1, 1]} : vector<8x384xf32> to vector<8x128xf32>
    %209 = vector.extract_strided_slice %207 {offsets = [0, 0], sizes = [8, 128], strides = [1, 1]} : vector<8x384xf32> to vector<8x128xf32>
    %210 = arith.addf %208, %209 : vector<8x128xf32>
    %211 = arith.negf %210 : vector<8x128xf32>
    %212 = math.exp %211 : vector<8x128xf32>
    %cst_73 = arith.constant 1.000000e+00 : f32
    %213 = vector.broadcast %cst_73 : f32 to vector<8x128xf32>
    %214 = arith.addf %213, %212 : vector<8x128xf32>
    %215 = arith.divf %213, %214 : vector<8x128xf32>
    %216 = vector.extract_strided_slice %204 {offsets = [0, 128], sizes = [8, 128], strides = [1, 1]} : vector<8x384xf32> to vector<8x128xf32>
    %217 = vector.extract_strided_slice %207 {offsets = [0, 128], sizes = [8, 128], strides = [1, 1]} : vector<8x384xf32> to vector<8x128xf32>
    %218 = arith.addf %216, %217 : vector<8x128xf32>
    %219 = arith.negf %218 : vector<8x128xf32>
    %220 = math.exp %219 : vector<8x128xf32>
    %cst_74 = arith.constant 1.000000e+00 : f32
    %221 = vector.broadcast %cst_74 : f32 to vector<8x128xf32>
    %222 = arith.addf %221, %220 : vector<8x128xf32>
    %223 = arith.divf %221, %222 : vector<8x128xf32>
    %224 = vector.extract_strided_slice %204 {offsets = [0, 256], sizes = [8, 128], strides = [1, 1]} : vector<8x384xf32> to vector<8x128xf32>
    %225 = vector.extract_strided_slice %207 {offsets = [0, 256], sizes = [8, 128], strides = [1, 1]} : vector<8x384xf32> to vector<8x128xf32>
    %226 = vector.broadcast %10 : vector<1x128xf32> to vector<8x128xf32>
    %227 = arith.addf %225, %226 : vector<8x128xf32>
    %228 = arith.mulf %215, %227 : vector<8x128xf32>
    %229 = arith.addf %224, %228 : vector<8x128xf32>
    %230 = math.tanh %229 : vector<8x128xf32>
    %cst_75 = arith.constant 1.000000e+00 : f32
    %231 = vector.broadcast %cst_75 : f32 to vector<8x128xf32>
    %232 = arith.subf %231, %223 : vector<8x128xf32>
    %233 = arith.mulf %232, %230 : vector<8x128xf32>
    %234 = arith.mulf %223, %205 : vector<8x128xf32>
    %235 = arith.addf %233, %234 : vector<8x128xf32>
    %c0_76 = arith.constant 0 : index
    %c0_77 = arith.constant 0 : index
    %236 = vector.load %arg14[%c0_76, %c0_77] : memref<8x128xf32, #tpu.memory_space<vmem>>, vector<8x128xf32>
    tpu.vector_store %arg14[%c0_76, %c0_77], %235 {strides = array<i32>} : memref<8x128xf32, #tpu.memory_space<vmem>>, vector<8x128xf32>,
    %237 = arith.index_cast %202 : i32 to index
    %c0_78 = arith.constant 0 : index
    %238 = vector.load %arg13[%237, %c0_78] : memref<64x128xf32, #tpu.memory_space<vmem>>, vector<8x128xf32>
    tpu.vector_store %arg13[%237, %c0_78], %235 {strides = array<i32>} : memref<64x128xf32, #tpu.memory_space<vmem>>, vector<8x128xf32>,
    %c6_i32 = arith.constant 6 : i32
    %c8_i32_79 = arith.constant 8 : i32
    %239 = arith.muli %c6_i32, %c8_i32_79 : i32
    %240 = tpu.assume_multiple %239, 8 : i32
    %241 = arith.index_cast %240 : i32 to index
    %c0_80 = arith.constant 0 : index
    %242 = vector.load %arg12[%241, %c0_80] : memref<64x384xf32, #tpu.memory_space<vmem>>, vector<8x384xf32>
    %c0_81 = arith.constant 0 : index
    %c0_82 = arith.constant 0 : index
    %243 = vector.load %arg14[%c0_81, %c0_82] : memref<8x128xf32, #tpu.memory_space<vmem>>, vector<8x128xf32>
    %244 = arith.truncf %243 : vector<8x128xf32> to vector<8x128xbf16>
    %cst_83 = arith.constant dense<0.000000e+00> : vector<8x384xf32>
    %245 = tpu.matmul %244, %9, %cst_83 {dimension_numbers = #tpu.dot_dimension_numbers<[1], [0], [0], [1], [0, 0, 1, 1], [], []>} : vector<8x128xbf16>, vector<128x384xbf16>, vector<8x384xf32> -> vector<8x384xf32>
    %246 = vector.extract_strided_slice %242 {offsets = [0, 0], sizes = [8, 128], strides = [1, 1]} : vector<8x384xf32> to vector<8x128xf32>
    %247 = vector.extract_strided_slice %245 {offsets = [0, 0], sizes = [8, 128], strides = [1, 1]} : vector<8x384xf32> to vector<8x128xf32>
    %248 = arith.addf %246, %247 : vector<8x128xf32>
    %249 = arith.negf %248 : vector<8x128xf32>
    %250 = math.exp %249 : vector<8x128xf32>
    %cst_84 = arith.constant 1.000000e+00 : f32
    %251 = vector.broadcast %cst_84 : f32 to vector<8x128xf32>
    %252 = arith.addf %251, %250 : vector<8x128xf32>
    %253 = arith.divf %251, %252 : vector<8x128xf32>
    %254 = vector.extract_strided_slice %242 {offsets = [0, 128], sizes = [8, 128], strides = [1, 1]} : vector<8x384xf32> to vector<8x128xf32>
    %255 = vector.extract_strided_slice %245 {offsets = [0, 128], sizes = [8, 128], strides = [1, 1]} : vector<8x384xf32> to vector<8x128xf32>
    %256 = arith.addf %254, %255 : vector<8x128xf32>
    %257 = arith.negf %256 : vector<8x128xf32>
    %258 = math.exp %257 : vector<8x128xf32>
    %cst_85 = arith.constant 1.000000e+00 : f32
    %259 = vector.broadcast %cst_85 : f32 to vector<8x128xf32>
    %260 = arith.addf %259, %258 : vector<8x128xf32>
    %261 = arith.divf %259, %260 : vector<8x128xf32>
    %262 = vector.extract_strided_slice %242 {offsets = [0, 256], sizes = [8, 128], strides = [1, 1]} : vector<8x384xf32> to vector<8x128xf32>
    %263 = vector.extract_strided_slice %245 {offsets = [0, 256], sizes = [8, 128], strides = [1, 1]} : vector<8x384xf32> to vector<8x128xf32>
    %264 = vector.broadcast %10 : vector<1x128xf32> to vector<8x128xf32>
    %265 = arith.addf %263, %264 : vector<8x128xf32>
    %266 = arith.mulf %253, %265 : vector<8x128xf32>
    %267 = arith.addf %262, %266 : vector<8x128xf32>
    %268 = math.tanh %267 : vector<8x128xf32>
    %cst_86 = arith.constant 1.000000e+00 : f32
    %269 = vector.broadcast %cst_86 : f32 to vector<8x128xf32>
    %270 = arith.subf %269, %261 : vector<8x128xf32>
    %271 = arith.mulf %270, %268 : vector<8x128xf32>
    %272 = arith.mulf %261, %243 : vector<8x128xf32>
    %273 = arith.addf %271, %272 : vector<8x128xf32>
    %c0_87 = arith.constant 0 : index
    %c0_88 = arith.constant 0 : index
    %274 = vector.load %arg14[%c0_87, %c0_88] : memref<8x128xf32, #tpu.memory_space<vmem>>, vector<8x128xf32>
    tpu.vector_store %arg14[%c0_87, %c0_88], %273 {strides = array<i32>} : memref<8x128xf32, #tpu.memory_space<vmem>>, vector<8x128xf32>,
    %275 = arith.index_cast %240 : i32 to index
    %c0_89 = arith.constant 0 : index
    %276 = vector.load %arg13[%275, %c0_89] : memref<64x128xf32, #tpu.memory_space<vmem>>, vector<8x128xf32>
    tpu.vector_store %arg13[%275, %c0_89], %273 {strides = array<i32>} : memref<64x128xf32, #tpu.memory_space<vmem>>, vector<8x128xf32>,
    %c7_i32 = arith.constant 7 : i32
    %c8_i32_90 = arith.constant 8 : i32
    %277 = arith.muli %c7_i32, %c8_i32_90 : i32
    %278 = tpu.assume_multiple %277, 8 : i32
    %279 = arith.index_cast %278 : i32 to index
    %c0_91 = arith.constant 0 : index
    %280 = vector.load %arg12[%279, %c0_91] : memref<64x384xf32, #tpu.memory_space<vmem>>, vector<8x384xf32>
    %c0_92 = arith.constant 0 : index
    %c0_93 = arith.constant 0 : index
    %281 = vector.load %arg14[%c0_92, %c0_93] : memref<8x128xf32, #tpu.memory_space<vmem>>, vector<8x128xf32>
    %282 = arith.truncf %281 : vector<8x128xf32> to vector<8x128xbf16>
    %cst_94 = arith.constant dense<0.000000e+00> : vector<8x384xf32>
    %283 = tpu.matmul %282, %9, %cst_94 {dimension_numbers = #tpu.dot_dimension_numbers<[1], [0], [0], [1], [0, 0, 1, 1], [], []>} : vector<8x128xbf16>, vector<128x384xbf16>, vector<8x384xf32> -> vector<8x384xf32>
    %284 = vector.extract_strided_slice %280 {offsets = [0, 0], sizes = [8, 128], strides = [1, 1]} : vector<8x384xf32> to vector<8x128xf32>
    %285 = vector.extract_strided_slice %283 {offsets = [0, 0], sizes = [8, 128], strides = [1, 1]} : vector<8x384xf32> to vector<8x128xf32>
    %286 = arith.addf %284, %285 : vector<8x128xf32>
    %287 = arith.negf %286 : vector<8x128xf32>
    %288 = math.exp %287 : vector<8x128xf32>
    %cst_95 = arith.constant 1.000000e+00 : f32
    %289 = vector.broadcast %cst_95 : f32 to vector<8x128xf32>
    %290 = arith.addf %289, %288 : vector<8x128xf32>
    %291 = arith.divf %289, %290 : vector<8x128xf32>
    %292 = vector.extract_strided_slice %280 {offsets = [0, 128], sizes = [8, 128], strides = [1, 1]} : vector<8x384xf32> to vector<8x128xf32>
    %293 = vector.extract_strided_slice %283 {offsets = [0, 128], sizes = [8, 128], strides = [1, 1]} : vector<8x384xf32> to vector<8x128xf32>
    %294 = arith.addf %292, %293 : vector<8x128xf32>
    %295 = arith.negf %294 : vector<8x128xf32>
    %296 = math.exp %295 : vector<8x128xf32>
    %cst_96 = arith.constant 1.000000e+00 : f32
    %297 = vector.broadcast %cst_96 : f32 to vector<8x128xf32>
    %298 = arith.addf %297, %296 : vector<8x128xf32>
    %299 = arith.divf %297, %298 : vector<8x128xf32>
    %300 = vector.extract_strided_slice %280 {offsets = [0, 256], sizes = [8, 128], strides = [1, 1]} : vector<8x384xf32> to vector<8x128xf32>
    %301 = vector.extract_strided_slice %283 {offsets = [0, 256], sizes = [8, 128], strides = [1, 1]} : vector<8x384xf32> to vector<8x128xf32>
    %302 = vector.broadcast %10 : vector<1x128xf32> to vector<8x128xf32>
    %303 = arith.addf %301, %302 : vector<8x128xf32>
    %304 = arith.mulf %291, %303 : vector<8x128xf32>
    %305 = arith.addf %300, %304 : vector<8x128xf32>
    %306 = math.tanh %305 : vector<8x128xf32>
    %cst_97 = arith.constant 1.000000e+00 : f32
    %307 = vector.broadcast %cst_97 : f32 to vector<8x128xf32>
    %308 = arith.subf %307, %299 : vector<8x128xf32>
    %309 = arith.mulf %308, %306 : vector<8x128xf32>
    %310 = arith.mulf %299, %281 : vector<8x128xf32>
    %311 = arith.addf %309, %310 : vector<8x128xf32>
    %c0_98 = arith.constant 0 : index
    %c0_99 = arith.constant 0 : index
    %312 = vector.load %arg14[%c0_98, %c0_99] : memref<8x128xf32, #tpu.memory_space<vmem>>, vector<8x128xf32>
    tpu.vector_store %arg14[%c0_98, %c0_99], %311 {strides = array<i32>} : memref<8x128xf32, #tpu.memory_space<vmem>>, vector<8x128xf32>,
    %313 = arith.index_cast %278 : i32 to index
    %c0_100 = arith.constant 0 : index
    %314 = vector.load %arg13[%313, %c0_100] : memref<64x128xf32, #tpu.memory_space<vmem>>, vector<8x128xf32>
    tpu.vector_store %arg13[%313, %c0_100], %311 {strides = array<i32>} : memref<64x128xf32, #tpu.memory_space<vmem>>, vector<8x128xf32>,
    %c8_i32_101 = arith.constant 8 : i32
    %c0_102 = arith.constant 0 : index
    %c0_103 = arith.constant 0 : index
    %315 = vector.load %arg14[%c0_102, %c0_103] : memref<8x128xf32, #tpu.memory_space<vmem>>, vector<8x128xf32>
    %c0_104 = arith.constant 0 : index
    %c0_105 = arith.constant 0 : index
    %316 = vector.load %arg11[%c0_104, %c0_105] : memref<16x128xf32, #tpu.memory_space<vmem>>, vector<8x128xf32>
    tpu.vector_store %arg11[%c0_104, %c0_105], %315 {strides = array<i32>} : memref<16x128xf32, #tpu.memory_space<vmem>>, vector<8x128xf32>,
    %c0_106 = arith.constant 0 : index
    %c0_107 = arith.constant 0 : index
    %317 = vector.load %arg13[%c0_106, %c0_107] : memref<64x128xf32, #tpu.memory_space<vmem>>, vector<64x128xf32>
    %318 = arith.truncf %317 : vector<64x128xf32> to vector<64x128xbf16>
    %c0_108 = arith.constant 0 : index
    %c0_109 = arith.constant 0 : index
    %319 = vector.load %arg6[%c0_108, %c0_109] : memref<128x384xbf16, #tpu.memory_space<vmem>>, vector<128x384xbf16>
    %cst_110 = arith.constant dense<0.000000e+00> : vector<64x384xf32>
    %320 = tpu.matmul %318, %319, %cst_110 {dimension_numbers = #tpu.dot_dimension_numbers<[1], [0], [0], [1], [0, 0, 1, 1], [], []>} : vector<64x128xbf16>, vector<128x384xbf16>, vector<64x384xf32> -> vector<64x384xf32>
    %c0_111 = arith.constant 0 : index
    %c0_112 = arith.constant 0 : index
    %321 = vector.load %arg8[%c0_111, %c0_112] : memref<1x384xf32, #tpu.memory_space<vmem>>, vector<1x384xf32>
    %322 = vector.broadcast %321 : vector<1x384xf32> to vector<64x384xf32>
    %323 = arith.addf %320, %322 : vector<64x384xf32>
    %c0_113 = arith.constant 0 : index
    %c0_114 = arith.constant 0 : index
    %324 = vector.load %arg12[%c0_113, %c0_114] : memref<64x384xf32, #tpu.memory_space<vmem>>, vector<64x384xf32>
    tpu.vector_store %arg12[%c0_113, %c0_114], %323 {strides = array<i32>} : memref<64x384xf32, #tpu.memory_space<vmem>>, vector<64x384xf32>,
    %cst_115 = arith.constant 0.000000e+00 : f32
    %325 = vector.broadcast %cst_115 : f32 to vector<8x128xf32>
    %c0_116 = arith.constant 0 : index
    %c0_117 = arith.constant 0 : index
    %326 = vector.load %arg14[%c0_116, %c0_117] : memref<8x128xf32, #tpu.memory_space<vmem>>, vector<8x128xf32>
    tpu.vector_store %arg14[%c0_116, %c0_117], %325 {strides = array<i32>} : memref<8x128xf32, #tpu.memory_space<vmem>>, vector<8x128xf32>,
    %c0_118 = arith.constant 0 : index
    %c0_119 = arith.constant 0 : index
    %327 = vector.load %arg7[%c0_118, %c0_119] : memref<128x384xbf16, #tpu.memory_space<vmem>>, vector<128x384xbf16>
    %c0_120 = arith.constant 0 : index
    %c0_121 = arith.constant 0 : index
    %328 = vector.load %arg9[%c0_120, %c0_121] : memref<1x128xf32, #tpu.memory_space<vmem>>, vector<1x128xf32>
    %c0_i32_122 = arith.constant 0 : i32
    %c8_i32_123 = arith.constant 8 : i32
    %329 = arith.muli %c0_i32_122, %c8_i32_123 : i32
    %330 = tpu.assume_multiple %329, 8 : i32
    %331 = arith.index_cast %330 : i32 to index
    %c0_124 = arith.constant 0 : index
    %332 = vector.load %arg12[%331, %c0_124] : memref<64x384xf32, #tpu.memory_space<vmem>>, vector<8x384xf32>
    %c0_125 = arith.constant 0 : index
    %c0_126 = arith.constant 0 : index
    %333 = vector.load %arg14[%c0_125, %c0_126] : memref<8x128xf32, #tpu.memory_space<vmem>>, vector<8x128xf32>
    %334 = arith.truncf %333 : vector<8x128xf32> to vector<8x128xbf16>
    %cst_127 = arith.constant dense<0.000000e+00> : vector<8x384xf32>
    %335 = tpu.matmul %334, %327, %cst_127 {dimension_numbers = #tpu.dot_dimension_numbers<[1], [0], [0], [1], [0, 0, 1, 1], [], []>} : vector<8x128xbf16>, vector<128x384xbf16>, vector<8x384xf32> -> vector<8x384xf32>
    %336 = vector.extract_strided_slice %332 {offsets = [0, 0], sizes = [8, 128], strides = [1, 1]} : vector<8x384xf32> to vector<8x128xf32>
    %337 = vector.extract_strided_slice %335 {offsets = [0, 0], sizes = [8, 128], strides = [1, 1]} : vector<8x384xf32> to vector<8x128xf32>
    %338 = arith.addf %336, %337 : vector<8x128xf32>
    %339 = arith.negf %338 : vector<8x128xf32>
    %340 = math.exp %339 : vector<8x128xf32>
    %cst_128 = arith.constant 1.000000e+00 : f32
    %341 = vector.broadcast %cst_128 : f32 to vector<8x128xf32>
    %342 = arith.addf %341, %340 : vector<8x128xf32>
    %343 = arith.divf %341, %342 : vector<8x128xf32>
    %344 = vector.extract_strided_slice %332 {offsets = [0, 128], sizes = [8, 128], strides = [1, 1]} : vector<8x384xf32> to vector<8x128xf32>
    %345 = vector.extract_strided_slice %335 {offsets = [0, 128], sizes = [8, 128], strides = [1, 1]} : vector<8x384xf32> to vector<8x128xf32>
    %346 = arith.addf %344, %345 : vector<8x128xf32>
    %347 = arith.negf %346 : vector<8x128xf32>
    %348 = math.exp %347 : vector<8x128xf32>
    %cst_129 = arith.constant 1.000000e+00 : f32
    %349 = vector.broadcast %cst_129 : f32 to vector<8x128xf32>
    %350 = arith.addf %349, %348 : vector<8x128xf32>
    %351 = arith.divf %349, %350 : vector<8x128xf32>
    %352 = vector.extract_strided_slice %332 {offsets = [0, 256], sizes = [8, 128], strides = [1, 1]} : vector<8x384xf32> to vector<8x128xf32>
    %353 = vector.extract_strided_slice %335 {offsets = [0, 256], sizes = [8, 128], strides = [1, 1]} : vector<8x384xf32> to vector<8x128xf32>
    %354 = vector.broadcast %328 : vector<1x128xf32> to vector<8x128xf32>
    %355 = arith.addf %353, %354 : vector<8x128xf32>
    %356 = arith.mulf %343, %355 : vector<8x128xf32>
    %357 = arith.addf %352, %356 : vector<8x128xf32>
    %358 = math.tanh %357 : vector<8x128xf32>
    %cst_130 = arith.constant 1.000000e+00 : f32
    %359 = vector.broadcast %cst_130 : f32 to vector<8x128xf32>
    %360 = arith.subf %359, %351 : vector<8x128xf32>
    %361 = arith.mulf %360, %358 : vector<8x128xf32>
    %362 = arith.mulf %351, %333 : vector<8x128xf32>
    %363 = arith.addf %361, %362 : vector<8x128xf32>
    %c0_131 = arith.constant 0 : index
    %c0_132 = arith.constant 0 : index
    %364 = vector.load %arg14[%c0_131, %c0_132] : memref<8x128xf32, #tpu.memory_space<vmem>>, vector<8x128xf32>
    tpu.vector_store %arg14[%c0_131, %c0_132], %363 {strides = array<i32>} : memref<8x128xf32, #tpu.memory_space<vmem>>, vector<8x128xf32>,
    %365 = arith.index_cast %330 : i32 to index
    %c0_133 = arith.constant 0 : index
    %366 = vector.load %arg10[%365, %c0_133] : memref<64x128xf32, #tpu.memory_space<vmem>>, vector<8x128xf32>
    tpu.vector_store %arg10[%365, %c0_133], %363 {strides = array<i32>} : memref<64x128xf32, #tpu.memory_space<vmem>>, vector<8x128xf32>,
    %c1_i32_134 = arith.constant 1 : i32
    %c8_i32_135 = arith.constant 8 : i32
    %367 = arith.muli %c1_i32_134, %c8_i32_135 : i32
    %368 = tpu.assume_multiple %367, 8 : i32
    %369 = arith.index_cast %368 : i32 to index
    %c0_136 = arith.constant 0 : index
    %370 = vector.load %arg12[%369, %c0_136] : memref<64x384xf32, #tpu.memory_space<vmem>>, vector<8x384xf32>
    %c0_137 = arith.constant 0 : index
    %c0_138 = arith.constant 0 : index
    %371 = vector.load %arg14[%c0_137, %c0_138] : memref<8x128xf32, #tpu.memory_space<vmem>>, vector<8x128xf32>
    %372 = arith.truncf %371 : vector<8x128xf32> to vector<8x128xbf16>
    %cst_139 = arith.constant dense<0.000000e+00> : vector<8x384xf32>
    %373 = tpu.matmul %372, %327, %cst_139 {dimension_numbers = #tpu.dot_dimension_numbers<[1], [0], [0], [1], [0, 0, 1, 1], [], []>} : vector<8x128xbf16>, vector<128x384xbf16>, vector<8x384xf32> -> vector<8x384xf32>
    %374 = vector.extract_strided_slice %370 {offsets = [0, 0], sizes = [8, 128], strides = [1, 1]} : vector<8x384xf32> to vector<8x128xf32>
    %375 = vector.extract_strided_slice %373 {offsets = [0, 0], sizes = [8, 128], strides = [1, 1]} : vector<8x384xf32> to vector<8x128xf32>
    %376 = arith.addf %374, %375 : vector<8x128xf32>
    %377 = arith.negf %376 : vector<8x128xf32>
    %378 = math.exp %377 : vector<8x128xf32>
    %cst_140 = arith.constant 1.000000e+00 : f32
    %379 = vector.broadcast %cst_140 : f32 to vector<8x128xf32>
    %380 = arith.addf %379, %378 : vector<8x128xf32>
    %381 = arith.divf %379, %380 : vector<8x128xf32>
    %382 = vector.extract_strided_slice %370 {offsets = [0, 128], sizes = [8, 128], strides = [1, 1]} : vector<8x384xf32> to vector<8x128xf32>
    %383 = vector.extract_strided_slice %373 {offsets = [0, 128], sizes = [8, 128], strides = [1, 1]} : vector<8x384xf32> to vector<8x128xf32>
    %384 = arith.addf %382, %383 : vector<8x128xf32>
    %385 = arith.negf %384 : vector<8x128xf32>
    %386 = math.exp %385 : vector<8x128xf32>
    %cst_141 = arith.constant 1.000000e+00 : f32
    %387 = vector.broadcast %cst_141 : f32 to vector<8x128xf32>
    %388 = arith.addf %387, %386 : vector<8x128xf32>
    %389 = arith.divf %387, %388 : vector<8x128xf32>
    %390 = vector.extract_strided_slice %370 {offsets = [0, 256], sizes = [8, 128], strides = [1, 1]} : vector<8x384xf32> to vector<8x128xf32>
    %391 = vector.extract_strided_slice %373 {offsets = [0, 256], sizes = [8, 128], strides = [1, 1]} : vector<8x384xf32> to vector<8x128xf32>
    %392 = vector.broadcast %328 : vector<1x128xf32> to vector<8x128xf32>
    %393 = arith.addf %391, %392 : vector<8x128xf32>
    %394 = arith.mulf %381, %393 : vector<8x128xf32>
    %395 = arith.addf %390, %394 : vector<8x128xf32>
    %396 = math.tanh %395 : vector<8x128xf32>
    %cst_142 = arith.constant 1.000000e+00 : f32
    %397 = vector.broadcast %cst_142 : f32 to vector<8x128xf32>
    %398 = arith.subf %397, %389 : vector<8x128xf32>
    %399 = arith.mulf %398, %396 : vector<8x128xf32>
    %400 = arith.mulf %389, %371 : vector<8x128xf32>
    %401 = arith.addf %399, %400 : vector<8x128xf32>
    %c0_143 = arith.constant 0 : index
    %c0_144 = arith.constant 0 : index
    %402 = vector.load %arg14[%c0_143, %c0_144] : memref<8x128xf32, #tpu.memory_space<vmem>>, vector<8x128xf32>
    tpu.vector_store %arg14[%c0_143, %c0_144], %401 {strides = array<i32>} : memref<8x128xf32, #tpu.memory_space<vmem>>, vector<8x128xf32>,
    %403 = arith.index_cast %368 : i32 to index
    %c0_145 = arith.constant 0 : index
    %404 = vector.load %arg10[%403, %c0_145] : memref<64x128xf32, #tpu.memory_space<vmem>>, vector<8x128xf32>
    tpu.vector_store %arg10[%403, %c0_145], %401 {strides = array<i32>} : memref<64x128xf32, #tpu.memory_space<vmem>>, vector<8x128xf32>,
    %c2_i32_146 = arith.constant 2 : i32
    %c8_i32_147 = arith.constant 8 : i32
    %405 = arith.muli %c2_i32_146, %c8_i32_147 : i32
    %406 = tpu.assume_multiple %405, 8 : i32
    %407 = arith.index_cast %406 : i32 to index
    %c0_148 = arith.constant 0 : index
    %408 = vector.load %arg12[%407, %c0_148] : memref<64x384xf32, #tpu.memory_space<vmem>>, vector<8x384xf32>
    %c0_149 = arith.constant 0 : index
    %c0_150 = arith.constant 0 : index
    %409 = vector.load %arg14[%c0_149, %c0_150] : memref<8x128xf32, #tpu.memory_space<vmem>>, vector<8x128xf32>
    %410 = arith.truncf %409 : vector<8x128xf32> to vector<8x128xbf16>
    %cst_151 = arith.constant dense<0.000000e+00> : vector<8x384xf32>
    %411 = tpu.matmul %410, %327, %cst_151 {dimension_numbers = #tpu.dot_dimension_numbers<[1], [0], [0], [1], [0, 0, 1, 1], [], []>} : vector<8x128xbf16>, vector<128x384xbf16>, vector<8x384xf32> -> vector<8x384xf32>
    %412 = vector.extract_strided_slice %408 {offsets = [0, 0], sizes = [8, 128], strides = [1, 1]} : vector<8x384xf32> to vector<8x128xf32>
    %413 = vector.extract_strided_slice %411 {offsets = [0, 0], sizes = [8, 128], strides = [1, 1]} : vector<8x384xf32> to vector<8x128xf32>
    %414 = arith.addf %412, %413 : vector<8x128xf32>
    %415 = arith.negf %414 : vector<8x128xf32>
    %416 = math.exp %415 : vector<8x128xf32>
    %cst_152 = arith.constant 1.000000e+00 : f32
    %417 = vector.broadcast %cst_152 : f32 to vector<8x128xf32>
    %418 = arith.addf %417, %416 : vector<8x128xf32>
    %419 = arith.divf %417, %418 : vector<8x128xf32>
    %420 = vector.extract_strided_slice %408 {offsets = [0, 128], sizes = [8, 128], strides = [1, 1]} : vector<8x384xf32> to vector<8x128xf32>
    %421 = vector.extract_strided_slice %411 {offsets = [0, 128], sizes = [8, 128], strides = [1, 1]} : vector<8x384xf32> to vector<8x128xf32>
    %422 = arith.addf %420, %421 : vector<8x128xf32>
    %423 = arith.negf %422 : vector<8x128xf32>
    %424 = math.exp %423 : vector<8x128xf32>
    %cst_153 = arith.constant 1.000000e+00 : f32
    %425 = vector.broadcast %cst_153 : f32 to vector<8x128xf32>
    %426 = arith.addf %425, %424 : vector<8x128xf32>
    %427 = arith.divf %425, %426 : vector<8x128xf32>
    %428 = vector.extract_strided_slice %408 {offsets = [0, 256], sizes = [8, 128], strides = [1, 1]} : vector<8x384xf32> to vector<8x128xf32>
    %429 = vector.extract_strided_slice %411 {offsets = [0, 256], sizes = [8, 128], strides = [1, 1]} : vector<8x384xf32> to vector<8x128xf32>
    %430 = vector.broadcast %328 : vector<1x128xf32> to vector<8x128xf32>
    %431 = arith.addf %429, %430 : vector<8x128xf32>
    %432 = arith.mulf %419, %431 : vector<8x128xf32>
    %433 = arith.addf %428, %432 : vector<8x128xf32>
    %434 = math.tanh %433 : vector<8x128xf32>
    %cst_154 = arith.constant 1.000000e+00 : f32
    %435 = vector.broadcast %cst_154 : f32 to vector<8x128xf32>
    %436 = arith.subf %435, %427 : vector<8x128xf32>
    %437 = arith.mulf %436, %434 : vector<8x128xf32>
    %438 = arith.mulf %427, %409 : vector<8x128xf32>
    %439 = arith.addf %437, %438 : vector<8x128xf32>
    %c0_155 = arith.constant 0 : index
    %c0_156 = arith.constant 0 : index
    %440 = vector.load %arg14[%c0_155, %c0_156] : memref<8x128xf32, #tpu.memory_space<vmem>>, vector<8x128xf32>
    tpu.vector_store %arg14[%c0_155, %c0_156], %439 {strides = array<i32>} : memref<8x128xf32, #tpu.memory_space<vmem>>, vector<8x128xf32>,
    %441 = arith.index_cast %406 : i32 to index
    %c0_157 = arith.constant 0 : index
    %442 = vector.load %arg10[%441, %c0_157] : memref<64x128xf32, #tpu.memory_space<vmem>>, vector<8x128xf32>
    tpu.vector_store %arg10[%441, %c0_157], %439 {strides = array<i32>} : memref<64x128xf32, #tpu.memory_space<vmem>>, vector<8x128xf32>,
    %c3_i32_158 = arith.constant 3 : i32
    %c8_i32_159 = arith.constant 8 : i32
    %443 = arith.muli %c3_i32_158, %c8_i32_159 : i32
    %444 = tpu.assume_multiple %443, 8 : i32
    %445 = arith.index_cast %444 : i32 to index
    %c0_160 = arith.constant 0 : index
    %446 = vector.load %arg12[%445, %c0_160] : memref<64x384xf32, #tpu.memory_space<vmem>>, vector<8x384xf32>
    %c0_161 = arith.constant 0 : index
    %c0_162 = arith.constant 0 : index
    %447 = vector.load %arg14[%c0_161, %c0_162] : memref<8x128xf32, #tpu.memory_space<vmem>>, vector<8x128xf32>
    %448 = arith.truncf %447 : vector<8x128xf32> to vector<8x128xbf16>
    %cst_163 = arith.constant dense<0.000000e+00> : vector<8x384xf32>
    %449 = tpu.matmul %448, %327, %cst_163 {dimension_numbers = #tpu.dot_dimension_numbers<[1], [0], [0], [1], [0, 0, 1, 1], [], []>} : vector<8x128xbf16>, vector<128x384xbf16>, vector<8x384xf32> -> vector<8x384xf32>
    %450 = vector.extract_strided_slice %446 {offsets = [0, 0], sizes = [8, 128], strides = [1, 1]} : vector<8x384xf32> to vector<8x128xf32>
    %451 = vector.extract_strided_slice %449 {offsets = [0, 0], sizes = [8, 128], strides = [1, 1]} : vector<8x384xf32> to vector<8x128xf32>
    %452 = arith.addf %450, %451 : vector<8x128xf32>
    %453 = arith.negf %452 : vector<8x128xf32>
    %454 = math.exp %453 : vector<8x128xf32>
    %cst_164 = arith.constant 1.000000e+00 : f32
    %455 = vector.broadcast %cst_164 : f32 to vector<8x128xf32>
    %456 = arith.addf %455, %454 : vector<8x128xf32>
    %457 = arith.divf %455, %456 : vector<8x128xf32>
    %458 = vector.extract_strided_slice %446 {offsets = [0, 128], sizes = [8, 128], strides = [1, 1]} : vector<8x384xf32> to vector<8x128xf32>
    %459 = vector.extract_strided_slice %449 {offsets = [0, 128], sizes = [8, 128], strides = [1, 1]} : vector<8x384xf32> to vector<8x128xf32>
    %460 = arith.addf %458, %459 : vector<8x128xf32>
    %461 = arith.negf %460 : vector<8x128xf32>
    %462 = math.exp %461 : vector<8x128xf32>
    %cst_165 = arith.constant 1.000000e+00 : f32
    %463 = vector.broadcast %cst_165 : f32 to vector<8x128xf32>
    %464 = arith.addf %463, %462 : vector<8x128xf32>
    %465 = arith.divf %463, %464 : vector<8x128xf32>
    %466 = vector.extract_strided_slice %446 {offsets = [0, 256], sizes = [8, 128], strides = [1, 1]} : vector<8x384xf32> to vector<8x128xf32>
    %467 = vector.extract_strided_slice %449 {offsets = [0, 256], sizes = [8, 128], strides = [1, 1]} : vector<8x384xf32> to vector<8x128xf32>
    %468 = vector.broadcast %328 : vector<1x128xf32> to vector<8x128xf32>
    %469 = arith.addf %467, %468 : vector<8x128xf32>
    %470 = arith.mulf %457, %469 : vector<8x128xf32>
    %471 = arith.addf %466, %470 : vector<8x128xf32>
    %472 = math.tanh %471 : vector<8x128xf32>
    %cst_166 = arith.constant 1.000000e+00 : f32
    %473 = vector.broadcast %cst_166 : f32 to vector<8x128xf32>
    %474 = arith.subf %473, %465 : vector<8x128xf32>
    %475 = arith.mulf %474, %472 : vector<8x128xf32>
    %476 = arith.mulf %465, %447 : vector<8x128xf32>
    %477 = arith.addf %475, %476 : vector<8x128xf32>
    %c0_167 = arith.constant 0 : index
    %c0_168 = arith.constant 0 : index
    %478 = vector.load %arg14[%c0_167, %c0_168] : memref<8x128xf32, #tpu.memory_space<vmem>>, vector<8x128xf32>
    tpu.vector_store %arg14[%c0_167, %c0_168], %477 {strides = array<i32>} : memref<8x128xf32, #tpu.memory_space<vmem>>, vector<8x128xf32>,
    %479 = arith.index_cast %444 : i32 to index
    %c0_169 = arith.constant 0 : index
    %480 = vector.load %arg10[%479, %c0_169] : memref<64x128xf32, #tpu.memory_space<vmem>>, vector<8x128xf32>
    tpu.vector_store %arg10[%479, %c0_169], %477 {strides = array<i32>} : memref<64x128xf32, #tpu.memory_space<vmem>>, vector<8x128xf32>,
    %c4_i32_170 = arith.constant 4 : i32
    %c8_i32_171 = arith.constant 8 : i32
    %481 = arith.muli %c4_i32_170, %c8_i32_171 : i32
    %482 = tpu.assume_multiple %481, 8 : i32
    %483 = arith.index_cast %482 : i32 to index
    %c0_172 = arith.constant 0 : index
    %484 = vector.load %arg12[%483, %c0_172] : memref<64x384xf32, #tpu.memory_space<vmem>>, vector<8x384xf32>
    %c0_173 = arith.constant 0 : index
    %c0_174 = arith.constant 0 : index
    %485 = vector.load %arg14[%c0_173, %c0_174] : memref<8x128xf32, #tpu.memory_space<vmem>>, vector<8x128xf32>
    %486 = arith.truncf %485 : vector<8x128xf32> to vector<8x128xbf16>
    %cst_175 = arith.constant dense<0.000000e+00> : vector<8x384xf32>
    %487 = tpu.matmul %486, %327, %cst_175 {dimension_numbers = #tpu.dot_dimension_numbers<[1], [0], [0], [1], [0, 0, 1, 1], [], []>} : vector<8x128xbf16>, vector<128x384xbf16>, vector<8x384xf32> -> vector<8x384xf32>
    %488 = vector.extract_strided_slice %484 {offsets = [0, 0], sizes = [8, 128], strides = [1, 1]} : vector<8x384xf32> to vector<8x128xf32>
    %489 = vector.extract_strided_slice %487 {offsets = [0, 0], sizes = [8, 128], strides = [1, 1]} : vector<8x384xf32> to vector<8x128xf32>
    %490 = arith.addf %488, %489 : vector<8x128xf32>
    %491 = arith.negf %490 : vector<8x128xf32>
    %492 = math.exp %491 : vector<8x128xf32>
    %cst_176 = arith.constant 1.000000e+00 : f32
    %493 = vector.broadcast %cst_176 : f32 to vector<8x128xf32>
    %494 = arith.addf %493, %492 : vector<8x128xf32>
    %495 = arith.divf %493, %494 : vector<8x128xf32>
    %496 = vector.extract_strided_slice %484 {offsets = [0, 128], sizes = [8, 128], strides = [1, 1]} : vector<8x384xf32> to vector<8x128xf32>
    %497 = vector.extract_strided_slice %487 {offsets = [0, 128], sizes = [8, 128], strides = [1, 1]} : vector<8x384xf32> to vector<8x128xf32>
    %498 = arith.addf %496, %497 : vector<8x128xf32>
    %499 = arith.negf %498 : vector<8x128xf32>
    %500 = math.exp %499 : vector<8x128xf32>
    %cst_177 = arith.constant 1.000000e+00 : f32
    %501 = vector.broadcast %cst_177 : f32 to vector<8x128xf32>
    %502 = arith.addf %501, %500 : vector<8x128xf32>
    %503 = arith.divf %501, %502 : vector<8x128xf32>
    %504 = vector.extract_strided_slice %484 {offsets = [0, 256], sizes = [8, 128], strides = [1, 1]} : vector<8x384xf32> to vector<8x128xf32>
    %505 = vector.extract_strided_slice %487 {offsets = [0, 256], sizes = [8, 128], strides = [1, 1]} : vector<8x384xf32> to vector<8x128xf32>
    %506 = vector.broadcast %328 : vector<1x128xf32> to vector<8x128xf32>
    %507 = arith.addf %505, %506 : vector<8x128xf32>
    %508 = arith.mulf %495, %507 : vector<8x128xf32>
    %509 = arith.addf %504, %508 : vector<8x128xf32>
    %510 = math.tanh %509 : vector<8x128xf32>
    %cst_178 = arith.constant 1.000000e+00 : f32
    %511 = vector.broadcast %cst_178 : f32 to vector<8x128xf32>
    %512 = arith.subf %511, %503 : vector<8x128xf32>
    %513 = arith.mulf %512, %510 : vector<8x128xf32>
    %514 = arith.mulf %503, %485 : vector<8x128xf32>
    %515 = arith.addf %513, %514 : vector<8x128xf32>
    %c0_179 = arith.constant 0 : index
    %c0_180 = arith.constant 0 : index
    %516 = vector.load %arg14[%c0_179, %c0_180] : memref<8x128xf32, #tpu.memory_space<vmem>>, vector<8x128xf32>
    tpu.vector_store %arg14[%c0_179, %c0_180], %515 {strides = array<i32>} : memref<8x128xf32, #tpu.memory_space<vmem>>, vector<8x128xf32>,
    %517 = arith.index_cast %482 : i32 to index
    %c0_181 = arith.constant 0 : index
    %518 = vector.load %arg10[%517, %c0_181] : memref<64x128xf32, #tpu.memory_space<vmem>>, vector<8x128xf32>
    tpu.vector_store %arg10[%517, %c0_181], %515 {strides = array<i32>} : memref<64x128xf32, #tpu.memory_space<vmem>>, vector<8x128xf32>,
    %c5_i32_182 = arith.constant 5 : i32
    %c8_i32_183 = arith.constant 8 : i32
    %519 = arith.muli %c5_i32_182, %c8_i32_183 : i32
    %520 = tpu.assume_multiple %519, 8 : i32
    %521 = arith.index_cast %520 : i32 to index
    %c0_184 = arith.constant 0 : index
    %522 = vector.load %arg12[%521, %c0_184] : memref<64x384xf32, #tpu.memory_space<vmem>>, vector<8x384xf32>
    %c0_185 = arith.constant 0 : index
    %c0_186 = arith.constant 0 : index
    %523 = vector.load %arg14[%c0_185, %c0_186] : memref<8x128xf32, #tpu.memory_space<vmem>>, vector<8x128xf32>
    %524 = arith.truncf %523 : vector<8x128xf32> to vector<8x128xbf16>
    %cst_187 = arith.constant dense<0.000000e+00> : vector<8x384xf32>
    %525 = tpu.matmul %524, %327, %cst_187 {dimension_numbers = #tpu.dot_dimension_numbers<[1], [0], [0], [1], [0, 0, 1, 1], [], []>} : vector<8x128xbf16>, vector<128x384xbf16>, vector<8x384xf32> -> vector<8x384xf32>
    %526 = vector.extract_strided_slice %522 {offsets = [0, 0], sizes = [8, 128], strides = [1, 1]} : vector<8x384xf32> to vector<8x128xf32>
    %527 = vector.extract_strided_slice %525 {offsets = [0, 0], sizes = [8, 128], strides = [1, 1]} : vector<8x384xf32> to vector<8x128xf32>
    %528 = arith.addf %526, %527 : vector<8x128xf32>
    %529 = arith.negf %528 : vector<8x128xf32>
    %530 = math.exp %529 : vector<8x128xf32>
    %cst_188 = arith.constant 1.000000e+00 : f32
    %531 = vector.broadcast %cst_188 : f32 to vector<8x128xf32>
    %532 = arith.addf %531, %530 : vector<8x128xf32>
    %533 = arith.divf %531, %532 : vector<8x128xf32>
    %534 = vector.extract_strided_slice %522 {offsets = [0, 128], sizes = [8, 128], strides = [1, 1]} : vector<8x384xf32> to vector<8x128xf32>
    %535 = vector.extract_strided_slice %525 {offsets = [0, 128], sizes = [8, 128], strides = [1, 1]} : vector<8x384xf32> to vector<8x128xf32>
    %536 = arith.addf %534, %535 : vector<8x128xf32>
    %537 = arith.negf %536 : vector<8x128xf32>
    %538 = math.exp %537 : vector<8x128xf32>
    %cst_189 = arith.constant 1.000000e+00 : f32
    %539 = vector.broadcast %cst_189 : f32 to vector<8x128xf32>
    %540 = arith.addf %539, %538 : vector<8x128xf32>
    %541 = arith.divf %539, %540 : vector<8x128xf32>
    %542 = vector.extract_strided_slice %522 {offsets = [0, 256], sizes = [8, 128], strides = [1, 1]} : vector<8x384xf32> to vector<8x128xf32>
    %543 = vector.extract_strided_slice %525 {offsets = [0, 256], sizes = [8, 128], strides = [1, 1]} : vector<8x384xf32> to vector<8x128xf32>
    %544 = vector.broadcast %328 : vector<1x128xf32> to vector<8x128xf32>
    %545 = arith.addf %543, %544 : vector<8x128xf32>
    %546 = arith.mulf %533, %545 : vector<8x128xf32>
    %547 = arith.addf %542, %546 : vector<8x128xf32>
    %548 = math.tanh %547 : vector<8x128xf32>
    %cst_190 = arith.constant 1.000000e+00 : f32
    %549 = vector.broadcast %cst_190 : f32 to vector<8x128xf32>
    %550 = arith.subf %549, %541 : vector<8x128xf32>
    %551 = arith.mulf %550, %548 : vector<8x128xf32>
    %552 = arith.mulf %541, %523 : vector<8x128xf32>
    %553 = arith.addf %551, %552 : vector<8x128xf32>
    %c0_191 = arith.constant 0 : index
    %c0_192 = arith.constant 0 : index
    %554 = vector.load %arg14[%c0_191, %c0_192] : memref<8x128xf32, #tpu.memory_space<vmem>>, vector<8x128xf32>
    tpu.vector_store %arg14[%c0_191, %c0_192], %553 {strides = array<i32>} : memref<8x128xf32, #tpu.memory_space<vmem>>, vector<8x128xf32>,
    %555 = arith.index_cast %520 : i32 to index
    %c0_193 = arith.constant 0 : index
    %556 = vector.load %arg10[%555, %c0_193] : memref<64x128xf32, #tpu.memory_space<vmem>>, vector<8x128xf32>
    tpu.vector_store %arg10[%555, %c0_193], %553 {strides = array<i32>} : memref<64x128xf32, #tpu.memory_space<vmem>>, vector<8x128xf32>,
    %c6_i32_194 = arith.constant 6 : i32
    %c8_i32_195 = arith.constant 8 : i32
    %557 = arith.muli %c6_i32_194, %c8_i32_195 : i32
    %558 = tpu.assume_multiple %557, 8 : i32
    %559 = arith.index_cast %558 : i32 to index
    %c0_196 = arith.constant 0 : index
    %560 = vector.load %arg12[%559, %c0_196] : memref<64x384xf32, #tpu.memory_space<vmem>>, vector<8x384xf32>
    %c0_197 = arith.constant 0 : index
    %c0_198 = arith.constant 0 : index
    %561 = vector.load %arg14[%c0_197, %c0_198] : memref<8x128xf32, #tpu.memory_space<vmem>>, vector<8x128xf32>
    %562 = arith.truncf %561 : vector<8x128xf32> to vector<8x128xbf16>
    %cst_199 = arith.constant dense<0.000000e+00> : vector<8x384xf32>
    %563 = tpu.matmul %562, %327, %cst_199 {dimension_numbers = #tpu.dot_dimension_numbers<[1], [0], [0], [1], [0, 0, 1, 1], [], []>} : vector<8x128xbf16>, vector<128x384xbf16>, vector<8x384xf32> -> vector<8x384xf32>
    %564 = vector.extract_strided_slice %560 {offsets = [0, 0], sizes = [8, 128], strides = [1, 1]} : vector<8x384xf32> to vector<8x128xf32>
    %565 = vector.extract_strided_slice %563 {offsets = [0, 0], sizes = [8, 128], strides = [1, 1]} : vector<8x384xf32> to vector<8x128xf32>
    %566 = arith.addf %564, %565 : vector<8x128xf32>
    %567 = arith.negf %566 : vector<8x128xf32>
    %568 = math.exp %567 : vector<8x128xf32>
    %cst_200 = arith.constant 1.000000e+00 : f32
    %569 = vector.broadcast %cst_200 : f32 to vector<8x128xf32>
    %570 = arith.addf %569, %568 : vector<8x128xf32>
    %571 = arith.divf %569, %570 : vector<8x128xf32>
    %572 = vector.extract_strided_slice %560 {offsets = [0, 128], sizes = [8, 128], strides = [1, 1]} : vector<8x384xf32> to vector<8x128xf32>
    %573 = vector.extract_strided_slice %563 {offsets = [0, 128], sizes = [8, 128], strides = [1, 1]} : vector<8x384xf32> to vector<8x128xf32>
    %574 = arith.addf %572, %573 : vector<8x128xf32>
    %575 = arith.negf %574 : vector<8x128xf32>
    %576 = math.exp %575 : vector<8x128xf32>
    %cst_201 = arith.constant 1.000000e+00 : f32
    %577 = vector.broadcast %cst_201 : f32 to vector<8x128xf32>
    %578 = arith.addf %577, %576 : vector<8x128xf32>
    %579 = arith.divf %577, %578 : vector<8x128xf32>
    %580 = vector.extract_strided_slice %560 {offsets = [0, 256], sizes = [8, 128], strides = [1, 1]} : vector<8x384xf32> to vector<8x128xf32>
    %581 = vector.extract_strided_slice %563 {offsets = [0, 256], sizes = [8, 128], strides = [1, 1]} : vector<8x384xf32> to vector<8x128xf32>
    %582 = vector.broadcast %328 : vector<1x128xf32> to vector<8x128xf32>
    %583 = arith.addf %581, %582 : vector<8x128xf32>
    %584 = arith.mulf %571, %583 : vector<8x128xf32>
    %585 = arith.addf %580, %584 : vector<8x128xf32>
    %586 = math.tanh %585 : vector<8x128xf32>
    %cst_202 = arith.constant 1.000000e+00 : f32
    %587 = vector.broadcast %cst_202 : f32 to vector<8x128xf32>
    %588 = arith.subf %587, %579 : vector<8x128xf32>
    %589 = arith.mulf %588, %586 : vector<8x128xf32>
    %590 = arith.mulf %579, %561 : vector<8x128xf32>
    %591 = arith.addf %589, %590 : vector<8x128xf32>
    %c0_203 = arith.constant 0 : index
    %c0_204 = arith.constant 0 : index
    %592 = vector.load %arg14[%c0_203, %c0_204] : memref<8x128xf32, #tpu.memory_space<vmem>>, vector<8x128xf32>
    tpu.vector_store %arg14[%c0_203, %c0_204], %591 {strides = array<i32>} : memref<8x128xf32, #tpu.memory_space<vmem>>, vector<8x128xf32>,
    %593 = arith.index_cast %558 : i32 to index
    %c0_205 = arith.constant 0 : index
    %594 = vector.load %arg10[%593, %c0_205] : memref<64x128xf32, #tpu.memory_space<vmem>>, vector<8x128xf32>
    tpu.vector_store %arg10[%593, %c0_205], %591 {strides = array<i32>} : memref<64x128xf32, #tpu.memory_space<vmem>>, vector<8x128xf32>,
    %c7_i32_206 = arith.constant 7 : i32
    %c8_i32_207 = arith.constant 8 : i32
    %595 = arith.muli %c7_i32_206, %c8_i32_207 : i32
    %596 = tpu.assume_multiple %595, 8 : i32
    %597 = arith.index_cast %596 : i32 to index
    %c0_208 = arith.constant 0 : index
    %598 = vector.load %arg12[%597, %c0_208] : memref<64x384xf32, #tpu.memory_space<vmem>>, vector<8x384xf32>
    %c0_209 = arith.constant 0 : index
    %c0_210 = arith.constant 0 : index
    %599 = vector.load %arg14[%c0_209, %c0_210] : memref<8x128xf32, #tpu.memory_space<vmem>>, vector<8x128xf32>
    %600 = arith.truncf %599 : vector<8x128xf32> to vector<8x128xbf16>
    %cst_211 = arith.constant dense<0.000000e+00> : vector<8x384xf32>
    %601 = tpu.matmul %600, %327, %cst_211 {dimension_numbers = #tpu.dot_dimension_numbers<[1], [0], [0], [1], [0, 0, 1, 1], [], []>} : vector<8x128xbf16>, vector<128x384xbf16>, vector<8x384xf32> -> vector<8x384xf32>
    %602 = vector.extract_strided_slice %598 {offsets = [0, 0], sizes = [8, 128], strides = [1, 1]} : vector<8x384xf32> to vector<8x128xf32>
    %603 = vector.extract_strided_slice %601 {offsets = [0, 0], sizes = [8, 128], strides = [1, 1]} : vector<8x384xf32> to vector<8x128xf32>
    %604 = arith.addf %602, %603 : vector<8x128xf32>
    %605 = arith.negf %604 : vector<8x128xf32>
    %606 = math.exp %605 : vector<8x128xf32>
    %cst_212 = arith.constant 1.000000e+00 : f32
    %607 = vector.broadcast %cst_212 : f32 to vector<8x128xf32>
    %608 = arith.addf %607, %606 : vector<8x128xf32>
    %609 = arith.divf %607, %608 : vector<8x128xf32>
    %610 = vector.extract_strided_slice %598 {offsets = [0, 128], sizes = [8, 128], strides = [1, 1]} : vector<8x384xf32> to vector<8x128xf32>
    %611 = vector.extract_strided_slice %601 {offsets = [0, 128], sizes = [8, 128], strides = [1, 1]} : vector<8x384xf32> to vector<8x128xf32>
    %612 = arith.addf %610, %611 : vector<8x128xf32>
    %613 = arith.negf %612 : vector<8x128xf32>
    %614 = math.exp %613 : vector<8x128xf32>
    %cst_213 = arith.constant 1.000000e+00 : f32
    %615 = vector.broadcast %cst_213 : f32 to vector<8x128xf32>
    %616 = arith.addf %615, %614 : vector<8x128xf32>
    %617 = arith.divf %615, %616 : vector<8x128xf32>
    %618 = vector.extract_strided_slice %598 {offsets = [0, 256], sizes = [8, 128], strides = [1, 1]} : vector<8x384xf32> to vector<8x128xf32>
    %619 = vector.extract_strided_slice %601 {offsets = [0, 256], sizes = [8, 128], strides = [1, 1]} : vector<8x384xf32> to vector<8x128xf32>
    %620 = vector.broadcast %328 : vector<1x128xf32> to vector<8x128xf32>
    %621 = arith.addf %619, %620 : vector<8x128xf32>
    %622 = arith.mulf %609, %621 : vector<8x128xf32>
    %623 = arith.addf %618, %622 : vector<8x128xf32>
    %624 = math.tanh %623 : vector<8x128xf32>
    %cst_214 = arith.constant 1.000000e+00 : f32
    %625 = vector.broadcast %cst_214 : f32 to vector<8x128xf32>
    %626 = arith.subf %625, %617 : vector<8x128xf32>
    %627 = arith.mulf %626, %624 : vector<8x128xf32>
    %628 = arith.mulf %617, %599 : vector<8x128xf32>
    %629 = arith.addf %627, %628 : vector<8x128xf32>
    %c0_215 = arith.constant 0 : index
    %c0_216 = arith.constant 0 : index
    %630 = vector.load %arg14[%c0_215, %c0_216] : memref<8x128xf32, #tpu.memory_space<vmem>>, vector<8x128xf32>
    tpu.vector_store %arg14[%c0_215, %c0_216], %629 {strides = array<i32>} : memref<8x128xf32, #tpu.memory_space<vmem>>, vector<8x128xf32>,
    %631 = arith.index_cast %596 : i32 to index
    %c0_217 = arith.constant 0 : index
    %632 = vector.load %arg10[%631, %c0_217] : memref<64x128xf32, #tpu.memory_space<vmem>>, vector<8x128xf32>
    tpu.vector_store %arg10[%631, %c0_217], %629 {strides = array<i32>} : memref<64x128xf32, #tpu.memory_space<vmem>>, vector<8x128xf32>,
    %c8_i32_218 = arith.constant 8 : i32
    %c0_219 = arith.constant 0 : index
    %c0_220 = arith.constant 0 : index
    %633 = vector.load %arg14[%c0_219, %c0_220] : memref<8x128xf32, #tpu.memory_space<vmem>>, vector<8x128xf32>
    %c8 = arith.constant 8 : index
    %c0_221 = arith.constant 0 : index
    %634 = vector.load %arg11[%c8, %c0_221] : memref<16x128xf32, #tpu.memory_space<vmem>>, vector<8x128xf32>
    tpu.vector_store %arg11[%c8, %c0_221], %633 {strides = array<i32>} : memref<16x128xf32, #tpu.memory_space<vmem>>, vector<8x128xf32>,
    return
  }
  func.func @transform_0(%arg0: i32) -> (i32, i32) {
    %c0_i32 = arith.constant 0 : i32
    %c0_i32_0 = arith.constant 0 : i32
    %c0_i32_1 = arith.constant 0 : i32
    return %c0_i32, %c0_i32_0 : i32, i32
  }
  func.func @transform_1(%arg0: i32) -> (i32, i32) {
    %c0_i32 = arith.constant 0 : i32
    %c0_i32_0 = arith.constant 0 : i32
    %c0_i32_1 = arith.constant 0 : i32
    return %c0_i32, %c0_i32_0 : i32, i32
  }
  func.func @transform_2(%arg0: i32) -> (i32, i32) {
    %c0_i32 = arith.constant 0 : i32
    %c0_i32_0 = arith.constant 0 : i32
    %c0_i32_1 = arith.constant 0 : i32
    return %c0_i32, %c0_i32_0 : i32, i32
  }
  func.func @transform_3(%arg0: i32) -> (i32, i32) {
    %c0_i32 = arith.constant 0 : i32
    %c0_i32_0 = arith.constant 0 : i32
    %c0_i32_1 = arith.constant 0 : i32
    return %c0_i32, %c0_i32_0 : i32, i32
  }
  func.func @transform_4(%arg0: i32) -> (i32, i32) {
    %c0_i32 = arith.constant 0 : i32
    %c0_i32_0 = arith.constant 0 : i32
    %c0_i32_1 = arith.constant 0 : i32
    return %c0_i32, %c0_i32_0 : i32, i32
  }
  func.func @transform_5(%arg0: i32) -> (i32, i32) {
    %c0_i32 = arith.constant 0 : i32
    %c0_i32_0 = arith.constant 0 : i32
    %c0_i32_1 = arith.constant 0 : i32
    return %c0_i32, %c0_i32_0 : i32, i32
  }
  func.func @transform_6(%arg0: i32) -> (i32, i32) {
    %c0_i32 = arith.constant 0 : i32
    %c0_i32_0 = arith.constant 0 : i32
    %c0_i32_1 = arith.constant 0 : i32
    return %c0_i32, %c0_i32_0 : i32, i32
  }
  func.func @transform_7(%arg0: i32) -> (i32, i32) {
    %c0_i32 = arith.constant 0 : i32
    %c0_i32_0 = arith.constant 0 : i32
    %c0_i32_1 = arith.constant 0 : i32
    return %c0_i32, %c0_i32_0 : i32, i32
  }
  func.func @transform_8(%arg0: i32) -> (i32, i32) {
    %c0_i32 = arith.constant 0 : i32
    %c0_i32_0 = arith.constant 0 : i32
    %c0_i32_1 = arith.constant 0 : i32
    return %c0_i32, %c0_i32_0 : i32, i32
  }
  func.func @transform_9(%arg0: i32) -> (i32, i32) {
    %c0_i32 = arith.constant 0 : i32
    %c0_i32_0 = arith.constant 0 : i32
    %c0_i32_1 = arith.constant 0 : i32
    return %c0_i32, %c0_i32_0 : i32, i32
  }
  func.func @transform_10(%arg0: i32) -> (i32, i32) {
    %c0_i32 = arith.constant 0 : i32
    %c0_i32_0 = arith.constant 0 : i32
    %c0_i32_1 = arith.constant 0 : i32
    return %c0_i32, %c0_i32_0 : i32, i32
  }
}

</mosaic_0001>

<llo_original>
// kernel: tpu_custom_call.1
$region0: #{tpu_custom_call.1}
  #allocation0 [shape = 'u32[]', space=smem, size = 0x4, offset = 0x4, fixed_abs, tag = 'smem constant byte address 0x4 - core index']
  #allocation1 [shape = 'u32[144,128]{1,0:T(1,128)}', space=vmem, size = 0x12000, scoped, tag = 'internal scratch']
  #allocation2 [shape = 'f32[64,384]{1,0:T(8,128)}', space=vmem, size = 0x18000, scoped, tag = 'scratch operand']
  #allocation3 [shape = 'f32[64,128]{1,0:T(8,128)}', space=vmem, size = 0x8000, scoped, tag = 'scratch operand']
  #allocation4 [shape = 'f32[8,128]{1,0:T(8,128)}', space=vmem, size = 0x1000, scoped, tag = 'scratch operand']
  %s0 = inlined_call_operand.hbm [shape: bf16[64,128], index: 0, kind: input, shape index: {}]
  %s1 = inlined_call_operand.hbm [shape: bf16[128,384], index: 1, kind: input, shape index: {}]
  %s2 = inlined_call_operand.hbm [shape: bf16[128,384], index: 2, kind: input, shape index: {}]
  %s3 = inlined_call_operand.vmem [shape: f32[1,384], index: 3, kind: input, shape index: {}]
  %s4 = inlined_call_operand.vmem [shape: f32[1,128], index: 4, kind: input, shape index: {}]
  %s5 = inlined_call_operand.hbm [shape: bf16[128,384], index: 5, kind: input, shape index: {}]
  %s6 = inlined_call_operand.hbm [shape: bf16[128,384], index: 6, kind: input, shape index: {}]
  %s7 = inlined_call_operand.vmem [shape: f32[1,384], index: 7, kind: input, shape index: {}]
  %s8 = inlined_call_operand.vmem [shape: f32[1,128], index: 8, kind: input, shape index: {}]
  %s9 = inlined_call_operand.hbm [shape: f32[64,128], index: 9, kind: output, shape index: {0}]
  %s10 = inlined_call_operand.hbm [shape: f32[16,128], index: 10, kind: output, shape index: {1}]
  %11 = xla_tuple %s9, %s10
  %s12 = sld [smem:[#allocation0]]
  $region74: #{tpu_custom_call.1} parent=0
    _
  %s14 = ssub.s32 1, %s12
  %s15 = scalar_select 0, %s14, %s12
  $region1: #{tpu_custom_call.1} parent=0
    #allocation5 [shape = 'u8[16384]{0}', space=vmem, size = 0x4000, scoped, tag = 'input window, operand 0, single buffered']
    #allocation6 [shape = 's32[1]{0}', space=sflag, size = 0x4, scoped, tag = 'scoped memory for tpu_custom_call.1']
    #allocation7 [shape = 's32[1]{0}', space=sflag, size = 0x4, scoped, tag = 'scoped memory for tpu_custom_call.1']
    #allocation8 [shape = 'u8[98304]{0}', space=vmem, size = 0x18000, scoped, tag = 'input window, operand 1, single buffered']
    #allocation9 [shape = 's32[1]{0}', space=sflag, size = 0x4, scoped, tag = 'scoped memory for tpu_custom_call.1']
    #allocation10 [shape = 'u8[98304]{0}', space=vmem, size = 0x18000, scoped, tag = 'input window, operand 2, single buffered']
    #allocation11 [shape = 'u8[98304]{0}', space=vmem, size = 0x18000, scoped, tag = 'input window, operand 5, single buffered']
    #allocation12 [shape = 's32[1]{0}', space=sflag, size = 0x4, scoped, tag = 'scoped memory for tpu_custom_call.1']
    #allocation13 [shape = 'u8[98304]{0}', space=vmem, size = 0x18000, scoped, tag = 'input window, operand 6, single buffered']
    #allocation14 [shape = 'u8[32768]{0}', space=vmem, size = 0x8000, scoped, tag = 'output window, operand 0, single buffered']
    #allocation15 [shape = 'u8[8192]{0}', space=vmem, size = 0x2000, scoped, tag = 'output window, operand 1, single buffered']
    #allocation16 [shape = 's32[1]{0}', space=sflag, size = 0x4, scoped, tag = 'scoped memory for tpu_custom_call.1']
    %16 = vsyncpa [#allocation6], 0
    %17 = vsyncpa [#allocation9], 0
    %18 = vsyncpa [#allocation12], 0
    %19 = vsyncpa [#allocation7], 0
    %20 = vsyncpa [#allocation16], 0
    // Predicated region
    $region2: #{tpu_custom_call.1} parent=1 // pred_check
      _
    $region3: #{tpu_custom_call.1} parent=1 // pred_check_branch
      %22 = sbr.rel (0) target = $region5
    $region4: #{tpu_custom_call.1} parent=1 // pred_region
      %s24 = ssub.s32 512, 512
      %25 = vsyncadd [#allocation6], %s24
      %s26 = sshll.u32 [#allocation5], 4
      %s27 = int_to_ptr.vmem [resolvable:$true] %s26
      %32 = dma.hbm_to_vmem [thread:$0]  %s0, 512, %s27, [#allocation6], 64, 64, 4
    $region5: #{tpu_custom_call.1} parent=1 // pred_fallthru
      _
    // Predicated region
    $region6: #{tpu_custom_call.1} parent=1 // pred_check
      _
    $region7: #{tpu_custom_call.1} parent=1 // pred_check_branch
      %34 = sbr.rel (0) target = $region9
    $region8: #{tpu_custom_call.1} parent=1 // pred_region
      %s36 = ssub.s32 3072, 3072
      %37 = vsyncadd [#allocation9], %s36
      %s38 = sshll.u32 [#allocation8], 4
      %s39 = int_to_ptr.vmem [resolvable:$true] %s38
      %44 = dma.hbm_to_vmem [thread:$0]  %s1, 3072, %s39, [#allocation9], 192, 192, 12
    $region9: #{tpu_custom_call.1} parent=1 // pred_fallthru
      _
    // Predicated region
    $region10: #{tpu_custom_call.1} parent=1 // pred_check
      _
    $region11: #{tpu_custom_call.1} parent=1 // pred_check_branch
      %46 = sbr.rel (0) target = $region13
    $region12: #{tpu_custom_call.1} parent=1 // pred_region
      %s48 = ssub.s32 3072, 3072
      %49 = vsyncadd [#allocation9], %s48
      %s50 = sshll.u32 [#allocation10], 4
      %s51 = int_to_ptr.vmem [resolvable:$true] %s50
      %56 = dma.hbm_to_vmem [thread:$0]  %s2, 3072, %s51, [#allocation9], 192, 192, 12
    $region13: #{tpu_custom_call.1} parent=1 // pred_fallthru
      _
    // Predicated region
    $region14: #{tpu_custom_call.1} parent=1 // pred_check
      _
    $region15: #{tpu_custom_call.1} parent=1 // pred_check_branch
      %58 = sbr.rel (0) target = $region17
    $region16: #{tpu_custom_call.1} parent=1 // pred_region
      _
    $region17: #{tpu_custom_call.1} parent=1 // pred_fallthru
      _
    // Predicated region
    $region18: #{tpu_custom_call.1} parent=1 // pred_check
      _
    $region19: #{tpu_custom_call.1} parent=1 // pred_check_branch
      %60 = sbr.rel (0) target = $region21
    $region20: #{tpu_custom_call.1} parent=1 // pred_region
      _
    $region21: #{tpu_custom_call.1} parent=1 // pred_fallthru
      _
    // Predicated region
    $region22: #{tpu_custom_call.1} parent=1 // pred_check
      _
    $region23: #{tpu_custom_call.1} parent=1 // pred_check_branch
      %62 = sbr.rel (0) target = $region25
    $region24: #{tpu_custom_call.1} parent=1 // pred_region
      %s64 = ssub.s32 3072, 3072
      %65 = vsyncadd [#allocation12], %s64
      %s66 = sshll.u32 [#allocation11], 4
      %s67 = int_to_ptr.vmem [resolvable:$true] %s66
      %72 = dma.hbm_to_vmem [thread:$0]  %s5, 3072, %s67, [#allocation12], 192, 192, 12
    $region25: #{tpu_custom_call.1} parent=1 // pred_fallthru
      _
    // Predicated region
    $region26: #{tpu_custom_call.1} parent=1 // pred_check
      _
    $region27: #{tpu_custom_call.1} parent=1 // pred_check_branch
      %74 = sbr.rel (0) target = $region29
    $region28: #{tpu_custom_call.1} parent=1 // pred_region
      %s76 = ssub.s32 3072, 3072
      %77 = vsyncadd [#allocation12], %s76
      %s78 = sshll.u32 [#allocation13], 4
      %s79 = int_to_ptr.vmem [resolvable:$true] %s78
      %84 = dma.hbm_to_vmem [thread:$0]  %s6, 3072, %s79, [#allocation12], 192, 192, 12
    $region29: #{tpu_custom_call.1} parent=1 // pred_fallthru
      _
    // Predicated region
    $region30: #{tpu_custom_call.1} parent=1 // pred_check
      _
    $region31: #{tpu_custom_call.1} parent=1 // pred_check_branch
      %86 = sbr.rel (0) target = $region33
    $region32: #{tpu_custom_call.1} parent=1 // pred_region
      _
    $region33: #{tpu_custom_call.1} parent=1 // pred_fallthru
      _
    // Predicated region
    $region34: #{tpu_custom_call.1} parent=1 // pred_check
      _
    $region35: #{tpu_custom_call.1} parent=1 // pred_check_branch
      %88 = sbr.rel (0) target = $region37
    $region36: #{tpu_custom_call.1} parent=1 // pred_region
      _
    $region37: #{tpu_custom_call.1} parent=1 // pred_fallthru
      _
    // Predicated region
    $region38: #{tpu_custom_call.1} parent=1 // pred_check
      _
    $region39: #{tpu_custom_call.1} parent=1 // pred_check_branch
      %90 = sbr.rel (0) target = $region41
    $region40: #{tpu_custom_call.1} parent=1 // pred_region
      %91 = dma.done [#allocation6], 512
    $region41: #{tpu_custom_call.1} parent=1 // pred_fallthru
      _
    // Predicated region
    $region42: #{tpu_custom_call.1} parent=1 // pred_check
      _
    $region43: #{tpu_custom_call.1} parent=1 // pred_check_branch
      %93 = sbr.rel (0) target = $region45
    $region44: #{tpu_custom_call.1} parent=1 // pred_region
      %94 = dma.done [#allocation9], 3072
    $region45: #{tpu_custom_call.1} parent=1 // pred_fallthru
      _
    // Predicated region
    $region46: #{tpu_custom_call.1} parent=1 // pred_check
      _
    $region47: #{tpu_custom_call.1} parent=1 // pred_check_branch
      %96 = sbr.rel (0) target = $region49
    $region48: #{tpu_custom_call.1} parent=1 // pred_region
      %97 = dma.done [#allocation9], 3072
    $region49: #{tpu_custom_call.1} parent=1 // pred_fallthru
      _
    // Predicated region
    $region50: #{tpu_custom_call.1} parent=1 // pred_check
      _
    $region51: #{tpu_custom_call.1} parent=1 // pred_check_branch
      %99 = sbr.rel (0) target = $region53
    $region52: #{tpu_custom_call.1} parent=1 // pred_region
      %100 = dma.done [#allocation12], 3072
    $region53: #{tpu_custom_call.1} parent=1 // pred_fallthru
      _
    // Predicated region
    $region54: #{tpu_custom_call.1} parent=1 // pred_check
      _
    $region55: #{tpu_custom_call.1} parent=1 // pred_check_branch
      %102 = sbr.rel (0) target = $region57
    $region56: #{tpu_custom_call.1} parent=1 // pred_region
      %103 = dma.done [#allocation12], 3072
    $region57: #{tpu_custom_call.1} parent=1 // pred_fallthru
      _
    %v105 = vld [vmem:[#allocation5] sm:$0xf]
    %v106 = vld [vmem:[#allocation5 + $0x4] sm:$0xf]
    %v107 = vld [vmem:[#allocation5 + $0x8] sm:$0xf]
    %v108 = vld [vmem:[#allocation5 + $0xc] sm:$0xf]
    %v109 = vld [vmem:[#allocation5 + $0x10] sm:$0xf]
    %v110 = vld [vmem:[#allocation5 + $0x14] sm:$0xf]
    %v111 = vld [vmem:[#allocation5 + $0x18] sm:$0xf]
    %v112 = vld [vmem:[#allocation5 + $0x1c] sm:$0xf]
    %v113 = vld [vmem:[#allocation8] sm:$0xff]
    %v114 = vld [vmem:[#allocation8 + $0x8] sm:$0xf]
    %v115 = vld [vmem:[#allocation8 + $0xc] sm:$0xff]
    %v116 = vld [vmem:[#allocation8 + $0x14] sm:$0xf]
    %v117 = vld [vmem:[#allocation8 + $0x18] sm:$0xff]
    %v118 = vld [vmem:[#allocation8 + $0x20] sm:$0xf]
    %v119 = vld [vmem:[#allocation8 + $0x24] sm:$0xff]
    %v120 = vld [vmem:[#allocation8 + $0x2c] sm:$0xf]
    %v121 = vld [vmem:[#allocation8 + $0x30] sm:$0xff]
    %v122 = vld [vmem:[#allocation8 + $0x38] sm:$0xf]
    %v123 = vld [vmem:[#allocation8 + $0x3c] sm:$0xff]
    %v124 = vld [vmem:[#allocation8 + $0x44] sm:$0xf]
    %v125 = vld [vmem:[#allocation8 + $0x48] sm:$0xff]
    %v126 = vld [vmem:[#allocation8 + $0x50] sm:$0xf]
    %v127 = vld [vmem:[#allocation8 + $0x54] sm:$0xff]
    %v128 = vld [vmem:[#allocation8 + $0x5c] sm:$0xf]
    %v129 = vld [vmem:[#allocation8 + $0x60] sm:$0xff]
    %v130 = vld [vmem:[#allocation8 + $0x68] sm:$0xf]
    %v131 = vld [vmem:[#allocation8 + $0x6c] sm:$0xff]
    %v132 = vld [vmem:[#allocation8 + $0x74] sm:$0xf]
    %v133 = vld [vmem:[#allocation8 + $0x78] sm:$0xff]
    %v134 = vld [vmem:[#allocation8 + $0x80] sm:$0xf]
    %v135 = vld [vmem:[#allocation8 + $0x84] sm:$0xff]
    %v136 = vld [vmem:[#allocation8 + $0x8c] sm:$0xf]
    %v137 = vld [vmem:[#allocation8 + $0x90] sm:$0xff]
    %v138 = vld [vmem:[#allocation8 + $0x98] sm:$0xf]
    %v139 = vld [vmem:[#allocation8 + $0x9c] sm:$0xff]
    %v140 = vld [vmem:[#allocation8 + $0xa4] sm:$0xf]
    %v141 = vld [vmem:[#allocation8 + $0xa8] sm:$0xff]
    %v142 = vld [vmem:[#allocation8 + $0xb0] sm:$0xf]
    %v143 = vld [vmem:[#allocation8 + $0xb4] sm:$0xff]
    %v144 = vld [vmem:[#allocation8 + $0xbc] sm:$0xf]
    %v145 = vld [vmem:[%s3] sm:$0x7]
    %v147 = vlaneseq
    %v148 = vshrl.u32 %v147, 7
    %v149 = vsub.s32 0, %v148
    %v150 = vrot.slane %v145, %v149
    %v151 = vlaneseq
    %v152 = vshrl.u32 %v151, 7
    %v153 = vsub.s32 1, %v152
    %v154 = vrot.slane %v145, %v153
    %v155 = vlaneseq
    %v156 = vshrl.u32 %v155, 7
    %v157 = vsub.s32 2, %v156
    %v158 = vrot.slane %v145, %v157
    %v170 = vunpack.c.l.b16 %v105
    %v171 = vunpack.c.l.b16 %v106
    %v172 = vunpack.c.l.b16 %v107
    %v173 = vunpack.c.l.b16 %v108
    %v174 = vunpack.c.l.b16 %v109
    %v175 = vunpack.c.l.b16 %v110
    %v176 = vunpack.c.l.b16 %v111
    %v177 = vunpack.c.l.b16 %v112
    %v178 = vpack.c.b16 %v171, %v170
    %v179 = vpack.c.b16 %v173, %v172
    %v180 = vpack.c.b16 %v175, %v174
    %v181 = vpack.c.b16 %v177, %v176
    %v218 = vunpack.c.l.b16 %v113
    %v219 = vunpack.c.h.b16 %v113
    %v220 = vunpack.c.l.b16 %v114
    %v221 = vunpack.c.l.b16 %v115
    %v222 = vunpack.c.h.b16 %v115
    %v223 = vunpack.c.l.b16 %v116
    %v224 = vunpack.c.l.b16 %v117
    %v225 = vunpack.c.h.b16 %v117
    %v226 = vunpack.c.l.b16 %v118
    %v227 = vunpack.c.l.b16 %v119
    %v228 = vunpack.c.h.b16 %v119
    %v229 = vunpack.c.l.b16 %v120
    %v230 = vunpack.c.l.b16 %v121
    %v231 = vunpack.c.h.b16 %v121
    %v232 = vunpack.c.l.b16 %v122
    %v233 = vunpack.c.l.b16 %v123
    %v234 = vunpack.c.h.b16 %v123
    %v235 = vunpack.c.l.b16 %v124
    %v236 = vunpack.c.l.b16 %v125
    %v237 = vunpack.c.h.b16 %v125
    %v238 = vunpack.c.l.b16 %v126
    %v239 = vunpack.c.l.b16 %v127
    %v240 = vunpack.c.h.b16 %v127
    %v241 = vunpack.c.l.b16 %v128
    %v242 = vunpack.c.l.b16 %v129
    %v243 = vunpack.c.h.b16 %v129
    %v244 = vunpack.c.l.b16 %v130
    %v245 = vunpack.c.l.b16 %v131
    %v246 = vunpack.c.h.b16 %v131
    %v247 = vunpack.c.l.b16 %v132
    %v248 = vunpack.c.l.b16 %v133
    %v249 = vunpack.c.h.b16 %v133
    %v250 = vunpack.c.l.b16 %v134
    %v251 = vunpack.c.l.b16 %v135
    %v252 = vunpack.c.h.b16 %v135
    %v253 = vunpack.c.l.b16 %v136
    %v254 = vunpack.c.l.b16 %v137
    %v255 = vunpack.c.h.b16 %v137
    %v256 = vunpack.c.l.b16 %v138
    %v257 = vunpack.c.l.b16 %v139
    %v258 = vunpack.c.h.b16 %v139
    %v259 = vunpack.c.l.b16 %v140
    %v260 = vunpack.c.l.b16 %v141
    %v261 = vunpack.c.h.b16 %v141
    %v262 = vunpack.c.l.b16 %v142
    %v263 = vunpack.c.l.b16 %v143
    %v264 = vunpack.c.h.b16 %v143
    %v265 = vunpack.c.l.b16 %v144
    %v266 = vpack.c.b16 %v221, %v218
    %v267 = vpack.c.b16 %v222, %v219
    %v268 = vpack.c.b16 %v223, %v220
    %v269 = vpack.c.b16 %v227, %v224
    %v270 = vpack.c.b16 %v228, %v225
    %v271 = vpack.c.b16 %v229, %v226
    %v272 = vpack.c.b16 %v233, %v230
    %v273 = vpack.c.b16 %v234, %v231
    %v274 = vpack.c.b16 %v235, %v232
    %v275 = vpack.c.b16 %v239, %v236
    %v276 = vpack.c.b16 %v240, %v237
    %v277 = vpack.c.b16 %v241, %v238
    %v278 = vpack.c.b16 %v245, %v242
    %v279 = vpack.c.b16 %v246, %v243
    %v280 = vpack.c.b16 %v247, %v244
    %v281 = vpack.c.b16 %v251, %v248
    %v282 = vpack.c.b16 %v252, %v249
    %v283 = vpack.c.b16 %v253, %v250
    %v284 = vpack.c.b16 %v257, %v254
    %v285 = vpack.c.b16 %v258, %v255
    %v286 = vpack.c.b16 %v259, %v256
    %v287 = vpack.c.b16 %v263, %v260
    %v288 = vpack.c.b16 %v264, %v261
    %v289 = vpack.c.b16 %v265, %v262
    %314 = vmatprep.subr.bf16.mxu0 %v267
    %315 = vmatpush1.bf16.msra.mxu0 %v266
    %316 = vmatprep.subr.bf16.mxu0 %v270
    %317 = vmatpush1.bf16.msra.mxu0 %v269
    %318 = vmatprep.subr.bf16.mxu0 %v273
    %319 = vmatpush1.bf16.msra.mxu0 %v272
    %320 = vmatprep.subr.bf16.mxu0 %v276
    %321 = vmatpush1.bf16.msra.mxu0 %v275
    %322 = vmatprep.subr.bf16.mxu0 %v279
    %323 = vmatpush1.bf16.msra.mxu0 %v278
    %324 = vmatprep.subr.bf16.mxu0 %v282
    %325 = vmatpush1.bf16.msra.mxu0 %v281
    %326 = vmatprep.subr.bf16.mxu0 %v285
    %327 = vmatpush1.bf16.msra.mxu0 %v284
    %328 = vmatprep.subr.bf16.mxu0 %v288
    %329 = vmatpush1.bf16.msra.mxu0 %v287
    %330 = vmatprep.subr.bf16.mxu0 0
    %331 = vmatpush1.bf16.msra.mxu0 0
    %332 = vmatprep.subr.bf16.mxu0 0
    %333 = vmatpush1.bf16.msra.mxu0 0
    %334 = vmatprep.subr.bf16.mxu0 0
    %335 = vmatpush1.bf16.msra.mxu0 0
    %336 = vmatprep.subr.bf16.mxu0 0
    %337 = vmatpush1.bf16.msra.mxu0 0
    %338 = vmatprep.subr.bf16.mxu0 0
    %339 = vmatpush1.bf16.msra.mxu0 0
    %340 = vmatprep.subr.bf16.mxu0 0
    %341 = vmatpush1.bf16.msra.mxu0 0
    %342 = vmatprep.subr.bf16.mxu0 0
    %343 = vmatpush1.bf16.msra.mxu0 0
    %344 = vmatprep.subr.bf16.mxu0 0
    %345 = vmatpush1.bf16.msra.mxu0 0
    %346 = vmatprep.mubr.bf16.mxu0 0
    %347 = vmatmul.mubr.bf16.gmra.mrb[0].mxu0 %v178
    %v348 = vpop.f32.mrb[0].mxu0
    %v349 = vadd.f32 %v150, %v348
    %v350 = vpop.f32.mrb[0].mxu0
    %v351 = vadd.f32 %v154, %v350
    %v352 = vpop.f32.mrb[0].mxu0
    %v353 = vadd.f32 %v150, %v352
    %v354 = vpop.f32.mrb[0].mxu0
    %v355 = vadd.f32 %v154, %v354
    %356 = vmatprep.mubr.bf16.mxu0 0
    %357 = vmatmul.mubr.bf16.gmra.mrb[0].mxu0 %v179
    %v358 = vpop.f32.mrb[0].mxu0
    %v359 = vadd.f32 %v150, %v358
    %v360 = vpop.f32.mrb[0].mxu0
    %v361 = vadd.f32 %v154, %v360
    %v362 = vpop.f32.mrb[0].mxu0
    %v363 = vadd.f32 %v150, %v362
    %v364 = vpop.f32.mrb[0].mxu0
    %v365 = vadd.f32 %v154, %v364
    %366 = vmatprep.mubr.bf16.mxu0 0
    %367 = vmatmul.mubr.bf16.gmra.mrb[0].mxu0 %v180
    %v368 = vpop.f32.mrb[0].mxu0
    %v369 = vadd.f32 %v150, %v368
    %v370 = vpop.f32.mrb[0].mxu0
    %v371 = vadd.f32 %v154, %v370
    %v372 = vpop.f32.mrb[0].mxu0
    %v373 = vadd.f32 %v150, %v372
    %v374 = vpop.f32.mrb[0].mxu0
    %v375 = vadd.f32 %v154, %v374
    %376 = vmatprep.mubr.bf16.mxu0 0
    %377 = vmatmul.mubr.bf16.gmra.mrb[0].mxu0 %v181
    %v378 = vpop.f32.mrb[0].mxu0
    %v379 = vadd.f32 %v150, %v378
    %v380 = vpop.f32.mrb[0].mxu0
    %v381 = vadd.f32 %v154, %v380
    %v382 = vpop.f32.mrb[0].mxu0
    %v383 = vadd.f32 %v150, %v382
    %v384 = vpop.f32.mrb[0].mxu0
    %v385 = vadd.f32 %v154, %v384
    %386 = vdwg.mxu0
    %387 = vmatprep.subr.bf16.mxu0 0
    %388 = vmatpush1.bf16.msra.mxu0 %v268
    %389 = vmatprep.subr.bf16.mxu0 0
    %390 = vmatpush1.bf16.msra.mxu0 %v271
    %391 = vmatprep.subr.bf16.mxu0 0
    %392 = vmatpush1.bf16.msra.mxu0 %v274
    %393 = vmatprep.subr.bf16.mxu0 0
    %394 = vmatpush1.bf16.msra.mxu0 %v277
    %395 = vmatprep.subr.bf16.mxu0 0
    %396 = vmatpush1.bf16.msra.mxu0 %v280
    %397 = vmatprep.subr.bf16.mxu0 0
    %398 = vmatpush1.bf16.msra.mxu0 %v283
    %399 = vmatprep.subr.bf16.mxu0 0
    %400 = vmatpush1.bf16.msra.mxu0 %v286
    %401 = vmatprep.subr.bf16.mxu0 0
    %402 = vmatpush1.bf16.msra.mxu0 %v289
    %403 = vmatprep.subr.bf16.mxu0 0
    %404 = vmatpush1.bf16.msra.mxu0 0
    %405 = vmatprep.subr.bf16.mxu0 0
    %406 = vmatpush1.bf16.msra.mxu0 0
    %407 = vmatprep.subr.bf16.mxu0 0
    %408 = vmatpush1.bf16.msra.mxu0 0
    %409 = vmatprep.subr.bf16.mxu0 0
    %410 = vmatpush1.bf16.msra.mxu0 0
    %411 = vmatprep.subr.bf16.mxu0 0
    %412 = vmatpush1.bf16.msra.mxu0 0
    %413 = vmatprep.subr.bf16.mxu0 0
    %414 = vmatpush1.bf16.msra.mxu0 0
    %415 = vmatprep.subr.bf16.mxu0 0
    %416 = vmatpush1.bf16.msra.mxu0 0
    %417 = vmatprep.subr.bf16.mxu0 0
    %418 = vmatpush1.bf16.msra.mxu0 0
    %419 = vmatprep.mubr.bf16.mxu0 0
    %420 = vmatmul.mubr.bf16.gmra.mrb[0].mxu0 %v178
    %v421 = vpop.f32.mrb[0].mxu0
    %v422 = vadd.f32 %v158, %v421
    %v423 = vpop.f32.mrb[0].mxu0
    %v424 = vpop.f32.mrb[0].mxu0
    %v425 = vadd.f32 %v158, %v424
    %v426 = vpop.f32.mrb[0].mxu0
    %427 = vmatprep.mubr.bf16.mxu0 0
    %428 = vmatmul.mubr.bf16.gmra.mrb[0].mxu0 %v179
    %v429 = vpop.f32.mrb[0].mxu0
    %v430 = vadd.f32 %v158, %v429
    %v431 = vpop.f32.mrb[0].mxu0
    %v432 = vpop.f32.mrb[0].mxu0
    %v433 = vadd.f32 %v158, %v432
    %v434 = vpop.f32.mrb[0].mxu0
    %435 = vmatprep.mubr.bf16.mxu0 0
    %436 = vmatmul.mubr.bf16.gmra.mrb[0].mxu0 %v180
    %v437 = vpop.f32.mrb[0].mxu0
    %v438 = vadd.f32 %v158, %v437
    %v439 = vpop.f32.mrb[0].mxu0
    %v440 = vpop.f32.mrb[0].mxu0
    %v441 = vadd.f32 %v158, %v440
    %v442 = vpop.f32.mrb[0].mxu0
    %443 = vmatprep.mubr.bf16.mxu0 0
    %444 = vmatmul.mubr.bf16.gmra.mrb[0].mxu0 %v181
    %v445 = vpop.f32.mrb[0].mxu0
    %v446 = vadd.f32 %v158, %v445
    %v447 = vpop.f32.mrb[0].mxu0
    %v448 = vpop.f32.mrb[0].mxu0
    %v449 = vadd.f32 %v158, %v448
    %v450 = vpop.f32.mrb[0].mxu0
    %451 = vdwg.mxu0
    %452 = vst [vmem:[#allocation2] sm:$0xff] %v349
    %453 = vst [vmem:[#allocation2 + $0x8] sm:$0xff] %v351
    %454 = vst [vmem:[#allocation2 + $0x10] sm:$0xff] %v422
    %455 = vst [vmem:[#allocation2 + $0x18] sm:$0xff] %v353
    %456 = vst [vmem:[#allocation2 + $0x20] sm:$0xff] %v355
    %457 = vst [vmem:[#allocation2 + $0x28] sm:$0xff] %v425
    %458 = vst [vmem:[#allocation2 + $0x30] sm:$0xff] %v359
    %459 = vst [vmem:[#allocation2 + $0x38] sm:$0xff] %v361
    %460 = vst [vmem:[#allocation2 + $0x40] sm:$0xff] %v430
    %461 = vst [vmem:[#allocation2 + $0x48] sm:$0xff] %v363
    %462 = vst [vmem:[#allocation2 + $0x50] sm:$0xff] %v365
    %463 = vst [vmem:[#allocation2 + $0x58] sm:$0xff] %v433
    %464 = vst [vmem:[#allocation2 + $0x60] sm:$0xff] %v369
    %465 = vst [vmem:[#allocation2 + $0x68] sm:$0xff] %v371
    %466 = vst [vmem:[#allocation2 + $0x70] sm:$0xff] %v438
    %467 = vst [vmem:[#allocation2 + $0x78] sm:$0xff] %v373
    %468 = vst [vmem:[#allocation2 + $0x80] sm:$0xff] %v375
    %469 = vst [vmem:[#allocation2 + $0x88] sm:$0xff] %v441
    %470 = vst [vmem:[#allocation2 + $0x90] sm:$0xff] %v379
    %471 = vst [vmem:[#allocation2 + $0x98] sm:$0xff] %v381
    %472 = vst [vmem:[#allocation2 + $0xa0] sm:$0xff] %v446
    %473 = vst [vmem:[#allocation2 + $0xa8] sm:$0xff] %v383
    %474 = vst [vmem:[#allocation2 + $0xb0] sm:$0xff] %v385
    %475 = vst [vmem:[#allocation2 + $0xb8] sm:$0xff] %v449
    %476 = vst [vmem:[#allocation4] sm:$0xff] 0.0
    %v477 = vld [vmem:[#allocation10] sm:$0xff]
    %v478 = vld [vmem:[#allocation10 + $0x8] sm:$0xf]
    %v479 = vld [vmem:[#allocation10 + $0xc] sm:$0xff]
    %v480 = vld [vmem:[#allocation10 + $0x14] sm:$0xf]
    %v481 = vld [vmem:[#allocation10 + $0x18] sm:$0xff]
    %v482 = vld [vmem:[#allocation10 + $0x20] sm:$0xf]
    %v483 = vld [vmem:[#allocation10 + $0x24] sm:$0xff]
    %v484 = vld [vmem:[#allocation10 + $0x2c] sm:$0xf]
    %v485 = vld [vmem:[#allocation10 + $0x30] sm:$0xff]
    %v486 = vld [vmem:[#allocation10 + $0x38] sm:$0xf]
    %v487 = vld [vmem:[#allocation10 + $0x3c] sm:$0xff]
    %v488 = vld [vmem:[#allocation10 + $0x44] sm:$0xf]
    %v489 = vld [vmem:[#allocation10 + $0x48] sm:$0xff]
    %v490 = vld [vmem:[#allocation10 + $0x50] sm:$0xf]
    %v491 = vld [vmem:[#allocation10 + $0x54] sm:$0xff]
    %v492 = vld [vmem:[#allocation10 + $0x5c] sm:$0xf]
    %v493 = vld [vmem:[#allocation10 + $0x60] sm:$0xff]
    %v494 = vld [vmem:[#allocation10 + $0x68] sm:$0xf]
    %v495 = vld [vmem:[#allocation10 + $0x6c] sm:$0xff]
    %v496 = vld [vmem:[#allocation10 + $0x74] sm:$0xf]
    %v497 = vld [vmem:[#allocation10 + $0x78] sm:$0xff]
    %v498 = vld [vmem:[#allocation10 + $0x80] sm:$0xf]
    %v499 = vld [vmem:[#allocation10 + $0x84] sm:$0xff]
    %v500 = vld [vmem:[#allocation10 + $0x8c] sm:$0xf]
    %v501 = vld [vmem:[#allocation10 + $0x90] sm:$0xff]
    %v502 = vld [vmem:[#allocation10 + $0x98] sm:$0xf]
    %v503 = vld [vmem:[#allocation10 + $0x9c] sm:$0xff]
    %v504 = vld [vmem:[#allocation10 + $0xa4] sm:$0xf]
    %v505 = vld [vmem:[#allocation10 + $0xa8] sm:$0xff]
    %v506 = vld [vmem:[#allocation10 + $0xb0] sm:$0xf]
    %v507 = vld [vmem:[#allocation10 + $0xb4] sm:$0xff]
    %v508 = vld [vmem:[#allocation10 + $0xbc] sm:$0xf]
    %v509 = vld [vmem:[%s4] sm:$0x1]
    %s510 = smul.u32 0, 3
    %s511 = smul.addr %s510, 8
    %s512 = scalar_lea.vmem [#allocation2], %s511
    %v513 = vld [vmem:[%s512] sm:$0xff]
    %v514 = vld [vmem:[%s512 + $0x8] sm:$0xff]
    %v515 = vld [vmem:[%s512 + $0x10] sm:$0xff]
    %v516 = vld [vmem:[#allocation4] sm:$0xff]
    %v517 = vpack.c.bf16 %v516, %v516
    %v550 = vunpack.c.l.b16 %v477
    %v551 = vunpack.c.h.b16 %v477
    %v552 = vunpack.c.l.b16 %v478
    %v553 = vunpack.c.l.b16 %v479
    %v554 = vunpack.c.h.b16 %v479
    %v555 = vunpack.c.l.b16 %v480
    %v556 = vunpack.c.l.b16 %v481
    %v557 = vunpack.c.h.b16 %v481
    %v558 = vunpack.c.l.b16 %v482
    %v559 = vunpack.c.l.b16 %v483
    %v560 = vunpack.c.h.b16 %v483
    %v561 = vunpack.c.l.b16 %v484
    %v562 = vunpack.c.l.b16 %v485
    %v563 = vunpack.c.h.b16 %v485
    %v564 = vunpack.c.l.b16 %v486
    %v565 = vunpack.c.l.b16 %v487
    %v566 = vunpack.c.h.b16 %v487
    %v567 = vunpack.c.l.b16 %v488
    %v568 = vunpack.c.l.b16 %v489
    %v569 = vunpack.c.h.b16 %v489
    %v570 = vunpack.c.l.b16 %v490
    %v571 = vunpack.c.l.b16 %v491
    %v572 = vunpack.c.h.b16 %v491
    %v573 = vunpack.c.l.b16 %v492
    %v574 = vunpack.c.l.b16 %v493
    %v575 = vunpack.c.h.b16 %v493
    %v576 = vunpack.c.l.b16 %v494
    %v577 = vunpack.c.l.b16 %v495
    %v578 = vunpack.c.h.b16 %v495
    %v579 = vunpack.c.l.b16 %v496
    %v580 = vunpack.c.l.b16 %v497
    %v581 = vunpack.c.h.b16 %v497
    %v582 = vunpack.c.l.b16 %v498
    %v583 = vunpack.c.l.b16 %v499
    %v584 = vunpack.c.h.b16 %v499
    %v585 = vunpack.c.l.b16 %v500
    %v586 = vunpack.c.l.b16 %v501
    %v587 = vunpack.c.h.b16 %v501
    %v588 = vunpack.c.l.b16 %v502
    %v589 = vunpack.c.l.b16 %v503
    %v590 = vunpack.c.h.b16 %v503
    %v591 = vunpack.c.l.b16 %v504
    %v592 = vunpack.c.l.b16 %v505
    %v593 = vunpack.c.h.b16 %v505
    %v594 = vunpack.c.l.b16 %v506
    %v595 = vunpack.c.l.b16 %v507
    %v596 = vunpack.c.h.b16 %v507
    %v597 = vunpack.c.l.b16 %v508
    %v598 = vpack.c.b16 %v553, %v550
    %v599 = vpack.c.b16 %v554, %v551
    %v600 = vpack.c.b16 %v555, %v552
    %v601 = vpack.c.b16 %v559, %v556
    %v602 = vpack.c.b16 %v560, %v557
    %v603 = vpack.c.b16 %v561, %v558
    %v604 = vpack.c.b16 %v565, %v562
    %v605 = vpack.c.b16 %v566, %v563
    %v606 = vpack.c.b16 %v567, %v564
    %v607 = vpack.c.b16 %v571, %v568
    %v608 = vpack.c.b16 %v572, %v569
    %v609 = vpack.c.b16 %v573, %v570
    %v610 = vpack.c.b16 %v577, %v574
    %v611 = vpack.c.b16 %v578, %v575
    %v612 = vpack.c.b16 %v579, %v576
    %v613 = vpack.c.b16 %v583, %v580
    %v614 = vpack.c.b16 %v584, %v581
    %v615 = vpack.c.b16 %v585, %v582
    %v616 = vpack.c.b16 %v589, %v586
    %v617 = vpack.c.b16 %v590, %v587
    %v618 = vpack.c.b16 %v591, %v588
    %v619 = vpack.c.b16 %v595, %v592
    %v620 = vpack.c.b16 %v596, %v593
    %v621 = vpack.c.b16 %v597, %v594
    %646 = vmatprep.subr.bf16.mxu0 %v599
    %647 = vmatpush1.bf16.msra.mxu0 %v598
    %648 = vmatprep.subr.bf16.mxu0 %v602
    %649 = vmatpush1.bf16.msra.mxu0 %v601
    %650 = vmatprep.subr.bf16.mxu0 %v605
    %651 = vmatpush1.bf16.msra.mxu0 %v604
    %652 = vmatprep.subr.bf16.mxu0 %v608
    %653 = vmatpush1.bf16.msra.mxu0 %v607
    %654 = vmatprep.subr.bf16.mxu0 %v611
    %655 = vmatpush1.bf16.msra.mxu0 %v610
    %656 = vmatprep.subr.bf16.mxu0 %v614
    %657 = vmatpush1.bf16.msra.mxu0 %v613
    %658 = vmatprep.subr.bf16.mxu0 %v617
    %659 = vmatpush1.bf16.msra.mxu0 %v616
    %660 = vmatprep.subr.bf16.mxu0 %v620
    %661 = vmatpush1.bf16.msra.mxu0 %v619
    %662 = vmatprep.subr.bf16.mxu0 0
    %663 = vmatpush1.bf16.msra.mxu0 0
    %664 = vmatprep.subr.bf16.mxu0 0
    %665 = vmatpush1.bf16.msra.mxu0 0
    %666 = vmatprep.subr.bf16.mxu0 0
    %667 = vmatpush1.bf16.msra.mxu0 0
    %668 = vmatprep.subr.bf16.mxu0 0
    %669 = vmatpush1.bf16.msra.mxu0 0
    %670 = vmatprep.subr.bf16.mxu0 0
    %671 = vmatpush1.bf16.msra.mxu0 0
    %672 = vmatprep.subr.bf16.mxu0 0
    %673 = vmatpush1.bf16.msra.mxu0 0
    %674 = vmatprep.subr.bf16.mxu0 0
    %675 = vmatpush1.bf16.msra.mxu0 0
    %676 = vmatprep.subr.bf16.mxu0 0
    %677 = vmatpush1.bf16.msra.mxu0 0
    %678 = vmatprep.mubr.bf16.mxu0 0
    %679 = vmatmul.mubr.bf16.gmra.mrb[0].mxu0 %v517
    %v680 = vpop.f32.mrb[0].mxu0
    %v681 = vadd.f32 0.0, %v680
    %v682 = vpop.f32.mrb[0].mxu0
    %v683 = vadd.f32 0.0, %v682
    %v684 = vpop.f32.mrb[0].mxu0
    %v685 = vpop.f32.mrb[0].mxu0
    %686 = vdwg.mxu0
    %687 = vmatprep.subr.bf16.mxu0 0
    %688 = vmatpush1.bf16.msra.mxu0 %v600
    %689 = vmatprep.subr.bf16.mxu0 0
    %690 = vmatpush1.bf16.msra.mxu0 %v603
    %691 = vmatprep.subr.bf16.mxu0 0
    %692 = vmatpush1.bf16.msra.mxu0 %v606
    %693 = vmatprep.subr.bf16.mxu0 0
    %694 = vmatpush1.bf16.msra.mxu0 %v609
    %695 = vmatprep.subr.bf16.mxu0 0
    %696 = vmatpush1.bf16.msra.mxu0 %v612
    %697 = vmatprep.subr.bf16.mxu0 0
    %698 = vmatpush1.bf16.msra.mxu0 %v615
    %699 = vmatprep.subr.bf16.mxu0 0
    %700 = vmatpush1.bf16.msra.mxu0 %v618
    %701 = vmatprep.subr.bf16.mxu0 0
    %702 = vmatpush1.bf16.msra.mxu0 %v621
    %703 = vmatprep.subr.bf16.mxu0 0
    %704 = vmatpush1.bf16.msra.mxu0 0
    %705 = vmatprep.subr.bf16.mxu0 0
    %706 = vmatpush1.bf16.msra.mxu0 0
    %707 = vmatprep.subr.bf16.mxu0 0
    %708 = vmatpush1.bf16.msra.mxu0 0
    %709 = vmatprep.subr.bf16.mxu0 0
    %710 = vmatpush1.bf16.msra.mxu0 0
    %711 = vmatprep.subr.bf16.mxu0 0
    %712 = vmatpush1.bf16.msra.mxu0 0
    %713 = vmatprep.subr.bf16.mxu0 0
    %714 = vmatpush1.bf16.msra.mxu0 0
    %715 = vmatprep.subr.bf16.mxu0 0
    %716 = vmatpush1.bf16.msra.mxu0 0
    %717 = vmatprep.subr.bf16.mxu0 0
    %718 = vmatpush1.bf16.msra.mxu0 0
    %719 = vmatprep.mubr.bf16.mxu0 0
    %720 = vmatmul.mubr.bf16.gmra.mrb[0].mxu0 %v517
    %v721 = vpop.f32.mrb[0].mxu0
    %v722 = vadd.f32 0.0, %v721
    %v723 = vpop.f32.mrb[0].mxu0
    %v724 = vpop.f32.mrb[0].mxu0
    %v725 = vpop.f32.mrb[0].mxu0
    %726 = vdwg.mxu0
    %v727 = vadd.f32 %v513, %v681
    %v728 = vxor.u32 %v727, 2147483648
    %v729 = vmul.f32 %v728, 1.442695
    %v730 = vpow.pop %v729
    %v731 = vadd.f32 %v730, 1.0
    %v732 = vrcp.pop %v731
    %v733 = vmul.f32 1.0, %v732
    %v734 = vadd.f32 %v514, %v683
    %v735 = vxor.u32 %v734, 2147483648
    %v736 = vmul.f32 %v735, 1.442695
    %v737 = vpow.pop %v736
    %v738 = vadd.f32 %v737, 1.0
    %v739 = vrcp.pop %v738
    %v740 = vmul.f32 1.0, %v739
    %v742 = vlaneseq
    %v743 = vshrl.u32 %v742, 7
    %v744 = vsub.s32 0, %v743
    %v745 = vrot.slane %v509, %v744
    %v747 = vadd.f32 %v722, %v745
    %v748 = vmul.f32 %v733, %v747
    %v749 = vadd.f32 %v515, %v748
    %v750 = vtanh.pop %v749
    %v751 = vsub.f32 1.0, %v740
    %v752 = vmul.f32 %v751, %v750
    %v753 = vmul.f32 %v740, %v516
    %v754 = vadd.f32 %v752, %v753
    %755 = vst [vmem:[#allocation4] sm:$0xff] %v754
    %756 = vst [vmem:[#allocation3] sm:$0xff] %v754
    %s757 = smul.u32 1, 3
    %s758 = smul.addr %s757, 8
    %s759 = scalar_lea.vmem [#allocation2], %s758
    %v760 = vld [vmem:[%s759] sm:$0xff]
    %v761 = vld [vmem:[%s759 + $0x8] sm:$0xff]
    %v762 = vld [vmem:[%s759 + $0x10] sm:$0xff]
    %v763 = vld [vmem:[#allocation4] sm:$0xff]
    %v764 = vpack.c.bf16 %v763, %v763
    %765 = vmatprep.subr.bf16.mxu0 %v599
    %766 = vmatpush1.bf16.msra.mxu0 %v598
    %767 = vmatprep.subr.bf16.mxu0 %v602
    %768 = vmatpush1.bf16.msra.mxu0 %v601
    %769 = vmatprep.subr.bf16.mxu0 %v605
    %770 = vmatpush1.bf16.msra.mxu0 %v604
    %771 = vmatprep.subr.bf16.mxu0 %v608
    %772 = vmatpush1.bf16.msra.mxu0 %v607
    %773 = vmatprep.subr.bf16.mxu0 %v611
    %774 = vmatpush1.bf16.msra.mxu0 %v610
    %775 = vmatprep.subr.bf16.mxu0 %v614
    %776 = vmatpush1.bf16.msra.mxu0 %v613
    %777 = vmatprep.subr.bf16.mxu0 %v617
    %778 = vmatpush1.bf16.msra.mxu0 %v616
    %779 = vmatprep.subr.bf16.mxu0 %v620
    %780 = vmatpush1.bf16.msra.mxu0 %v619
    %781 = vmatprep.subr.bf16.mxu0 0
    %782 = vmatpush1.bf16.msra.mxu0 0
    %783 = vmatprep.subr.bf16.mxu0 0
    %784 = vmatpush1.bf16.msra.mxu0 0
    %785 = vmatprep.subr.bf16.mxu0 0
    %786 = vmatpush1.bf16.msra.mxu0 0
    %787 = vmatprep.subr.bf16.mxu0 0
    %788 = vmatpush1.bf16.msra.mxu0 0
    %789 = vmatprep.subr.bf16.mxu0 0
    %790 = vmatpush1.bf16.msra.mxu0 0
    %791 = vmatprep.subr.bf16.mxu0 0
    %792 = vmatpush1.bf16.msra.mxu0 0
    %793 = vmatprep.subr.bf16.mxu0 0
    %794 = vmatpush1.bf16.msra.mxu0 0
    %795 = vmatprep.subr.bf16.mxu0 0
    %796 = vmatpush1.bf16.msra.mxu0 0
    %797 = vmatprep.mubr.bf16.mxu0 0
    %798 = vmatmul.mubr.bf16.gmra.mrb[0].mxu0 %v764
    %v799 = vpop.f32.mrb[0].mxu0
    %v800 = vadd.f32 0.0, %v799
    %v801 = vpop.f32.mrb[0].mxu0
    %v802 = vadd.f32 0.0, %v801
    %v803 = vpop.f32.mrb[0].mxu0
    %v804 = vpop.f32.mrb[0].mxu0
    %805 = vdwg.mxu0
    %806 = vmatprep.subr.bf16.mxu0 0
    %807 = vmatpush1.bf16.msra.mxu0 %v600
    %808 = vmatprep.subr.bf16.mxu0 0
    %809 = vmatpush1.bf16.msra.mxu0 %v603
    %810 = vmatprep.subr.bf16.mxu0 0
    %811 = vmatpush1.bf16.msra.mxu0 %v606
    %812 = vmatprep.subr.bf16.mxu0 0
    %813 = vmatpush1.bf16.msra.mxu0 %v609
    %814 = vmatprep.subr.bf16.mxu0 0
    %815 = vmatpush1.bf16.msra.mxu0 %v612
    %816 = vmatprep.subr.bf16.mxu0 0
    %817 = vmatpush1.bf16.msra.mxu0 %v615
    %818 = vmatprep.subr.bf16.mxu0 0
    %819 = vmatpush1.bf16.msra.mxu0 %v618
    %820 = vmatprep.subr.bf16.mxu0 0
    %821 = vmatpush1.bf16.msra.mxu0 %v621
    %822 = vmatprep.subr.bf16.mxu0 0
    %823 = vmatpush1.bf16.msra.mxu0 0
    %824 = vmatprep.subr.bf16.mxu0 0
    %825 = vmatpush1.bf16.msra.mxu0 0
    %826 = vmatprep.subr.bf16.mxu0 0
    %827 = vmatpush1.bf16.msra.mxu0 0
    %828 = vmatprep.subr.bf16.mxu0 0
    %829 = vmatpush1.bf16.msra.mxu0 0
    %830 = vmatprep.subr.bf16.mxu0 0
    %831 = vmatpush1.bf16.msra.mxu0 0
    %832 = vmatprep.subr.bf16.mxu0 0
    %833 = vmatpush1.bf16.msra.mxu0 0
    %834 = vmatprep.subr.bf16.mxu0 0
    %835 = vmatpush1.bf16.msra.mxu0 0
    %836 = vmatprep.subr.bf16.mxu0 0
    %837 = vmatpush1.bf16.msra.mxu0 0
    %838 = vmatprep.mubr.bf16.mxu0 0
    %839 = vmatmul.mubr.bf16.gmra.mrb[0].mxu0 %v764
    %v840 = vpop.f32.mrb[0].mxu0
    %v841 = vadd.f32 0.0, %v840
    %v842 = vpop.f32.mrb[0].mxu0
    %v843 = vpop.f32.mrb[0].mxu0
    %v844 = vpop.f32.mrb[0].mxu0
    %845 = vdwg.mxu0
    %v846 = vadd.f32 %v760, %v800
    %v847 = vxor.u32 %v846, 2147483648
    %v848 = vmul.f32 %v847, 1.442695
    %v849 = vpow.pop %v848
    %v850 = vadd.f32 %v849, 1.0
    %v851 = vrcp.pop %v850
    %v852 = vmul.f32 1.0, %v851
    %v853 = vadd.f32 %v761, %v802
    %v854 = vxor.u32 %v853, 2147483648
    %v855 = vmul.f32 %v854, 1.442695
    %v856 = vpow.pop %v855
    %v857 = vadd.f32 %v856, 1.0
    %v858 = vrcp.pop %v857
    %v859 = vmul.f32 1.0, %v858
    %v860 = vadd.f32 %v841, %v745
    %v861 = vmul.f32 %v852, %v860
    %v862 = vadd.f32 %v762, %v861
    %v863 = vtanh.pop %v862
    %v864 = vsub.f32 1.0, %v859
    %v865 = vmul.f32 %v864, %v863
    %v866 = vmul.f32 %v859, %v763
    %v867 = vadd.f32 %v865, %v866
    %868 = vst [vmem:[#allocation4] sm:$0xff] %v867
    %s869 = scalar_lea.vmem [#allocation3], 8
    %870 = vst [vmem:[%s869] sm:$0xff] %v867
    %s871 = smul.u32 2, 3
    %s872 = smul.addr %s871, 8
    %s873 = scalar_lea.vmem [#allocation2], %s872
    %v874 = vld [vmem:[%s873] sm:$0xff]
    %v875 = vld [vmem:[%s873 + $0x8] sm:$0xff]
    %v876 = vld [vmem:[%s873 + $0x10] sm:$0xff]
    %v877 = vld [vmem:[#allocation4] sm:$0xff]
    %v878 = vpack.c.bf16 %v877, %v877
    %879 = vmatprep.subr.bf16.mxu0 %v599
    %880 = vmatpush1.bf16.msra.mxu0 %v598
    %881 = vmatprep.subr.bf16.mxu0 %v602
    %882 = vmatpush1.bf16.msra.mxu0 %v601
    %883 = vmatprep.subr.bf16.mxu0 %v605
    %884 = vmatpush1.bf16.msra.mxu0 %v604
    %885 = vmatprep.subr.bf16.mxu0 %v608
    %886 = vmatpush1.bf16.msra.mxu0 %v607
    %887 = vmatprep.subr.bf16.mxu0 %v611
    %888 = vmatpush1.bf16.msra.mxu0 %v610
    %889 = vmatprep.subr.bf16.mxu0 %v614
    %890 = vmatpush1.bf16.msra.mxu0 %v613
    %891 = vmatprep.subr.bf16.mxu0 %v617
    %892 = vmatpush1.bf16.msra.mxu0 %v616
    %893 = vmatprep.subr.bf16.mxu0 %v620
    %894 = vmatpush1.bf16.msra.mxu0 %v619
    %895 = vmatprep.subr.bf16.mxu0 0
    %896 = vmatpush1.bf16.msra.mxu0 0
    %897 = vmatprep.subr.bf16.mxu0 0
    %898 = vmatpush1.bf16.msra.mxu0 0
    %899 = vmatprep.subr.bf16.mxu0 0
    %900 = vmatpush1.bf16.msra.mxu0 0
    %901 = vmatprep.subr.bf16.mxu0 0
    %902 = vmatpush1.bf16.msra.mxu0 0
    %903 = vmatprep.subr.bf16.mxu0 0
    %904 = vmatpush1.bf16.msra.mxu0 0
    %905 = vmatprep.subr.bf16.mxu0 0
    %906 = vmatpush1.bf16.msra.mxu0 0
    %907 = vmatprep.subr.bf16.mxu0 0
    %908 = vmatpush1.bf16.msra.mxu0 0
    %909 = vmatprep.subr.bf16.mxu0 0
    %910 = vmatpush1.bf16.msra.mxu0 0
    %911 = vmatprep.mubr.bf16.mxu0 0
    %912 = vmatmul.mubr.bf16.gmra.mrb[0].mxu0 %v878
    %v913 = vpop.f32.mrb[0].mxu0
    %v914 = vadd.f32 0.0, %v913
    %v915 = vpop.f32.mrb[0].mxu0
    %v916 = vadd.f32 0.0, %v915
    %v917 = vpop.f32.mrb[0].mxu0
    %v918 = vpop.f32.mrb[0].mxu0
    %919 = vdwg.mxu0
    %920 = vmatprep.subr.bf16.mxu0 0
    %921 = vmatpush1.bf16.msra.mxu0 %v600
    %922 = vmatprep.subr.bf16.mxu0 0
    %923 = vmatpush1.bf16.msra.mxu0 %v603
    %924 = vmatprep.subr.bf16.mxu0 0
    %925 = vmatpush1.bf16.msra.mxu0 %v606
    %926 = vmatprep.subr.bf16.mxu0 0
    %927 = vmatpush1.bf16.msra.mxu0 %v609
    %928 = vmatprep.subr.bf16.mxu0 0
    %929 = vmatpush1.bf16.msra.mxu0 %v612
    %930 = vmatprep.subr.bf16.mxu0 0
    %931 = vmatpush1.bf16.msra.mxu0 %v615
    %932 = vmatprep.subr.bf16.mxu0 0
    %933 = vmatpush1.bf16.msra.mxu0 %v618
    %934 = vmatprep.subr.bf16.mxu0 0
    %935 = vmatpush1.bf16.msra.mxu0 %v621
    %936 = vmatprep.subr.bf16.mxu0 0
    %937 = vmatpush1.bf16.msra.mxu0 0
    %938 = vmatprep.subr.bf16.mxu0 0
    %939 = vmatpush1.bf16.msra.mxu0 0
    %940 = vmatprep.subr.bf16.mxu0 0
    %941 = vmatpush1.bf16.msra.mxu0 0
    %942 = vmatprep.subr.bf16.mxu0 0
    %943 = vmatpush1.bf16.msra.mxu0 0
    %944 = vmatprep.subr.bf16.mxu0 0
    %945 = vmatpush1.bf16.msra.mxu0 0
    %946 = vmatprep.subr.bf16.mxu0 0
    %947 = vmatpush1.bf16.msra.mxu0 0
    %948 = vmatprep.subr.bf16.mxu0 0
    %949 = vmatpush1.bf16.msra.mxu0 0
    %950 = vmatprep.subr.bf16.mxu0 0
    %951 = vmatpush1.bf16.msra.mxu0 0
    %952 = vmatprep.mubr.bf16.mxu0 0
    %953 = vmatmul.mubr.bf16.gmra.mrb[0].mxu0 %v878
    %v954 = vpop.f32.mrb[0].mxu0
    %v955 = vadd.f32 0.0, %v954
    %v956 = vpop.f32.mrb[0].mxu0
    %v957 = vpop.f32.mrb[0].mxu0
    %v958 = vpop.f32.mrb[0].mxu0
    %959 = vdwg.mxu0
    %v960 = vadd.f32 %v874, %v914
    %v961 = vxor.u32 %v960, 2147483648
    %v962 = vmul.f32 %v961, 1.442695
    %v963 = vpow.pop %v962
    %v964 = vadd.f32 %v963, 1.0
    %v965 = vrcp.pop %v964
    %v966 = vmul.f32 1.0, %v965
    %v967 = vadd.f32 %v875, %v916
    %v968 = vxor.u32 %v967, 2147483648
    %v969 = vmul.f32 %v968, 1.442695
    %v970 = vpow.pop %v969
    %v971 = vadd.f32 %v970, 1.0
    %v972 = vrcp.pop %v971
    %v973 = vmul.f32 1.0, %v972
    %v974 = vadd.f32 %v955, %v745
    %v975 = vmul.f32 %v966, %v974
    %v976 = vadd.f32 %v876, %v975
    %v977 = vtanh.pop %v976
    %v978 = vsub.f32 1.0, %v973
    %v979 = vmul.f32 %v978, %v977
    %v980 = vmul.f32 %v973, %v877
    %v981 = vadd.f32 %v979, %v980
    %982 = vst [vmem:[#allocation4] sm:$0xff] %v981
    %s983 = scalar_lea.vmem [#allocation3], 16
    %984 = vst [vmem:[%s983] sm:$0xff] %v981
    %s985 = smul.u32 3, 3
    %s986 = smul.addr %s985, 8
    %s987 = scalar_lea.vmem [#allocation2], %s986
    %v988 = vld [vmem:[%s987] sm:$0xff]
    %v989 = vld [vmem:[%s987 + $0x8] sm:$0xff]
    %v990 = vld [vmem:[%s987 + $0x10] sm:$0xff]
    %v991 = vld [vmem:[#allocation4] sm:$0xff]
    %v992 = vpack.c.bf16 %v991, %v991
    %993 = vmatprep.subr.bf16.mxu0 %v599
    %994 = vmatpush1.bf16.msra.mxu0 %v598
    %995 = vmatprep.subr.bf16.mxu0 %v602
    %996 = vmatpush1.bf16.msra.mxu0 %v601
    %997 = vmatprep.subr.bf16.mxu0 %v605
    %998 = vmatpush1.bf16.msra.mxu0 %v604
    %999 = vmatprep.subr.bf16.mxu0 %v608
    %1000 = vmatpush1.bf16.msra.mxu0 %v607
    %1001 = vmatprep.subr.bf16.mxu0 %v611
    %1002 = vmatpush1.bf16.msra.mxu0 %v610
    %1003 = vmatprep.subr.bf16.mxu0 %v614
    %1004 = vmatpush1.bf16.msra.mxu0 %v613
    %1005 = vmatprep.subr.bf16.mxu0 %v617
    %1006 = vmatpush1.bf16.msra.mxu0 %v616
    %1007 = vmatprep.subr.bf16.mxu0 %v620
    %1008 = vmatpush1.bf16.msra.mxu0 %v619
    %1009 = vmatprep.subr.bf16.mxu0 0
    %1010 = vmatpush1.bf16.msra.mxu0 0
    %1011 = vmatprep.subr.bf16.mxu0 0
    %1012 = vmatpush1.bf16.msra.mxu0 0
    %1013 = vmatprep.subr.bf16.mxu0 0
    %1014 = vmatpush1.bf16.msra.mxu0 0
    %1015 = vmatprep.subr.bf16.mxu0 0
    %1016 = vmatpush1.bf16.msra.mxu0 0
    %1017 = vmatprep.subr.bf16.mxu0 0
    %1018 = vmatpush1.bf16.msra.mxu0 0
    %1019 = vmatprep.subr.bf16.mxu0 0
    %1020 = vmatpush1.bf16.msra.mxu0 0
    %1021 = vmatprep.subr.bf16.mxu0 0
    %1022 = vmatpush1.bf16.msra.mxu0 0
    %1023 = vmatprep.subr.bf16.mxu0 0
    %1024 = vmatpush1.bf16.msra.mxu0 0
    %1025 = vmatprep.mubr.bf16.mxu0 0
    %1026 = vmatmul.mubr.bf16.gmra.mrb[0].mxu0 %v992
    %v1027 = vpop.f32.mrb[0].mxu0
    %v1028 = vadd.f32 0.0, %v1027
    %v1029 = vpop.f32.mrb[0].mxu0
    %v1030 = vadd.f32 0.0, %v1029
    %v1031 = vpop.f32.mrb[0].mxu0
    %v1032 = vpop.f32.mrb[0].mxu0
    %1033 = vdwg.mxu0
    %1034 = vmatprep.subr.bf16.mxu0 0
    %1035 = vmatpush1.bf16.msra.mxu0 %v600
    %1036 = vmatprep.subr.bf16.mxu0 0
    %1037 = vmatpush1.bf16.msra.mxu0 %v603
    %1038 = vmatprep.subr.bf16.mxu0 0
    %1039 = vmatpush1.bf16.msra.mxu0 %v606
    %1040 = vmatprep.subr.bf16.mxu0 0
    %1041 = vmatpush1.bf16.msra.mxu0 %v609
    %1042 = vmatprep.subr.bf16.mxu0 0
    %1043 = vmatpush1.bf16.msra.mxu0 %v612
    %1044 = vmatprep.subr.bf16.mxu0 0
    %1045 = vmatpush1.bf16.msra.mxu0 %v615
    %1046 = vmatprep.subr.bf16.mxu0 0
    %1047 = vmatpush1.bf16.msra.mxu0 %v618
    %1048 = vmatprep.subr.bf16.mxu0 0
    %1049 = vmatpush1.bf16.msra.mxu0 %v621
    %1050 = vmatprep.subr.bf16.mxu0 0
    %1051 = vmatpush1.bf16.msra.mxu0 0
    %1052 = vmatprep.subr.bf16.mxu0 0
    %1053 = vmatpush1.bf16.msra.mxu0 0
    %1054 = vmatprep.subr.bf16.mxu0 0
    %1055 = vmatpush1.bf16.msra.mxu0 0
    %1056 = vmatprep.subr.bf16.mxu0 0
    %1057 = vmatpush1.bf16.msra.mxu0 0
    %1058 = vmatprep.subr.bf16.mxu0 0
    %1059 = vmatpush1.bf16.msra.mxu0 0
    %1060 = vmatprep.subr.bf16.mxu0 0
    %1061 = vmatpush1.bf16.msra.mxu0 0
    %1062 = vmatprep.subr.bf16.mxu0 0
    %1063 = vmatpush1.bf16.msra.mxu0 0
    %1064 = vmatprep.subr.bf16.mxu0 0
    %1065 = vmatpush1.bf16.msra.mxu0 0
    %1066 = vmatprep.mubr.bf16.mxu0 0
    %1067 = vmatmul.mubr.bf16.gmra.mrb[0].mxu0 %v992
    %v1068 = vpop.f32.mrb[0].mxu0
    %v1069 = vadd.f32 0.0, %v1068
    %v1070 = vpop.f32.mrb[0].mxu0
    %v1071 = vpop.f32.mrb[0].mxu0
    %v1072 = vpop.f32.mrb[0].mxu0
    %1073 = vdwg.mxu0
    %v1074 = vadd.f32 %v988, %v1028
    %v1075 = vxor.u32 %v1074, 2147483648
    %v1076 = vmul.f32 %v1075, 1.442695
    %v1077 = vpow.pop %v1076
    %v1078 = vadd.f32 %v1077, 1.0
    %v1079 = vrcp.pop %v1078
    %v1080 = vmul.f32 1.0, %v1079
    %v1081 = vadd.f32 %v989, %v1030
    %v1082 = vxor.u32 %v1081, 2147483648
    %v1083 = vmul.f32 %v1082, 1.442695
    %v1084 = vpow.pop %v1083
    %v1085 = vadd.f32 %v1084, 1.0
    %v1086 = vrcp.pop %v1085
    %v1087 = vmul.f32 1.0, %v1086
    %v1088 = vadd.f32 %v1069, %v745
    %v1089 = vmul.f32 %v1080, %v1088
    %v1090 = vadd.f32 %v990, %v1089
    %v1091 = vtanh.pop %v1090
    %v1092 = vsub.f32 1.0, %v1087
    %v1093 = vmul.f32 %v1092, %v1091
    %v1094 = vmul.f32 %v1087, %v991
    %v1095 = vadd.f32 %v1093, %v1094
    %1096 = vst [vmem:[#allocation4] sm:$0xff] %v1095
    %s1097 = scalar_lea.vmem [#allocation3], 24
    %1098 = vst [vmem:[%s1097] sm:$0xff] %v1095
    %s1099 = smul.u32 4, 3
    %s1100 = smul.addr %s1099, 8
    %s1101 = scalar_lea.vmem [#allocation2], %s1100
    %v1102 = vld [vmem:[%s1101] sm:$0xff]
    %v1103 = vld [vmem:[%s1101 + $0x8] sm:$0xff]
    %v1104 = vld [vmem:[%s1101 + $0x10] sm:$0xff]
    %v1105 = vld [vmem:[#allocation4] sm:$0xff]
    %v1106 = vpack.c.bf16 %v1105, %v1105
    %1107 = vmatprep.subr.bf16.mxu0 %v599
    %1108 = vmatpush1.bf16.msra.mxu0 %v598
    %1109 = vmatprep.subr.bf16.mxu0 %v602
    %1110 = vmatpush1.bf16.msra.mxu0 %v601
    %1111 = vmatprep.subr.bf16.mxu0 %v605
    %1112 = vmatpush1.bf16.msra.mxu0 %v604
    %1113 = vmatprep.subr.bf16.mxu0 %v608
    %1114 = vmatpush1.bf16.msra.mxu0 %v607
    %1115 = vmatprep.subr.bf16.mxu0 %v611
    %1116 = vmatpush1.bf16.msra.mxu0 %v610
    %1117 = vmatprep.subr.bf16.mxu0 %v614
    %1118 = vmatpush1.bf16.msra.mxu0 %v613
    %1119 = vmatprep.subr.bf16.mxu0 %v617
    %1120 = vmatpush1.bf16.msra.mxu0 %v616
    %1121 = vmatprep.subr.bf16.mxu0 %v620
    %1122 = vmatpush1.bf16.msra.mxu0 %v619
    %1123 = vmatprep.subr.bf16.mxu0 0
    %1124 = vmatpush1.bf16.msra.mxu0 0
    %1125 = vmatprep.subr.bf16.mxu0 0
    %1126 = vmatpush1.bf16.msra.mxu0 0
    %1127 = vmatprep.subr.bf16.mxu0 0
    %1128 = vmatpush1.bf16.msra.mxu0 0
    %1129 = vmatprep.subr.bf16.mxu0 0
    %1130 = vmatpush1.bf16.msra.mxu0 0
    %1131 = vmatprep.subr.bf16.mxu0 0
    %1132 = vmatpush1.bf16.msra.mxu0 0
    %1133 = vmatprep.subr.bf16.mxu0 0
    %1134 = vmatpush1.bf16.msra.mxu0 0
    %1135 = vmatprep.subr.bf16.mxu0 0
    %1136 = vmatpush1.bf16.msra.mxu0 0
    %1137 = vmatprep.subr.bf16.mxu0 0
    %1138 = vmatpush1.bf16.msra.mxu0 0
    %1139 = vmatprep.mubr.bf16.mxu0 0
    %1140 = vmatmul.mubr.bf16.gmra.mrb[0].mxu0 %v1106
    %v1141 = vpop.f32.mrb[0].mxu0
    %v1142 = vadd.f32 0.0, %v1141
    %v1143 = vpop.f32.mrb[0].mxu0
    %v1144 = vadd.f32 0.0, %v1143
    %v1145 = vpop.f32.mrb[0].mxu0
    %v1146 = vpop.f32.mrb[0].mxu0
    %1147 = vdwg.mxu0
    %1148 = vmatprep.subr.bf16.mxu0 0
    %1149 = vmatpush1.bf16.msra.mxu0 %v600
    %1150 = vmatprep.subr.bf16.mxu0 0
    %1151 = vmatpush1.bf16.msra.mxu0 %v603
    %1152 = vmatprep.subr.bf16.mxu0 0
    %1153 = vmatpush1.bf16.msra.mxu0 %v606
    %1154 = vmatprep.subr.bf16.mxu0 0
    %1155 = vmatpush1.bf16.msra.mxu0 %v609
    %1156 = vmatprep.subr.bf16.mxu0 0
    %1157 = vmatpush1.bf16.msra.mxu0 %v612
    %1158 = vmatprep.subr.bf16.mxu0 0
    %1159 = vmatpush1.bf16.msra.mxu0 %v615
    %1160 = vmatprep.subr.bf16.mxu0 0
    %1161 = vmatpush1.bf16.msra.mxu0 %v618
    %1162 = vmatprep.subr.bf16.mxu0 0
    %1163 = vmatpush1.bf16.msra.mxu0 %v621
    %1164 = vmatprep.subr.bf16.mxu0 0
    %1165 = vmatpush1.bf16.msra.mxu0 0
    %1166 = vmatprep.subr.bf16.mxu0 0
    %1167 = vmatpush1.bf16.msra.mxu0 0
    %1168 = vmatprep.subr.bf16.mxu0 0
    %1169 = vmatpush1.bf16.msra.mxu0 0
    %1170 = vmatprep.subr.bf16.mxu0 0
    %1171 = vmatpush1.bf16.msra.mxu0 0
    %1172 = vmatprep.subr.bf16.mxu0 0
    %1173 = vmatpush1.bf16.msra.mxu0 0
    %1174 = vmatprep.subr.bf16.mxu0 0
    %1175 = vmatpush1.bf16.msra.mxu0 0
    %1176 = vmatprep.subr.bf16.mxu0 0
    %1177 = vmatpush1.bf16.msra.mxu0 0
    %1178 = vmatprep.subr.bf16.mxu0 0
    %1179 = vmatpush1.bf16.msra.mxu0 0
    %1180 = vmatprep.mubr.bf16.mxu0 0
    %1181 = vmatmul.mubr.bf16.gmra.mrb[0].mxu0 %v1106
    %v1182 = vpop.f32.mrb[0].mxu0
    %v1183 = vadd.f32 0.0, %v1182
    %v1184 = vpop.f32.mrb[0].mxu0
    %v1185 = vpop.f32.mrb[0].mxu0
    %v1186 = vpop.f32.mrb[0].mxu0
    %1187 = vdwg.mxu0
    %v1188 = vadd.f32 %v1102, %v1142
    %v1189 = vxor.u32 %v1188, 2147483648
    %v1190 = vmul.f32 %v1189, 1.442695
    %v1191 = vpow.pop %v1190
    %v1192 = vadd.f32 %v1191, 1.0
    %v1193 = vrcp.pop %v1192
    %v1194 = vmul.f32 1.0, %v1193
    %v1195 = vadd.f32 %v1103, %v1144
    %v1196 = vxor.u32 %v1195, 2147483648
    %v1197 = vmul.f32 %v1196, 1.442695
    %v1198 = vpow.pop %v1197
    %v1199 = vadd.f32 %v1198, 1.0
    %v1200 = vrcp.pop %v1199
    %v1201 = vmul.f32 1.0, %v1200
    %v1202 = vadd.f32 %v1183, %v745
    %v1203 = vmul.f32 %v1194, %v1202
    %v1204 = vadd.f32 %v1104, %v1203
    %v1205 = vtanh.pop %v1204
    %v1206 = vsub.f32 1.0, %v1201
    %v1207 = vmul.f32 %v1206, %v1205
    %v1208 = vmul.f32 %v1201, %v1105
    %v1209 = vadd.f32 %v1207, %v1208
    %1210 = vst [vmem:[#allocation4] sm:$0xff] %v1209
    %s1211 = scalar_lea.vmem [#allocation3], 32
    %1212 = vst [vmem:[%s1211] sm:$0xff] %v1209
    %s1213 = smul.u32 5, 3
    %s1214 = smul.addr %s1213, 8
    %s1215 = scalar_lea.vmem [#allocation2], %s1214
    %v1216 = vld [vmem:[%s1215] sm:$0xff]
    %v1217 = vld [vmem:[%s1215 + $0x8] sm:$0xff]
    %v1218 = vld [vmem:[%s1215 + $0x10] sm:$0xff]
    %v1219 = vld [vmem:[#allocation4] sm:$0xff]
    %v1220 = vpack.c.bf16 %v1219, %v1219
    %1221 = vmatprep.subr.bf16.mxu0 %v599
    %1222 = vmatpush1.bf16.msra.mxu0 %v598
    %1223 = vmatprep.subr.bf16.mxu0 %v602
    %1224 = vmatpush1.bf16.msra.mxu0 %v601
    %1225 = vmatprep.subr.bf16.mxu0 %v605
    %1226 = vmatpush1.bf16.msra.mxu0 %v604
    %1227 = vmatprep.subr.bf16.mxu0 %v608
    %1228 = vmatpush1.bf16.msra.mxu0 %v607
    %1229 = vmatprep.subr.bf16.mxu0 %v611
    %1230 = vmatpush1.bf16.msra.mxu0 %v610
    %1231 = vmatprep.subr.bf16.mxu0 %v614
    %1232 = vmatpush1.bf16.msra.mxu0 %v613
    %1233 = vmatprep.subr.bf16.mxu0 %v617
    %1234 = vmatpush1.bf16.msra.mxu0 %v616
    %1235 = vmatprep.subr.bf16.mxu0 %v620
    %1236 = vmatpush1.bf16.msra.mxu0 %v619
    %1237 = vmatprep.subr.bf16.mxu0 0
    %1238 = vmatpush1.bf16.msra.mxu0 0
    %1239 = vmatprep.subr.bf16.mxu0 0
    %1240 = vmatpush1.bf16.msra.mxu0 0
    %1241 = vmatprep.subr.bf16.mxu0 0
    %1242 = vmatpush1.bf16.msra.mxu0 0
    %1243 = vmatprep.subr.bf16.mxu0 0
    %1244 = vmatpush1.bf16.msra.mxu0 0
    %1245 = vmatprep.subr.bf16.mxu0 0
    %1246 = vmatpush1.bf16.msra.mxu0 0
    %1247 = vmatprep.subr.bf16.mxu0 0
    %1248 = vmatpush1.bf16.msra.mxu0 0
    %1249 = vmatprep.subr.bf16.mxu0 0
    %1250 = vmatpush1.bf16.msra.mxu0 0
    %1251 = vmatprep.subr.bf16.mxu0 0
    %1252 = vmatpush1.bf16.msra.mxu0 0
    %1253 = vmatprep.mubr.bf16.mxu0 0
    %1254 = vmatmul.mubr.bf16.gmra.mrb[0].mxu0 %v1220
    %v1255 = vpop.f32.mrb[0].mxu0
    %v1256 = vadd.f32 0.0, %v1255
    %v1257 = vpop.f32.mrb[0].mxu0
    %v1258 = vadd.f32 0.0, %v1257
    %v1259 = vpop.f32.mrb[0].mxu0
    %v1260 = vpop.f32.mrb[0].mxu0
    %1261 = vdwg.mxu0
    %1262 = vmatprep.subr.bf16.mxu0 0
    %1263 = vmatpush1.bf16.msra.mxu0 %v600
    %1264 = vmatprep.subr.bf16.mxu0 0
    %1265 = vmatpush1.bf16.msra.mxu0 %v603
    %1266 = vmatprep.subr.bf16.mxu0 0
    %1267 = vmatpush1.bf16.msra.mxu0 %v606
    %1268 = vmatprep.subr.bf16.mxu0 0
    %1269 = vmatpush1.bf16.msra.mxu0 %v609
    %1270 = vmatprep.subr.bf16.mxu0 0
    %1271 = vmatpush1.bf16.msra.mxu0 %v612
    %1272 = vmatprep.subr.bf16.mxu0 0
    %1273 = vmatpush1.bf16.msra.mxu0 %v615
    %1274 = vmatprep.subr.bf16.mxu0 0
    %1275 = vmatpush1.bf16.msra.mxu0 %v618
    %1276 = vmatprep.subr.bf16.mxu0 0
    %1277 = vmatpush1.bf16.msra.mxu0 %v621
    %1278 = vmatprep.subr.bf16.mxu0 0
    %1279 = vmatpush1.bf16.msra.mxu0 0
    %1280 = vmatprep.subr.bf16.mxu0 0
    %1281 = vmatpush1.bf16.msra.mxu0 0
    %1282 = vmatprep.subr.bf16.mxu0 0
    %1283 = vmatpush1.bf16.msra.mxu0 0
    %1284 = vmatprep.subr.bf16.mxu0 0
    %1285 = vmatpush1.bf16.msra.mxu0 0
    %1286 = vmatprep.subr.bf16.mxu0 0
    %1287 = vmatpush1.bf16.msra.mxu0 0
    %1288 = vmatprep.subr.bf16.mxu0 0
    %1289 = vmatpush1.bf16.msra.mxu0 0
    %1290 = vmatprep.subr.bf16.mxu0 0
    %1291 = vmatpush1.bf16.msra.mxu0 0
    %1292 = vmatprep.subr.bf16.mxu0 0
    %1293 = vmatpush1.bf16.msra.mxu0 0
    %1294 = vmatprep.mubr.bf16.mxu0 0
    %1295 = vmatmul.mubr.bf16.gmra.mrb[0].mxu0 %v1220
    %v1296 = vpop.f32.mrb[0].mxu0
    %v1297 = vadd.f32 0.0, %v1296
    %v1298 = vpop.f32.mrb[0].mxu0
    %v1299 = vpop.f32.mrb[0].mxu0
    %v1300 = vpop.f32.mrb[0].mxu0
    %1301 = vdwg.mxu0
    %v1302 = vadd.f32 %v1216, %v1256
    %v1303 = vxor.u32 %v1302, 2147483648
    %v1304 = vmul.f32 %v1303, 1.442695
    %v1305 = vpow.pop %v1304
    %v1306 = vadd.f32 %v1305, 1.0
    %v1307 = vrcp.pop %v1306
    %v1308 = vmul.f32 1.0, %v1307
    %v1309 = vadd.f32 %v1217, %v1258
    %v1310 = vxor.u32 %v1309, 2147483648
    %v1311 = vmul.f32 %v1310, 1.442695
    %v1312 = vpow.pop %v1311
    %v1313 = vadd.f32 %v1312, 1.0
    %v1314 = vrcp.pop %v1313
    %v1315 = vmul.f32 1.0, %v1314
    %v1316 = vadd.f32 %v1297, %v745
    %v1317 = vmul.f32 %v1308, %v1316
    %v1318 = vadd.f32 %v1218, %v1317
    %v1319 = vtanh.pop %v1318
    %v1320 = vsub.f32 1.0, %v1315
    %v1321 = vmul.f32 %v1320, %v1319
    %v1322 = vmul.f32 %v1315, %v1219
    %v1323 = vadd.f32 %v1321, %v1322
    %1324 = vst [vmem:[#allocation4] sm:$0xff] %v1323
    %s1325 = scalar_lea.vmem [#allocation3], 40
    %1326 = vst [vmem:[%s1325] sm:$0xff] %v1323
    %s1327 = smul.u32 6, 3
    %s1328 = smul.addr %s1327, 8
    %s1329 = scalar_lea.vmem [#allocation2], %s1328
    %v1330 = vld [vmem:[%s1329] sm:$0xff]
    %v1331 = vld [vmem:[%s1329 + $0x8] sm:$0xff]
    %v1332 = vld [vmem:[%s1329 + $0x10] sm:$0xff]
    %v1333 = vld [vmem:[#allocation4] sm:$0xff]
    %v1334 = vpack.c.bf16 %v1333, %v1333
    %1335 = vmatprep.subr.bf16.mxu0 %v599
    %1336 = vmatpush1.bf16.msra.mxu0 %v598
    %1337 = vmatprep.subr.bf16.mxu0 %v602
    %1338 = vmatpush1.bf16.msra.mxu0 %v601
    %1339 = vmatprep.subr.bf16.mxu0 %v605
    %1340 = vmatpush1.bf16.msra.mxu0 %v604
    %1341 = vmatprep.subr.bf16.mxu0 %v608
    %1342 = vmatpush1.bf16.msra.mxu0 %v607
    %1343 = vmatprep.subr.bf16.mxu0 %v611
    %1344 = vmatpush1.bf16.msra.mxu0 %v610
    %1345 = vmatprep.subr.bf16.mxu0 %v614
    %1346 = vmatpush1.bf16.msra.mxu0 %v613
    %1347 = vmatprep.subr.bf16.mxu0 %v617
    %1348 = vmatpush1.bf16.msra.mxu0 %v616
    %1349 = vmatprep.subr.bf16.mxu0 %v620
    %1350 = vmatpush1.bf16.msra.mxu0 %v619
    %1351 = vmatprep.subr.bf16.mxu0 0
    %1352 = vmatpush1.bf16.msra.mxu0 0
    %1353 = vmatprep.subr.bf16.mxu0 0
    %1354 = vmatpush1.bf16.msra.mxu0 0
    %1355 = vmatprep.subr.bf16.mxu0 0
    %1356 = vmatpush1.bf16.msra.mxu0 0
    %1357 = vmatprep.subr.bf16.mxu0 0
    %1358 = vmatpush1.bf16.msra.mxu0 0
    %1359 = vmatprep.subr.bf16.mxu0 0
    %1360 = vmatpush1.bf16.msra.mxu0 0
    %1361 = vmatprep.subr.bf16.mxu0 0
    %1362 = vmatpush1.bf16.msra.mxu0 0
    %1363 = vmatprep.subr.bf16.mxu0 0
    %1364 = vmatpush1.bf16.msra.mxu0 0
    %1365 = vmatprep.subr.bf16.mxu0 0
    %1366 = vmatpush1.bf16.msra.mxu0 0
    %1367 = vmatprep.mubr.bf16.mxu0 0
    %1368 = vmatmul.mubr.bf16.gmra.mrb[0].mxu0 %v1334
    %v1369 = vpop.f32.mrb[0].mxu0
    %v1370 = vadd.f32 0.0, %v1369
    %v1371 = vpop.f32.mrb[0].mxu0
    %v1372 = vadd.f32 0.0, %v1371
    %v1373 = vpop.f32.mrb[0].mxu0
    %v1374 = vpop.f32.mrb[0].mxu0
    %1375 = vdwg.mxu0
    %1376 = vmatprep.subr.bf16.mxu0 0
    %1377 = vmatpush1.bf16.msra.mxu0 %v600
    %1378 = vmatprep.subr.bf16.mxu0 0
    %1379 = vmatpush1.bf16.msra.mxu0 %v603
    %1380 = vmatprep.subr.bf16.mxu0 0
    %1381 = vmatpush1.bf16.msra.mxu0 %v606
    %1382 = vmatprep.subr.bf16.mxu0 0
    %1383 = vmatpush1.bf16.msra.mxu0 %v609
    %1384 = vmatprep.subr.bf16.mxu0 0
    %1385 = vmatpush1.bf16.msra.mxu0 %v612
    %1386 = vmatprep.subr.bf16.mxu0 0
    %1387 = vmatpush1.bf16.msra.mxu0 %v615
    %1388 = vmatprep.subr.bf16.mxu0 0
    %1389 = vmatpush1.bf16.msra.mxu0 %v618
    %1390 = vmatprep.subr.bf16.mxu0 0
    %1391 = vmatpush1.bf16.msra.mxu0 %v621
    %1392 = vmatprep.subr.bf16.mxu0 0
    %1393 = vmatpush1.bf16.msra.mxu0 0
    %1394 = vmatprep.subr.bf16.mxu0 0
    %1395 = vmatpush1.bf16.msra.mxu0 0
    %1396 = vmatprep.subr.bf16.mxu0 0
    %1397 = vmatpush1.bf16.msra.mxu0 0
    %1398 = vmatprep.subr.bf16.mxu0 0
    %1399 = vmatpush1.bf16.msra.mxu0 0
    %1400 = vmatprep.subr.bf16.mxu0 0
    %1401 = vmatpush1.bf16.msra.mxu0 0
    %1402 = vmatprep.subr.bf16.mxu0 0
    %1403 = vmatpush1.bf16.msra.mxu0 0
    %1404 = vmatprep.subr.bf16.mxu0 0
    %1405 = vmatpush1.bf16.msra.mxu0 0
    %1406 = vmatprep.subr.bf16.mxu0 0
    %1407 = vmatpush1.bf16.msra.mxu0 0
    %1408 = vmatprep.mubr.bf16.mxu0 0
    %1409 = vmatmul.mubr.bf16.gmra.mrb[0].mxu0 %v1334
    %v1410 = vpop.f32.mrb[0].mxu0
    %v1411 = vadd.f32 0.0, %v1410
    %v1412 = vpop.f32.mrb[0].mxu0
    %v1413 = vpop.f32.mrb[0].mxu0
    %v1414 = vpop.f32.mrb[0].mxu0
    %1415 = vdwg.mxu0
    %v1416 = vadd.f32 %v1330, %v1370
    %v1417 = vxor.u32 %v1416, 2147483648
    %v1418 = vmul.f32 %v1417, 1.442695
    %v1419 = vpow.pop %v1418
    %v1420 = vadd.f32 %v1419, 1.0
    %v1421 = vrcp.pop %v1420
    %v1422 = vmul.f32 1.0, %v1421
    %v1423 = vadd.f32 %v1331, %v1372
    %v1424 = vxor.u32 %v1423, 2147483648
    %v1425 = vmul.f32 %v1424, 1.442695
    %v1426 = vpow.pop %v1425
    %v1427 = vadd.f32 %v1426, 1.0
    %v1428 = vrcp.pop %v1427
    %v1429 = vmul.f32 1.0, %v1428
    %v1430 = vadd.f32 %v1411, %v745
    %v1431 = vmul.f32 %v1422, %v1430
    %v1432 = vadd.f32 %v1332, %v1431
    %v1433 = vtanh.pop %v1432
    %v1434 = vsub.f32 1.0, %v1429
    %v1435 = vmul.f32 %v1434, %v1433
    %v1436 = vmul.f32 %v1429, %v1333
    %v1437 = vadd.f32 %v1435, %v1436
    %1438 = vst [vmem:[#allocation4] sm:$0xff] %v1437
    %s1439 = scalar_lea.vmem [#allocation3], 48
    %1440 = vst [vmem:[%s1439] sm:$0xff] %v1437
    %s1441 = smul.u32 7, 3
    %s1442 = smul.addr %s1441, 8
    %s1443 = scalar_lea.vmem [#allocation2], %s1442
    %v1444 = vld [vmem:[%s1443] sm:$0xff]
    %v1445 = vld [vmem:[%s1443 + $0x8] sm:$0xff]
    %v1446 = vld [vmem:[%s1443 + $0x10] sm:$0xff]
    %v1447 = vld [vmem:[#allocation4] sm:$0xff]
    %v1448 = vpack.c.bf16 %v1447, %v1447
    %1449 = vmatprep.subr.bf16.mxu0 %v599
    %1450 = vmatpush1.bf16.msra.mxu0 %v598
    %1451 = vmatprep.subr.bf16.mxu0 %v602
    %1452 = vmatpush1.bf16.msra.mxu0 %v601
    %1453 = vmatprep.subr.bf16.mxu0 %v605
    %1454 = vmatpush1.bf16.msra.mxu0 %v604
    %1455 = vmatprep.subr.bf16.mxu0 %v608
    %1456 = vmatpush1.bf16.msra.mxu0 %v607
    %1457 = vmatprep.subr.bf16.mxu0 %v611
    %1458 = vmatpush1.bf16.msra.mxu0 %v610
    %1459 = vmatprep.subr.bf16.mxu0 %v614
    %1460 = vmatpush1.bf16.msra.mxu0 %v613
    %1461 = vmatprep.subr.bf16.mxu0 %v617
    %1462 = vmatpush1.bf16.msra.mxu0 %v616
    %1463 = vmatprep.subr.bf16.mxu0 %v620
    %1464 = vmatpush1.bf16.msra.mxu0 %v619
    %1465 = vmatprep.subr.bf16.mxu0 0
    %1466 = vmatpush1.bf16.msra.mxu0 0
    %1467 = vmatprep.subr.bf16.mxu0 0
    %1468 = vmatpush1.bf16.msra.mxu0 0
    %1469 = vmatprep.subr.bf16.mxu0 0
    %1470 = vmatpush1.bf16.msra.mxu0 0
    %1471 = vmatprep.subr.bf16.mxu0 0
    %1472 = vmatpush1.bf16.msra.mxu0 0
    %1473 = vmatprep.subr.bf16.mxu0 0
    %1474 = vmatpush1.bf16.msra.mxu0 0
    %1475 = vmatprep.subr.bf16.mxu0 0
    %1476 = vmatpush1.bf16.msra.mxu0 0
    %1477 = vmatprep.subr.bf16.mxu0 0
    %1478 = vmatpush1.bf16.msra.mxu0 0
    %1479 = vmatprep.subr.bf16.mxu0 0
    %1480 = vmatpush1.bf16.msra.mxu0 0
    %1481 = vmatprep.mubr.bf16.mxu0 0
    %1482 = vmatmul.mubr.bf16.gmra.mrb[0].mxu0 %v1448
    %v1483 = vpop.f32.mrb[0].mxu0
    %v1484 = vadd.f32 0.0, %v1483
    %v1485 = vpop.f32.mrb[0].mxu0
    %v1486 = vadd.f32 0.0, %v1485
    %v1487 = vpop.f32.mrb[0].mxu0
    %v1488 = vpop.f32.mrb[0].mxu0
    %1489 = vdwg.mxu0
    %1490 = vmatprep.subr.bf16.mxu0 0
    %1491 = vmatpush1.bf16.msra.mxu0 %v600
    %1492 = vmatprep.subr.bf16.mxu0 0
    %1493 = vmatpush1.bf16.msra.mxu0 %v603
    %1494 = vmatprep.subr.bf16.mxu0 0
    %1495 = vmatpush1.bf16.msra.mxu0 %v606
    %1496 = vmatprep.subr.bf16.mxu0 0
    %1497 = vmatpush1.bf16.msra.mxu0 %v609
    %1498 = vmatprep.subr.bf16.mxu0 0
    %1499 = vmatpush1.bf16.msra.mxu0 %v612
    %1500 = vmatprep.subr.bf16.mxu0 0
    %1501 = vmatpush1.bf16.msra.mxu0 %v615
    %1502 = vmatprep.subr.bf16.mxu0 0
    %1503 = vmatpush1.bf16.msra.mxu0 %v618
    %1504 = vmatprep.subr.bf16.mxu0 0
    %1505 = vmatpush1.bf16.msra.mxu0 %v621
    %1506 = vmatprep.subr.bf16.mxu0 0
    %1507 = vmatpush1.bf16.msra.mxu0 0
    %1508 = vmatprep.subr.bf16.mxu0 0
    %1509 = vmatpush1.bf16.msra.mxu0 0
    %1510 = vmatprep.subr.bf16.mxu0 0
    %1511 = vmatpush1.bf16.msra.mxu0 0
    %1512 = vmatprep.subr.bf16.mxu0 0
    %1513 = vmatpush1.bf16.msra.mxu0 0
    %1514 = vmatprep.subr.bf16.mxu0 0
    %1515 = vmatpush1.bf16.msra.mxu0 0
    %1516 = vmatprep.subr.bf16.mxu0 0
    %1517 = vmatpush1.bf16.msra.mxu0 0
    %1518 = vmatprep.subr.bf16.mxu0 0
    %1519 = vmatpush1.bf16.msra.mxu0 0
    %1520 = vmatprep.subr.bf16.mxu0 0
    %1521 = vmatpush1.bf16.msra.mxu0 0
    %1522 = vmatprep.mubr.bf16.mxu0 0
    %1523 = vmatmul.mubr.bf16.gmra.mrb[0].mxu0 %v1448
    %v1524 = vpop.f32.mrb[0].mxu0
    %v1525 = vadd.f32 0.0, %v1524
    %v1526 = vpop.f32.mrb[0].mxu0
    %v1527 = vpop.f32.mrb[0].mxu0
    %v1528 = vpop.f32.mrb[0].mxu0
    %1529 = vdwg.mxu0
    %v1530 = vadd.f32 %v1444, %v1484
    %v1531 = vxor.u32 %v1530, 2147483648
    %v1532 = vmul.f32 %v1531, 1.442695
    %v1533 = vpow.pop %v1532
    %v1534 = vadd.f32 %v1533, 1.0
    %v1535 = vrcp.pop %v1534
    %v1536 = vmul.f32 1.0, %v1535
    %v1537 = vadd.f32 %v1445, %v1486
    %v1538 = vxor.u32 %v1537, 2147483648
    %v1539 = vmul.f32 %v1538, 1.442695
    %v1540 = vpow.pop %v1539
    %v1541 = vadd.f32 %v1540, 1.0
    %v1542 = vrcp.pop %v1541
    %v1543 = vmul.f32 1.0, %v1542
    %v1544 = vadd.f32 %v1525, %v745
    %v1545 = vmul.f32 %v1536, %v1544
    %v1546 = vadd.f32 %v1446, %v1545
    %v1547 = vtanh.pop %v1546
    %v1548 = vsub.f32 1.0, %v1543
    %v1549 = vmul.f32 %v1548, %v1547
    %v1550 = vmul.f32 %v1543, %v1447
    %v1551 = vadd.f32 %v1549, %v1550
    %1552 = vst [vmem:[#allocation4] sm:$0xff] %v1551
    %s1553 = scalar_lea.vmem [#allocation3], 56
    %1554 = vst [vmem:[%s1553] sm:$0xff] %v1551
    %v1555 = vld [vmem:[#allocation4] sm:$0xff]
    %1556 = vst [vmem:[#allocation15] sm:$0xff] %v1555
    %v1557 = vld [vmem:[#allocation3] sm:$0xff]
    %v1558 = vld [vmem:[#allocation3 + $0x8] sm:$0xff]
    %v1559 = vld [vmem:[#allocation3 + $0x10] sm:$0xff]
    %v1560 = vld [vmem:[#allocation3 + $0x18] sm:$0xff]
    %v1561 = vld [vmem:[#allocation3 + $0x20] sm:$0xff]
    %v1562 = vld [vmem:[#allocation3 + $0x28] sm:$0xff]
    %v1563 = vld [vmem:[#allocation3 + $0x30] sm:$0xff]
    %v1564 = vld [vmem:[#allocation3 + $0x38] sm:$0xff]
    %v1565 = vpack.c.bf16 %v1558, %v1557
    %v1566 = vpack.c.bf16 %v1560, %v1559
    %v1567 = vpack.c.bf16 %v1562, %v1561
    %v1568 = vpack.c.bf16 %v1564, %v1563
    %v1569 = vld [vmem:[#allocation11] sm:$0xff]
    %v1570 = vld [vmem:[#allocation11 + $0x8] sm:$0xf]
    %v1571 = vld [vmem:[#allocation11 + $0xc] sm:$0xff]
    %v1572 = vld [vmem:[#allocation11 + $0x14] sm:$0xf]
    %v1573 = vld [vmem:[#allocation11 + $0x18] sm:$0xff]
    %v1574 = vld [vmem:[#allocation11 + $0x20] sm:$0xf]
    %v1575 = vld [vmem:[#allocation11 + $0x24] sm:$0xff]
    %v1576 = vld [vmem:[#allocation11 + $0x2c] sm:$0xf]
    %v1577 = vld [vmem:[#allocation11 + $0x30] sm:$0xff]
    %v1578 = vld [vmem:[#allocation11 + $0x38] sm:$0xf]
    %v1579 = vld [vmem:[#allocation11 + $0x3c] sm:$0xff]
    %v1580 = vld [vmem:[#allocation11 + $0x44] sm:$0xf]
    %v1581 = vld [vmem:[#allocation11 + $0x48] sm:$0xff]
    %v1582 = vld [vmem:[#allocation11 + $0x50] sm:$0xf]
    %v1583 = vld [vmem:[#allocation11 + $0x54] sm:$0xff]
    %v1584 = vld [vmem:[#allocation11 + $0x5c] sm:$0xf]
    %v1585 = vld [vmem:[#allocation11 + $0x60] sm:$0xff]
    %v1586 = vld [vmem:[#allocation11 + $0x68] sm:$0xf]
    %v1587 = vld [vmem:[#allocation11 + $0x6c] sm:$0xff]
    %v1588 = vld [vmem:[#allocation11 + $0x74] sm:$0xf]
    %v1589 = vld [vmem:[#allocation11 + $0x78] sm:$0xff]
    %v1590 = vld [vmem:[#allocation11 + $0x80] sm:$0xf]
    %v1591 = vld [vmem:[#allocation11 + $0x84] sm:$0xff]
    %v1592 = vld [vmem:[#allocation11 + $0x8c] sm:$0xf]
    %v1593 = vld [vmem:[#allocation11 + $0x90] sm:$0xff]
    %v1594 = vld [vmem:[#allocation11 + $0x98] sm:$0xf]
    %v1595 = vld [vmem:[#allocation11 + $0x9c] sm:$0xff]
    %v1596 = vld [vmem:[#allocation11 + $0xa4] sm:$0xf]
    %v1597 = vld [vmem:[#allocation11 + $0xa8] sm:$0xff]
    %v1598 = vld [vmem:[#allocation11 + $0xb0] sm:$0xf]
    %v1599 = vld [vmem:[#allocation11 + $0xb4] sm:$0xff]
    %v1600 = vld [vmem:[#allocation11 + $0xbc] sm:$0xf]
    %v1601 = vld [vmem:[%s7] sm:$0x7]
    %v1603 = vlaneseq
    %v1604 = vshrl.u32 %v1603, 7
    %v1605 = vsub.s32 0, %v1604
    %v1606 = vrot.slane %v1601, %v1605
    %v1607 = vlaneseq
    %v1608 = vshrl.u32 %v1607, 7
    %v1609 = vsub.s32 1, %v1608
    %v1610 = vrot.slane %v1601, %v1609
    %v1611 = vlaneseq
    %v1612 = vshrl.u32 %v1611, 7
    %v1613 = vsub.s32 2, %v1612
    %v1614 = vrot.slane %v1601, %v1613
    %v1650 = vunpack.c.l.b16 %v1569
    %v1651 = vunpack.c.h.b16 %v1569
    %v1652 = vunpack.c.l.b16 %v1570
    %v1653 = vunpack.c.l.b16 %v1571
    %v1654 = vunpack.c.h.b16 %v1571
    %v1655 = vunpack.c.l.b16 %v1572
    %v1656 = vunpack.c.l.b16 %v1573
    %v1657 = vunpack.c.h.b16 %v1573
    %v1658 = vunpack.c.l.b16 %v1574
    %v1659 = vunpack.c.l.b16 %v1575
    %v1660 = vunpack.c.h.b16 %v1575
    %v1661 = vunpack.c.l.b16 %v1576
    %v1662 = vunpack.c.l.b16 %v1577
    %v1663 = vunpack.c.h.b16 %v1577
    %v1664 = vunpack.c.l.b16 %v1578
    %v1665 = vunpack.c.l.b16 %v1579
    %v1666 = vunpack.c.h.b16 %v1579
    %v1667 = vunpack.c.l.b16 %v1580
    %v1668 = vunpack.c.l.b16 %v1581
    %v1669 = vunpack.c.h.b16 %v1581
    %v1670 = vunpack.c.l.b16 %v1582
    %v1671 = vunpack.c.l.b16 %v1583
    %v1672 = vunpack.c.h.b16 %v1583
    %v1673 = vunpack.c.l.b16 %v1584
    %v1674 = vunpack.c.l.b16 %v1585
    %v1675 = vunpack.c.h.b16 %v1585
    %v1676 = vunpack.c.l.b16 %v1586
    %v1677 = vunpack.c.l.b16 %v1587
    %v1678 = vunpack.c.h.b16 %v1587
    %v1679 = vunpack.c.l.b16 %v1588
    %v1680 = vunpack.c.l.b16 %v1589
    %v1681 = vunpack.c.h.b16 %v1589
    %v1682 = vunpack.c.l.b16 %v1590
    %v1683 = vunpack.c.l.b16 %v1591
    %v1684 = vunpack.c.h.b16 %v1591
    %v1685 = vunpack.c.l.b16 %v1592
    %v1686 = vunpack.c.l.b16 %v1593
    %v1687 = vunpack.c.h.b16 %v1593
    %v1688 = vunpack.c.l.b16 %v1594
    %v1689 = vunpack.c.l.b16 %v1595
    %v1690 = vunpack.c.h.b16 %v1595
    %v1691 = vunpack.c.l.b16 %v1596
    %v1692 = vunpack.c.l.b16 %v1597
    %v1693 = vunpack.c.h.b16 %v1597
    %v1694 = vunpack.c.l.b16 %v1598
    %v1695 = vunpack.c.l.b16 %v1599
    %v1696 = vunpack.c.h.b16 %v1599
    %v1697 = vunpack.c.l.b16 %v1600
    %v1698 = vpack.c.b16 %v1653, %v1650
    %v1699 = vpack.c.b16 %v1654, %v1651
    %v1700 = vpack.c.b16 %v1655, %v1652
    %v1701 = vpack.c.b16 %v1659, %v1656
    %v1702 = vpack.c.b16 %v1660, %v1657
    %v1703 = vpack.c.b16 %v1661, %v1658
    %v1704 = vpack.c.b16 %v1665, %v1662
    %v1705 = vpack.c.b16 %v1666, %v1663
    %v1706 = vpack.c.b16 %v1667, %v1664
    %v1707 = vpack.c.b16 %v1671, %v1668
    %v1708 = vpack.c.b16 %v1672, %v1669
    %v1709 = vpack.c.b16 %v1673, %v1670
    %v1710 = vpack.c.b16 %v1677, %v1674
    %v1711 = vpack.c.b16 %v1678, %v1675
    %v1712 = vpack.c.b16 %v1679, %v1676
    %v1713 = vpack.c.b16 %v1683, %v1680
    %v1714 = vpack.c.b16 %v1684, %v1681
    %v1715 = vpack.c.b16 %v1685, %v1682
    %v1716 = vpack.c.b16 %v1689, %v1686
    %v1717 = vpack.c.b16 %v1690, %v1687
    %v1718 = vpack.c.b16 %v1691, %v1688
    %v1719 = vpack.c.b16 %v1695, %v1692
    %v1720 = vpack.c.b16 %v1696, %v1693
    %v1721 = vpack.c.b16 %v1697, %v1694
    %1746 = vmatprep.subr.bf16.mxu0 %v1699
    %1747 = vmatpush1.bf16.msra.mxu0 %v1698
    %1748 = vmatprep.subr.bf16.mxu0 %v1702
    %1749 = vmatpush1.bf16.msra.mxu0 %v1701
    %1750 = vmatprep.subr.bf16.mxu0 %v1705
    %1751 = vmatpush1.bf16.msra.mxu0 %v1704
    %1752 = vmatprep.subr.bf16.mxu0 %v1708
    %1753 = vmatpush1.bf16.msra.mxu0 %v1707
    %1754 = vmatprep.subr.bf16.mxu0 %v1711
    %1755 = vmatpush1.bf16.msra.mxu0 %v1710
    %1756 = vmatprep.subr.bf16.mxu0 %v1714
    %1757 = vmatpush1.bf16.msra.mxu0 %v1713
    %1758 = vmatprep.subr.bf16.mxu0 %v1717
    %1759 = vmatpush1.bf16.msra.mxu0 %v1716
    %1760 = vmatprep.subr.bf16.mxu0 %v1720
    %1761 = vmatpush1.bf16.msra.mxu0 %v1719
    %1762 = vmatprep.subr.bf16.mxu0 0
    %1763 = vmatpush1.bf16.msra.mxu0 0
    %1764 = vmatprep.subr.bf16.mxu0 0
    %1765 = vmatpush1.bf16.msra.mxu0 0
    %1766 = vmatprep.subr.bf16.mxu0 0
    %1767 = vmatpush1.bf16.msra.mxu0 0
    %1768 = vmatprep.subr.bf16.mxu0 0
    %1769 = vmatpush1.bf16.msra.mxu0 0
    %1770 = vmatprep.subr.bf16.mxu0 0
    %1771 = vmatpush1.bf16.msra.mxu0 0
    %1772 = vmatprep.subr.bf16.mxu0 0
    %1773 = vmatpush1.bf16.msra.mxu0 0
    %1774 = vmatprep.subr.bf16.mxu0 0
    %1775 = vmatpush1.bf16.msra.mxu0 0
    %1776 = vmatprep.subr.bf16.mxu0 0
    %1777 = vmatpush1.bf16.msra.mxu0 0
    %1778 = vmatprep.mubr.bf16.mxu0 0
    %1779 = vmatmul.mubr.bf16.gmra.mrb[0].mxu0 %v1565
    %v1780 = vpop.f32.mrb[0].mxu0
    %v1781 = vadd.f32 %v1606, %v1780
    %v1782 = vpop.f32.mrb[0].mxu0
    %v1783 = vadd.f32 %v1610, %v1782
    %v1784 = vpop.f32.mrb[0].mxu0
    %v1785 = vadd.f32 %v1606, %v1784
    %v1786 = vpop.f32.mrb[0].mxu0
    %v1787 = vadd.f32 %v1610, %v1786
    %1788 = vmatprep.mubr.bf16.mxu0 0
    %1789 = vmatmul.mubr.bf16.gmra.mrb[0].mxu0 %v1566
    %v1790 = vpop.f32.mrb[0].mxu0
    %v1791 = vadd.f32 %v1606, %v1790
    %v1792 = vpop.f32.mrb[0].mxu0
    %v1793 = vadd.f32 %v1610, %v1792
    %v1794 = vpop.f32.mrb[0].mxu0
    %v1795 = vadd.f32 %v1606, %v1794
    %v1796 = vpop.f32.mrb[0].mxu0
    %v1797 = vadd.f32 %v1610, %v1796
    %1798 = vmatprep.mubr.bf16.mxu0 0
    %1799 = vmatmul.mubr.bf16.gmra.mrb[0].mxu0 %v1567
    %v1800 = vpop.f32.mrb[0].mxu0
    %v1801 = vadd.f32 %v1606, %v1800
    %v1802 = vpop.f32.mrb[0].mxu0
    %v1803 = vadd.f32 %v1610, %v1802
    %v1804 = vpop.f32.mrb[0].mxu0
    %v1805 = vadd.f32 %v1606, %v1804
    %v1806 = vpop.f32.mrb[0].mxu0
    %v1807 = vadd.f32 %v1610, %v1806
    %1808 = vmatprep.mubr.bf16.mxu0 0
    %1809 = vmatmul.mubr.bf16.gmra.mrb[0].mxu0 %v1568
    %v1810 = vpop.f32.mrb[0].mxu0
    %v1811 = vadd.f32 %v1606, %v1810
    %v1812 = vpop.f32.mrb[0].mxu0
    %v1813 = vadd.f32 %v1610, %v1812
    %v1814 = vpop.f32.mrb[0].mxu0
    %v1815 = vadd.f32 %v1606, %v1814
    %v1816 = vpop.f32.mrb[0].mxu0
    %v1817 = vadd.f32 %v1610, %v1816
    %1818 = vdwg.mxu0
    %1819 = vmatprep.subr.bf16.mxu0 0
    %1820 = vmatpush1.bf16.msra.mxu0 %v1700
    %1821 = vmatprep.subr.bf16.mxu0 0
    %1822 = vmatpush1.bf16.msra.mxu0 %v1703
    %1823 = vmatprep.subr.bf16.mxu0 0
    %1824 = vmatpush1.bf16.msra.mxu0 %v1706
    %1825 = vmatprep.subr.bf16.mxu0 0
    %1826 = vmatpush1.bf16.msra.mxu0 %v1709
    %1827 = vmatprep.subr.bf16.mxu0 0
    %1828 = vmatpush1.bf16.msra.mxu0 %v1712
    %1829 = vmatprep.subr.bf16.mxu0 0
    %1830 = vmatpush1.bf16.msra.mxu0 %v1715
    %1831 = vmatprep.subr.bf16.mxu0 0
    %1832 = vmatpush1.bf16.msra.mxu0 %v1718
    %1833 = vmatprep.subr.bf16.mxu0 0
    %1834 = vmatpush1.bf16.msra.mxu0 %v1721
    %1835 = vmatprep.subr.bf16.mxu0 0
    %1836 = vmatpush1.bf16.msra.mxu0 0
    %1837 = vmatprep.subr.bf16.mxu0 0
    %1838 = vmatpush1.bf16.msra.mxu0 0
    %1839 = vmatprep.subr.bf16.mxu0 0
    %1840 = vmatpush1.bf16.msra.mxu0 0
    %1841 = vmatprep.subr.bf16.mxu0 0
    %1842 = vmatpush1.bf16.msra.mxu0 0
    %1843 = vmatprep.subr.bf16.mxu0 0
    %1844 = vmatpush1.bf16.msra.mxu0 0
    %1845 = vmatprep.subr.bf16.mxu0 0
    %1846 = vmatpush1.bf16.msra.mxu0 0
    %1847 = vmatprep.subr.bf16.mxu0 0
    %1848 = vmatpush1.bf16.msra.mxu0 0
    %1849 = vmatprep.subr.bf16.mxu0 0
    %1850 = vmatpush1.bf16.msra.mxu0 0
    %1851 = vmatprep.mubr.bf16.mxu0 0
    %1852 = vmatmul.mubr.bf16.gmra.mrb[0].mxu0 %v1565
    %v1853 = vpop.f32.mrb[0].mxu0
    %v1854 = vadd.f32 %v1614, %v1853
    %v1855 = vpop.f32.mrb[0].mxu0
    %v1856 = vpop.f32.mrb[0].mxu0
    %v1857 = vadd.f32 %v1614, %v1856
    %v1858 = vpop.f32.mrb[0].mxu0
    %1859 = vmatprep.mubr.bf16.mxu0 0
    %1860 = vmatmul.mubr.bf16.gmra.mrb[0].mxu0 %v1566
    %v1861 = vpop.f32.mrb[0].mxu0
    %v1862 = vadd.f32 %v1614, %v1861
    %v1863 = vpop.f32.mrb[0].mxu0
    %v1864 = vpop.f32.mrb[0].mxu0
    %v1865 = vadd.f32 %v1614, %v1864
    %v1866 = vpop.f32.mrb[0].mxu0
    %1867 = vmatprep.mubr.bf16.mxu0 0
    %1868 = vmatmul.mubr.bf16.gmra.mrb[0].mxu0 %v1567
    %v1869 = vpop.f32.mrb[0].mxu0
    %v1870 = vadd.f32 %v1614, %v1869
    %v1871 = vpop.f32.mrb[0].mxu0
    %v1872 = vpop.f32.mrb[0].mxu0
    %v1873 = vadd.f32 %v1614, %v1872
    %v1874 = vpop.f32.mrb[0].mxu0
    %1875 = vmatprep.mubr.bf16.mxu0 0
    %1876 = vmatmul.mubr.bf16.gmra.mrb[0].mxu0 %v1568
    %v1877 = vpop.f32.mrb[0].mxu0
    %v1878 = vadd.f32 %v1614, %v1877
    %v1879 = vpop.f32.mrb[0].mxu0
    %v1880 = vpop.f32.mrb[0].mxu0
    %v1881 = vadd.f32 %v1614, %v1880
    %v1882 = vpop.f32.mrb[0].mxu0
    %1883 = vdwg.mxu0
    %1884 = vst [vmem:[#allocation2] sm:$0xff] %v1781
    %1885 = vst [vmem:[#allocation2 + $0x8] sm:$0xff] %v1783
    %1886 = vst [vmem:[#allocation2 + $0x10] sm:$0xff] %v1854
    %1887 = vst [vmem:[#allocation2 + $0x18] sm:$0xff] %v1785
    %1888 = vst [vmem:[#allocation2 + $0x20] sm:$0xff] %v1787
    %1889 = vst [vmem:[#allocation2 + $0x28] sm:$0xff] %v1857
    %1890 = vst [vmem:[#allocation2 + $0x30] sm:$0xff] %v1791
    %1891 = vst [vmem:[#allocation2 + $0x38] sm:$0xff] %v1793
    %1892 = vst [vmem:[#allocation2 + $0x40] sm:$0xff] %v1862
    %1893 = vst [vmem:[#allocation2 + $0x48] sm:$0xff] %v1795
    %1894 = vst [vmem:[#allocation2 + $0x50] sm:$0xff] %v1797
    %1895 = vst [vmem:[#allocation2 + $0x58] sm:$0xff] %v1865
    %1896 = vst [vmem:[#allocation2 + $0x60] sm:$0xff] %v1801
    %1897 = vst [vmem:[#allocation2 + $0x68] sm:$0xff] %v1803
    %1898 = vst [vmem:[#allocation2 + $0x70] sm:$0xff] %v1870
    %1899 = vst [vmem:[#allocation2 + $0x78] sm:$0xff] %v1805
    %1900 = vst [vmem:[#allocation2 + $0x80] sm:$0xff] %v1807
    %1901 = vst [vmem:[#allocation2 + $0x88] sm:$0xff] %v1873
    %1902 = vst [vmem:[#allocation2 + $0x90] sm:$0xff] %v1811
    %1903 = vst [vmem:[#allocation2 + $0x98] sm:$0xff] %v1813
    %1904 = vst [vmem:[#allocation2 + $0xa0] sm:$0xff] %v1878
    %1905 = vst [vmem:[#allocation2 + $0xa8] sm:$0xff] %v1815
    %1906 = vst [vmem:[#allocation2 + $0xb0] sm:$0xff] %v1817
    %1907 = vst [vmem:[#allocation2 + $0xb8] sm:$0xff] %v1881
    %1908 = vst [vmem:[#allocation4] sm:$0xff] 0.0
    %v1909 = vld [vmem:[#allocation13] sm:$0xff]
    %v1910 = vld [vmem:[#allocation13 + $0x8] sm:$0xf]
    %v1911 = vld [vmem:[#allocation13 + $0xc] sm:$0xff]
    %v1912 = vld [vmem:[#allocation13 + $0x14] sm:$0xf]
    %v1913 = vld [vmem:[#allocation13 + $0x18] sm:$0xff]
    %v1914 = vld [vmem:[#allocation13 + $0x20] sm:$0xf]
    %v1915 = vld [vmem:[#allocation13 + $0x24] sm:$0xff]
    %v1916 = vld [vmem:[#allocation13 + $0x2c] sm:$0xf]
    %v1917 = vld [vmem:[#allocation13 + $0x30] sm:$0xff]
    %v1918 = vld [vmem:[#allocation13 + $0x38] sm:$0xf]
    %v1919 = vld [vmem:[#allocation13 + $0x3c] sm:$0xff]
    %v1920 = vld [vmem:[#allocation13 + $0x44] sm:$0xf]
    %v1921 = vld [vmem:[#allocation13 + $0x48] sm:$0xff]
    %v1922 = vld [vmem:[#allocation13 + $0x50] sm:$0xf]
    %v1923 = vld [vmem:[#allocation13 + $0x54] sm:$0xff]
    %v1924 = vld [vmem:[#allocation13 + $0x5c] sm:$0xf]
    %v1925 = vld [vmem:[#allocation13 + $0x60] sm:$0xff]
    %v1926 = vld [vmem:[#allocation13 + $0x68] sm:$0xf]
    %v1927 = vld [vmem:[#allocation13 + $0x6c] sm:$0xff]
    %v1928 = vld [vmem:[#allocation13 + $0x74] sm:$0xf]
    %v1929 = vld [vmem:[#allocation13 + $0x78] sm:$0xff]
    %v1930 = vld [vmem:[#allocation13 + $0x80] sm:$0xf]
    %v1931 = vld [vmem:[#allocation13 + $0x84] sm:$0xff]
    %v1932 = vld [vmem:[#allocation13 + $0x8c] sm:$0xf]
    %v1933 = vld [vmem:[#allocation13 + $0x90] sm:$0xff]
    %v1934 = vld [vmem:[#allocation13 + $0x98] sm:$0xf]
    %v1935 = vld [vmem:[#allocation13 + $0x9c] sm:$0xff]
    %v1936 = vld [vmem:[#allocation13 + $0xa4] sm:$0xf]
    %v1937 = vld [vmem:[#allocation13 + $0xa8] sm:$0xff]
    %v1938 = vld [vmem:[#allocation13 + $0xb0] sm:$0xf]
    %v1939 = vld [vmem:[#allocation13 + $0xb4] sm:$0xff]
    %v1940 = vld [vmem:[#allocation13 + $0xbc] sm:$0xf]
    %v1941 = vld [vmem:[%s8] sm:$0x1]
    %v1942 = vld [vmem:[%s512] sm:$0xff]
    %v1943 = vld [vmem:[%s512 + $0x8] sm:$0xff]
    %v1944 = vld [vmem:[%s512 + $0x10] sm:$0xff]
    %v1945 = vld [vmem:[#allocation4] sm:$0xff]
    %v1946 = vpack.c.bf16 %v1945, %v1945
    %v1979 = vunpack.c.l.b16 %v1909
    %v1980 = vunpack.c.h.b16 %v1909
    %v1981 = vunpack.c.l.b16 %v1910
    %v1982 = vunpack.c.l.b16 %v1911
    %v1983 = vunpack.c.h.b16 %v1911
    %v1984 = vunpack.c.l.b16 %v1912
    %v1985 = vunpack.c.l.b16 %v1913
    %v1986 = vunpack.c.h.b16 %v1913
    %v1987 = vunpack.c.l.b16 %v1914
    %v1988 = vunpack.c.l.b16 %v1915
    %v1989 = vunpack.c.h.b16 %v1915
    %v1990 = vunpack.c.l.b16 %v1916
    %v1991 = vunpack.c.l.b16 %v1917
    %v1992 = vunpack.c.h.b16 %v1917
    %v1993 = vunpack.c.l.b16 %v1918
    %v1994 = vunpack.c.l.b16 %v1919
    %v1995 = vunpack.c.h.b16 %v1919
    %v1996 = vunpack.c.l.b16 %v1920
    %v1997 = vunpack.c.l.b16 %v1921
    %v1998 = vunpack.c.h.b16 %v1921
    %v1999 = vunpack.c.l.b16 %v1922
    %v2000 = vunpack.c.l.b16 %v1923
    %v2001 = vunpack.c.h.b16 %v1923
    %v2002 = vunpack.c.l.b16 %v1924
    %v2003 = vunpack.c.l.b16 %v1925
    %v2004 = vunpack.c.h.b16 %v1925
    %v2005 = vunpack.c.l.b16 %v1926
    %v2006 = vunpack.c.l.b16 %v1927
    %v2007 = vunpack.c.h.b16 %v1927
    %v2008 = vunpack.c.l.b16 %v1928
    %v2009 = vunpack.c.l.b16 %v1929
    %v2010 = vunpack.c.h.b16 %v1929
    %v2011 = vunpack.c.l.b16 %v1930
    %v2012 = vunpack.c.l.b16 %v1931
    %v2013 = vunpack.c.h.b16 %v1931
    %v2014 = vunpack.c.l.b16 %v1932
    %v2015 = vunpack.c.l.b16 %v1933
    %v2016 = vunpack.c.h.b16 %v1933
    %v2017 = vunpack.c.l.b16 %v1934
    %v2018 = vunpack.c.l.b16 %v1935
    %v2019 = vunpack.c.h.b16 %v1935
    %v2020 = vunpack.c.l.b16 %v1936
    %v2021 = vunpack.c.l.b16 %v1937
    %v2022 = vunpack.c.h.b16 %v1937
    %v2023 = vunpack.c.l.b16 %v1938
    %v2024 = vunpack.c.l.b16 %v1939
    %v2025 = vunpack.c.h.b16 %v1939
    %v2026 = vunpack.c.l.b16 %v1940
    %v2027 = vpack.c.b16 %v1982, %v1979
    %v2028 = vpack.c.b16 %v1983, %v1980
    %v2029 = vpack.c.b16 %v1984, %v1981
    %v2030 = vpack.c.b16 %v1988, %v1985
    %v2031 = vpack.c.b16 %v1989, %v1986
    %v2032 = vpack.c.b16 %v1990, %v1987
    %v2033 = vpack.c.b16 %v1994, %v1991
    %v2034 = vpack.c.b16 %v1995, %v1992
    %v2035 = vpack.c.b16 %v1996, %v1993
    %v2036 = vpack.c.b16 %v2000, %v1997
    %v2037 = vpack.c.b16 %v2001, %v1998
    %v2038 = vpack.c.b16 %v2002, %v1999
    %v2039 = vpack.c.b16 %v2006, %v2003
    %v2040 = vpack.c.b16 %v2007, %v2004
    %v2041 = vpack.c.b16 %v2008, %v2005
    %v2042 = vpack.c.b16 %v2012, %v2009
    %v2043 = vpack.c.b16 %v2013, %v2010
    %v2044 = vpack.c.b16 %v2014, %v2011
    %v2045 = vpack.c.b16 %v2018, %v2015
    %v2046 = vpack.c.b16 %v2019, %v2016
    %v2047 = vpack.c.b16 %v2020, %v2017
    %v2048 = vpack.c.b16 %v2024, %v2021
    %v2049 = vpack.c.b16 %v2025, %v2022
    %v2050 = vpack.c.b16 %v2026, %v2023
    %2075 = vmatprep.subr.bf16.mxu0 %v2028
    %2076 = vmatpush1.bf16.msra.mxu0 %v2027
    %2077 = vmatprep.subr.bf16.mxu0 %v2031
    %2078 = vmatpush1.bf16.msra.mxu0 %v2030
    %2079 = vmatprep.subr.bf16.mxu0 %v2034
    %2080 = vmatpush1.bf16.msra.mxu0 %v2033
    %2081 = vmatprep.subr.bf16.mxu0 %v2037
    %2082 = vmatpush1.bf16.msra.mxu0 %v2036
    %2083 = vmatprep.subr.bf16.mxu0 %v2040
    %2084 = vmatpush1.bf16.msra.mxu0 %v2039
    %2085 = vmatprep.subr.bf16.mxu0 %v2043
    %2086 = vmatpush1.bf16.msra.mxu0 %v2042
    %2087 = vmatprep.subr.bf16.mxu0 %v2046
    %2088 = vmatpush1.bf16.msra.mxu0 %v2045
    %2089 = vmatprep.subr.bf16.mxu0 %v2049
    %2090 = vmatpush1.bf16.msra.mxu0 %v2048
    %2091 = vmatprep.subr.bf16.mxu0 0
    %2092 = vmatpush1.bf16.msra.mxu0 0
    %2093 = vmatprep.subr.bf16.mxu0 0
    %2094 = vmatpush1.bf16.msra.mxu0 0
    %2095 = vmatprep.subr.bf16.mxu0 0
    %2096 = vmatpush1.bf16.msra.mxu0 0
    %2097 = vmatprep.subr.bf16.mxu0 0
    %2098 = vmatpush1.bf16.msra.mxu0 0
    %2099 = vmatprep.subr.bf16.mxu0 0
    %2100 = vmatpush1.bf16.msra.mxu0 0
    %2101 = vmatprep.subr.bf16.mxu0 0
    %2102 = vmatpush1.bf16.msra.mxu0 0
    %2103 = vmatprep.subr.bf16.mxu0 0
    %2104 = vmatpush1.bf16.msra.mxu0 0
    %2105 = vmatprep.subr.bf16.mxu0 0
    %2106 = vmatpush1.bf16.msra.mxu0 0
    %2107 = vmatprep.mubr.bf16.mxu0 0
    %2108 = vmatmul.mubr.bf16.gmra.mrb[0].mxu0 %v1946
    %v2109 = vpop.f32.mrb[0].mxu0
    %v2110 = vadd.f32 0.0, %v2109
    %v2111 = vpop.f32.mrb[0].mxu0
    %v2112 = vadd.f32 0.0, %v2111
    %v2113 = vpop.f32.mrb[0].mxu0
    %v2114 = vpop.f32.mrb[0].mxu0
    %2115 = vdwg.mxu0
    %2116 = vmatprep.subr.bf16.mxu0 0
    %2117 = vmatpush1.bf16.msra.mxu0 %v2029
    %2118 = vmatprep.subr.bf16.mxu0 0
    %2119 = vmatpush1.bf16.msra.mxu0 %v2032
    %2120 = vmatprep.subr.bf16.mxu0 0
    %2121 = vmatpush1.bf16.msra.mxu0 %v2035
    %2122 = vmatprep.subr.bf16.mxu0 0
    %2123 = vmatpush1.bf16.msra.mxu0 %v2038
    %2124 = vmatprep.subr.bf16.mxu0 0
    %2125 = vmatpush1.bf16.msra.mxu0 %v2041
    %2126 = vmatprep.subr.bf16.mxu0 0
    %2127 = vmatpush1.bf16.msra.mxu0 %v2044
    %2128 = vmatprep.subr.bf16.mxu0 0
    %2129 = vmatpush1.bf16.msra.mxu0 %v2047
    %2130 = vmatprep.subr.bf16.mxu0 0
    %2131 = vmatpush1.bf16.msra.mxu0 %v2050
    %2132 = vmatprep.subr.bf16.mxu0 0
    %2133 = vmatpush1.bf16.msra.mxu0 0
    %2134 = vmatprep.subr.bf16.mxu0 0
    %2135 = vmatpush1.bf16.msra.mxu0 0
    %2136 = vmatprep.subr.bf16.mxu0 0
    %2137 = vmatpush1.bf16.msra.mxu0 0
    %2138 = vmatprep.subr.bf16.mxu0 0
    %2139 = vmatpush1.bf16.msra.mxu0 0
    %2140 = vmatprep.subr.bf16.mxu0 0
    %2141 = vmatpush1.bf16.msra.mxu0 0
    %2142 = vmatprep.subr.bf16.mxu0 0
    %2143 = vmatpush1.bf16.msra.mxu0 0
    %2144 = vmatprep.subr.bf16.mxu0 0
    %2145 = vmatpush1.bf16.msra.mxu0 0
    %2146 = vmatprep.subr.bf16.mxu0 0
    %2147 = vmatpush1.bf16.msra.mxu0 0
    %2148 = vmatprep.mubr.bf16.mxu0 0
    %2149 = vmatmul.mubr.bf16.gmra.mrb[0].mxu0 %v1946
    %v2150 = vpop.f32.mrb[0].mxu0
    %v2151 = vadd.f32 0.0, %v2150
    %v2152 = vpop.f32.mrb[0].mxu0
    %v2153 = vpop.f32.mrb[0].mxu0
    %v2154 = vpop.f32.mrb[0].mxu0
    %2155 = vdwg.mxu0
    %v2156 = vadd.f32 %v1942, %v2110
    %v2157 = vxor.u32 %v2156, 2147483648
    %v2158 = vmul.f32 %v2157, 1.442695
    %v2159 = vpow.pop %v2158
    %v2160 = vadd.f32 %v2159, 1.0
    %v2161 = vrcp.pop %v2160
    %v2162 = vmul.f32 1.0, %v2161
    %v2163 = vadd.f32 %v1943, %v2112
    %v2164 = vxor.u32 %v2163, 2147483648
    %v2165 = vmul.f32 %v2164, 1.442695
    %v2166 = vpow.pop %v2165
    %v2167 = vadd.f32 %v2166, 1.0
    %v2168 = vrcp.pop %v2167
    %v2169 = vmul.f32 1.0, %v2168
    %v2171 = vlaneseq
    %v2172 = vshrl.u32 %v2171, 7
    %v2173 = vsub.s32 0, %v2172
    %v2174 = vrot.slane %v1941, %v2173
    %v2176 = vadd.f32 %v2151, %v2174
    %v2177 = vmul.f32 %v2162, %v2176
    %v2178 = vadd.f32 %v1944, %v2177
    %v2179 = vtanh.pop %v2178
    %v2180 = vsub.f32 1.0, %v2169
    %v2181 = vmul.f32 %v2180, %v2179
    %v2182 = vmul.f32 %v2169, %v1945
    %v2183 = vadd.f32 %v2181, %v2182
    %2184 = vst [vmem:[#allocation4] sm:$0xff] %v2183
    %2185 = vst [vmem:[#allocation14] sm:$0xff] %v2183
    %v2186 = vld [vmem:[%s759] sm:$0xff]
    %v2187 = vld [vmem:[%s759 + $0x8] sm:$0xff]
    %v2188 = vld [vmem:[%s759 + $0x10] sm:$0xff]
    %v2189 = vld [vmem:[#allocation4] sm:$0xff]
    %v2190 = vpack.c.bf16 %v2189, %v2189
    %2191 = vmatprep.subr.bf16.mxu0 %v2028
    %2192 = vmatpush1.bf16.msra.mxu0 %v2027
    %2193 = vmatprep.subr.bf16.mxu0 %v2031
    %2194 = vmatpush1.bf16.msra.mxu0 %v2030
    %2195 = vmatprep.subr.bf16.mxu0 %v2034
    %2196 = vmatpush1.bf16.msra.mxu0 %v2033
    %2197 = vmatprep.subr.bf16.mxu0 %v2037
    %2198 = vmatpush1.bf16.msra.mxu0 %v2036
    %2199 = vmatprep.subr.bf16.mxu0 %v2040
    %2200 = vmatpush1.bf16.msra.mxu0 %v2039
    %2201 = vmatprep.subr.bf16.mxu0 %v2043
    %2202 = vmatpush1.bf16.msra.mxu0 %v2042
    %2203 = vmatprep.subr.bf16.mxu0 %v2046
    %2204 = vmatpush1.bf16.msra.mxu0 %v2045
    %2205 = vmatprep.subr.bf16.mxu0 %v2049
    %2206 = vmatpush1.bf16.msra.mxu0 %v2048
    %2207 = vmatprep.subr.bf16.mxu0 0
    %2208 = vmatpush1.bf16.msra.mxu0 0
    %2209 = vmatprep.subr.bf16.mxu0 0
    %2210 = vmatpush1.bf16.msra.mxu0 0
    %2211 = vmatprep.subr.bf16.mxu0 0
    %2212 = vmatpush1.bf16.msra.mxu0 0
    %2213 = vmatprep.subr.bf16.mxu0 0
    %2214 = vmatpush1.bf16.msra.mxu0 0
    %2215 = vmatprep.subr.bf16.mxu0 0
    %2216 = vmatpush1.bf16.msra.mxu0 0
    %2217 = vmatprep.subr.bf16.mxu0 0
    %2218 = vmatpush1.bf16.msra.mxu0 0
    %2219 = vmatprep.subr.bf16.mxu0 0
    %2220 = vmatpush1.bf16.msra.mxu0 0
    %2221 = vmatprep.subr.bf16.mxu0 0
    %2222 = vmatpush1.bf16.msra.mxu0 0
    %2223 = vmatprep.mubr.bf16.mxu0 0
    %2224 = vmatmul.mubr.bf16.gmra.mrb[0].mxu0 %v2190
    %v2225 = vpop.f32.mrb[0].mxu0
    %v2226 = vadd.f32 0.0, %v2225
    %v2227 = vpop.f32.mrb[0].mxu0
    %v2228 = vadd.f32 0.0, %v2227
    %v2229 = vpop.f32.mrb[0].mxu0
    %v2230 = vpop.f32.mrb[0].mxu0
    %2231 = vdwg.mxu0
    %2232 = vmatprep.subr.bf16.mxu0 0
    %2233 = vmatpush1.bf16.msra.mxu0 %v2029
    %2234 = vmatprep.subr.bf16.mxu0 0
    %2235 = vmatpush1.bf16.msra.mxu0 %v2032
    %2236 = vmatprep.subr.bf16.mxu0 0
    %2237 = vmatpush1.bf16.msra.mxu0 %v2035
    %2238 = vmatprep.subr.bf16.mxu0 0
    %2239 = vmatpush1.bf16.msra.mxu0 %v2038
    %2240 = vmatprep.subr.bf16.mxu0 0
    %2241 = vmatpush1.bf16.msra.mxu0 %v2041
    %2242 = vmatprep.subr.bf16.mxu0 0
    %2243 = vmatpush1.bf16.msra.mxu0 %v2044
    %2244 = vmatprep.subr.bf16.mxu0 0
    %2245 = vmatpush1.bf16.msra.mxu0 %v2047
    %2246 = vmatprep.subr.bf16.mxu0 0
    %2247 = vmatpush1.bf16.msra.mxu0 %v2050
    %2248 = vmatprep.subr.bf16.mxu0 0
    %2249 = vmatpush1.bf16.msra.mxu0 0
    %2250 = vmatprep.subr.bf16.mxu0 0
    %2251 = vmatpush1.bf16.msra.mxu0 0
    %2252 = vmatprep.subr.bf16.mxu0 0
    %2253 = vmatpush1.bf16.msra.mxu0 0
    %2254 = vmatprep.subr.bf16.mxu0 0
    %2255 = vmatpush1.bf16.msra.mxu0 0
    %2256 = vmatprep.subr.bf16.mxu0 0
    %2257 = vmatpush1.bf16.msra.mxu0 0
    %2258 = vmatprep.subr.bf16.mxu0 0
    %2259 = vmatpush1.bf16.msra.mxu0 0
    %2260 = vmatprep.subr.bf16.mxu0 0
    %2261 = vmatpush1.bf16.msra.mxu0 0
    %2262 = vmatprep.subr.bf16.mxu0 0
    %2263 = vmatpush1.bf16.msra.mxu0 0
    %2264 = vmatprep.mubr.bf16.mxu0 0
    %2265 = vmatmul.mubr.bf16.gmra.mrb[0].mxu0 %v2190
    %v2266 = vpop.f32.mrb[0].mxu0
    %v2267 = vadd.f32 0.0, %v2266
    %v2268 = vpop.f32.mrb[0].mxu0
    %v2269 = vpop.f32.mrb[0].mxu0
    %v2270 = vpop.f32.mrb[0].mxu0
    %2271 = vdwg.mxu0
    %v2272 = vadd.f32 %v2186, %v2226
    %v2273 = vxor.u32 %v2272, 2147483648
    %v2274 = vmul.f32 %v2273, 1.442695
    %v2275 = vpow.pop %v2274
    %v2276 = vadd.f32 %v2275, 1.0
    %v2277 = vrcp.pop %v2276
    %v2278 = vmul.f32 1.0, %v2277
    %v2279 = vadd.f32 %v2187, %v2228
    %v2280 = vxor.u32 %v2279, 2147483648
    %v2281 = vmul.f32 %v2280, 1.442695
    %v2282 = vpow.pop %v2281
    %v2283 = vadd.f32 %v2282, 1.0
    %v2284 = vrcp.pop %v2283
    %v2285 = vmul.f32 1.0, %v2284
    %v2286 = vadd.f32 %v2267, %v2174
    %v2287 = vmul.f32 %v2278, %v2286
    %v2288 = vadd.f32 %v2188, %v2287
    %v2289 = vtanh.pop %v2288
    %v2290 = vsub.f32 1.0, %v2285
    %v2291 = vmul.f32 %v2290, %v2289
    %v2292 = vmul.f32 %v2285, %v2189
    %v2293 = vadd.f32 %v2291, %v2292
    %2294 = vst [vmem:[#allocation4] sm:$0xff] %v2293
    %s2295 = scalar_lea.vmem [#allocation14], 8
    %2296 = vst [vmem:[%s2295] sm:$0xff] %v2293
    %v2297 = vld [vmem:[%s873] sm:$0xff]
    %v2298 = vld [vmem:[%s873 + $0x8] sm:$0xff]
    %v2299 = vld [vmem:[%s873 + $0x10] sm:$0xff]
    %v2300 = vld [vmem:[#allocation4] sm:$0xff]
    %v2301 = vpack.c.bf16 %v2300, %v2300
    %2302 = vmatprep.subr.bf16.mxu0 %v2028
    %2303 = vmatpush1.bf16.msra.mxu0 %v2027
    %2304 = vmatprep.subr.bf16.mxu0 %v2031
    %2305 = vmatpush1.bf16.msra.mxu0 %v2030
    %2306 = vmatprep.subr.bf16.mxu0 %v2034
    %2307 = vmatpush1.bf16.msra.mxu0 %v2033
    %2308 = vmatprep.subr.bf16.mxu0 %v2037
    %2309 = vmatpush1.bf16.msra.mxu0 %v2036
    %2310 = vmatprep.subr.bf16.mxu0 %v2040
    %2311 = vmatpush1.bf16.msra.mxu0 %v2039
    %2312 = vmatprep.subr.bf16.mxu0 %v2043
    %2313 = vmatpush1.bf16.msra.mxu0 %v2042
    %2314 = vmatprep.subr.bf16.mxu0 %v2046
    %2315 = vmatpush1.bf16.msra.mxu0 %v2045
    %2316 = vmatprep.subr.bf16.mxu0 %v2049
    %2317 = vmatpush1.bf16.msra.mxu0 %v2048
    %2318 = vmatprep.subr.bf16.mxu0 0
    %2319 = vmatpush1.bf16.msra.mxu0 0
    %2320 = vmatprep.subr.bf16.mxu0 0
    %2321 = vmatpush1.bf16.msra.mxu0 0
    %2322 = vmatprep.subr.bf16.mxu0 0
    %2323 = vmatpush1.bf16.msra.mxu0 0
    %2324 = vmatprep.subr.bf16.mxu0 0
    %2325 = vmatpush1.bf16.msra.mxu0 0
    %2326 = vmatprep.subr.bf16.mxu0 0
    %2327 = vmatpush1.bf16.msra.mxu0 0
    %2328 = vmatprep.subr.bf16.mxu0 0
    %2329 = vmatpush1.bf16.msra.mxu0 0
    %2330 = vmatprep.subr.bf16.mxu0 0
    %2331 = vmatpush1.bf16.msra.mxu0 0
    %2332 = vmatprep.subr.bf16.mxu0 0
    %2333 = vmatpush1.bf16.msra.mxu0 0
    %2334 = vmatprep.mubr.bf16.mxu0 0
    %2335 = vmatmul.mubr.bf16.gmra.mrb[0].mxu0 %v2301
    %v2336 = vpop.f32.mrb[0].mxu0
    %v2337 = vadd.f32 0.0, %v2336
    %v2338 = vpop.f32.mrb[0].mxu0
    %v2339 = vadd.f32 0.0, %v2338
    %v2340 = vpop.f32.mrb[0].mxu0
    %v2341 = vpop.f32.mrb[0].mxu0
    %2342 = vdwg.mxu0
    %2343 = vmatprep.subr.bf16.mxu0 0
    %2344 = vmatpush1.bf16.msra.mxu0 %v2029
    %2345 = vmatprep.subr.bf16.mxu0 0
    %2346 = vmatpush1.bf16.msra.mxu0 %v2032
    %2347 = vmatprep.subr.bf16.mxu0 0
    %2348 = vmatpush1.bf16.msra.mxu0 %v2035
    %2349 = vmatprep.subr.bf16.mxu0 0
    %2350 = vmatpush1.bf16.msra.mxu0 %v2038
    %2351 = vmatprep.subr.bf16.mxu0 0
    %2352 = vmatpush1.bf16.msra.mxu0 %v2041
    %2353 = vmatprep.subr.bf16.mxu0 0
    %2354 = vmatpush1.bf16.msra.mxu0 %v2044
    %2355 = vmatprep.subr.bf16.mxu0 0
    %2356 = vmatpush1.bf16.msra.mxu0 %v2047
    %2357 = vmatprep.subr.bf16.mxu0 0
    %2358 = vmatpush1.bf16.msra.mxu0 %v2050
    %2359 = vmatprep.subr.bf16.mxu0 0
    %2360 = vmatpush1.bf16.msra.mxu0 0
    %2361 = vmatprep.subr.bf16.mxu0 0
    %2362 = vmatpush1.bf16.msra.mxu0 0
    %2363 = vmatprep.subr.bf16.mxu0 0
    %2364 = vmatpush1.bf16.msra.mxu0 0
    %2365 = vmatprep.subr.bf16.mxu0 0
    %2366 = vmatpush1.bf16.msra.mxu0 0
    %2367 = vmatprep.subr.bf16.mxu0 0
    %2368 = vmatpush1.bf16.msra.mxu0 0
    %2369 = vmatprep.subr.bf16.mxu0 0
    %2370 = vmatpush1.bf16.msra.mxu0 0
    %2371 = vmatprep.subr.bf16.mxu0 0
    %2372 = vmatpush1.bf16.msra.mxu0 0
    %2373 = vmatprep.subr.bf16.mxu0 0
    %2374 = vmatpush1.bf16.msra.mxu0 0
    %2375 = vmatprep.mubr.bf16.mxu0 0
    %2376 = vmatmul.mubr.bf16.gmra.mrb[0].mxu0 %v2301
    %v2377 = vpop.f32.mrb[0].mxu0
    %v2378 = vadd.f32 0.0, %v2377
    %v2379 = vpop.f32.mrb[0].mxu0
    %v2380 = vpop.f32.mrb[0].mxu0
    %v2381 = vpop.f32.mrb[0].mxu0
    %2382 = vdwg.mxu0
    %v2383 = vadd.f32 %v2297, %v2337
    %v2384 = vxor.u32 %v2383, 2147483648
    %v2385 = vmul.f32 %v2384, 1.442695
    %v2386 = vpow.pop %v2385
    %v2387 = vadd.f32 %v2386, 1.0
    %v2388 = vrcp.pop %v2387
    %v2389 = vmul.f32 1.0, %v2388
    %v2390 = vadd.f32 %v2298, %v2339
    %v2391 = vxor.u32 %v2390, 2147483648
    %v2392 = vmul.f32 %v2391, 1.442695
    %v2393 = vpow.pop %v2392
    %v2394 = vadd.f32 %v2393, 1.0
    %v2395 = vrcp.pop %v2394
    %v2396 = vmul.f32 1.0, %v2395
    %v2397 = vadd.f32 %v2378, %v2174
    %v2398 = vmul.f32 %v2389, %v2397
    %v2399 = vadd.f32 %v2299, %v2398
    %v2400 = vtanh.pop %v2399
    %v2401 = vsub.f32 1.0, %v2396
    %v2402 = vmul.f32 %v2401, %v2400
    %v2403 = vmul.f32 %v2396, %v2300
    %v2404 = vadd.f32 %v2402, %v2403
    %2405 = vst [vmem:[#allocation4] sm:$0xff] %v2404
    %s2406 = scalar_lea.vmem [#allocation14], 16
    %2407 = vst [vmem:[%s2406] sm:$0xff] %v2404
    %v2408 = vld [vmem:[%s987] sm:$0xff]
    %v2409 = vld [vmem:[%s987 + $0x8] sm:$0xff]
    %v2410 = vld [vmem:[%s987 + $0x10] sm:$0xff]
    %v2411 = vld [vmem:[#allocation4] sm:$0xff]
    %v2412 = vpack.c.bf16 %v2411, %v2411
    %2413 = vmatprep.subr.bf16.mxu0 %v2028
    %2414 = vmatpush1.bf16.msra.mxu0 %v2027
    %2415 = vmatprep.subr.bf16.mxu0 %v2031
    %2416 = vmatpush1.bf16.msra.mxu0 %v2030
    %2417 = vmatprep.subr.bf16.mxu0 %v2034
    %2418 = vmatpush1.bf16.msra.mxu0 %v2033
    %2419 = vmatprep.subr.bf16.mxu0 %v2037
    %2420 = vmatpush1.bf16.msra.mxu0 %v2036
    %2421 = vmatprep.subr.bf16.mxu0 %v2040
    %2422 = vmatpush1.bf16.msra.mxu0 %v2039
    %2423 = vmatprep.subr.bf16.mxu0 %v2043
    %2424 = vmatpush1.bf16.msra.mxu0 %v2042
    %2425 = vmatprep.subr.bf16.mxu0 %v2046
    %2426 = vmatpush1.bf16.msra.mxu0 %v2045
    %2427 = vmatprep.subr.bf16.mxu0 %v2049
    %2428 = vmatpush1.bf16.msra.mxu0 %v2048
    %2429 = vmatprep.subr.bf16.mxu0 0
    %2430 = vmatpush1.bf16.msra.mxu0 0
    %2431 = vmatprep.subr.bf16.mxu0 0
    %2432 = vmatpush1.bf16.msra.mxu0 0
    %2433 = vmatprep.subr.bf16.mxu0 0
    %2434 = vmatpush1.bf16.msra.mxu0 0
    %2435 = vmatprep.subr.bf16.mxu0 0
    %2436 = vmatpush1.bf16.msra.mxu0 0
    %2437 = vmatprep.subr.bf16.mxu0 0
    %2438 = vmatpush1.bf16.msra.mxu0 0
    %2439 = vmatprep.subr.bf16.mxu0 0
    %2440 = vmatpush1.bf16.msra.mxu0 0
    %2441 = vmatprep.subr.bf16.mxu0 0
    %2442 = vmatpush1.bf16.msra.mxu0 0
    %2443 = vmatprep.subr.bf16.mxu0 0
    %2444 = vmatpush1.bf16.msra.mxu0 0
    %2445 = vmatprep.mubr.bf16.mxu0 0
    %2446 = vmatmul.mubr.bf16.gmra.mrb[0].mxu0 %v2412
    %v2447 = vpop.f32.mrb[0].mxu0
    %v2448 = vadd.f32 0.0, %v2447
    %v2449 = vpop.f32.mrb[0].mxu0
    %v2450 = vadd.f32 0.0, %v2449
    %v2451 = vpop.f32.mrb[0].mxu0
    %v2452 = vpop.f32.mrb[0].mxu0
    %2453 = vdwg.mxu0
    %2454 = vmatprep.subr.bf16.mxu0 0
    %2455 = vmatpush1.bf16.msra.mxu0 %v2029
    %2456 = vmatprep.subr.bf16.mxu0 0
    %2457 = vmatpush1.bf16.msra.mxu0 %v2032
    %2458 = vmatprep.subr.bf16.mxu0 0
    %2459 = vmatpush1.bf16.msra.mxu0 %v2035
    %2460 = vmatprep.subr.bf16.mxu0 0
    %2461 = vmatpush1.bf16.msra.mxu0 %v2038
    %2462 = vmatprep.subr.bf16.mxu0 0
    %2463 = vmatpush1.bf16.msra.mxu0 %v2041
    %2464 = vmatprep.subr.bf16.mxu0 0
    %2465 = vmatpush1.bf16.msra.mxu0 %v2044
    %2466 = vmatprep.subr.bf16.mxu0 0
    %2467 = vmatpush1.bf16.msra.mxu0 %v2047
    %2468 = vmatprep.subr.bf16.mxu0 0
    %2469 = vmatpush1.bf16.msra.mxu0 %v2050
    %2470 = vmatprep.subr.bf16.mxu0 0
    %2471 = vmatpush1.bf16.msra.mxu0 0
    %2472 = vmatprep.subr.bf16.mxu0 0
    %2473 = vmatpush1.bf16.msra.mxu0 0
    %2474 = vmatprep.subr.bf16.mxu0 0
    %2475 = vmatpush1.bf16.msra.mxu0 0
    %2476 = vmatprep.subr.bf16.mxu0 0
    %2477 = vmatpush1.bf16.msra.mxu0 0
    %2478 = vmatprep.subr.bf16.mxu0 0
    %2479 = vmatpush1.bf16.msra.mxu0 0
    %2480 = vmatprep.subr.bf16.mxu0 0
    %2481 = vmatpush1.bf16.msra.mxu0 0
    %2482 = vmatprep.subr.bf16.mxu0 0
    %2483 = vmatpush1.bf16.msra.mxu0 0
    %2484 = vmatprep.subr.bf16.mxu0 0
    %2485 = vmatpush1.bf16.msra.mxu0 0
    %2486 = vmatprep.mubr.bf16.mxu0 0
    %2487 = vmatmul.mubr.bf16.gmra.mrb[0].mxu0 %v2412
    %v2488 = vpop.f32.mrb[0].mxu0
    %v2489 = vadd.f32 0.0, %v2488
    %v2490 = vpop.f32.mrb[0].mxu0
    %v2491 = vpop.f32.mrb[0].mxu0
    %v2492 = vpop.f32.mrb[0].mxu0
    %2493 = vdwg.mxu0
    %v2494 = vadd.f32 %v2408, %v2448
    %v2495 = vxor.u32 %v2494, 2147483648
    %v2496 = vmul.f32 %v2495, 1.442695
    %v2497 = vpow.pop %v2496
    %v2498 = vadd.f32 %v2497, 1.0
    %v2499 = vrcp.pop %v2498
    %v2500 = vmul.f32 1.0, %v2499
    %v2501 = vadd.f32 %v2409, %v2450
    %v2502 = vxor.u32 %v2501, 2147483648
    %v2503 = vmul.f32 %v2502, 1.442695
    %v2504 = vpow.pop %v2503
    %v2505 = vadd.f32 %v2504, 1.0
    %v2506 = vrcp.pop %v2505
    %v2507 = vmul.f32 1.0, %v2506
    %v2508 = vadd.f32 %v2489, %v2174
    %v2509 = vmul.f32 %v2500, %v2508
    %v2510 = vadd.f32 %v2410, %v2509
    %v2511 = vtanh.pop %v2510
    %v2512 = vsub.f32 1.0, %v2507
    %v2513 = vmul.f32 %v2512, %v2511
    %v2514 = vmul.f32 %v2507, %v2411
    %v2515 = vadd.f32 %v2513, %v2514
    %2516 = vst [vmem:[#allocation4] sm:$0xff] %v2515
    %s2517 = scalar_lea.vmem [#allocation14], 24
    %2518 = vst [vmem:[%s2517] sm:$0xff] %v2515
    %v2519 = vld [vmem:[%s1101] sm:$0xff]
    %v2520 = vld [vmem:[%s1101 + $0x8] sm:$0xff]
    %v2521 = vld [vmem:[%s1101 + $0x10] sm:$0xff]
    %v2522 = vld [vmem:[#allocation4] sm:$0xff]
    %v2523 = vpack.c.bf16 %v2522, %v2522
    %2524 = vmatprep.subr.bf16.mxu0 %v2028
    %2525 = vmatpush1.bf16.msra.mxu0 %v2027
    %2526 = vmatprep.subr.bf16.mxu0 %v2031
    %2527 = vmatpush1.bf16.msra.mxu0 %v2030
    %2528 = vmatprep.subr.bf16.mxu0 %v2034
    %2529 = vmatpush1.bf16.msra.mxu0 %v2033
    %2530 = vmatprep.subr.bf16.mxu0 %v2037
    %2531 = vmatpush1.bf16.msra.mxu0 %v2036
    %2532 = vmatprep.subr.bf16.mxu0 %v2040
    %2533 = vmatpush1.bf16.msra.mxu0 %v2039
    %2534 = vmatprep.subr.bf16.mxu0 %v2043
    %2535 = vmatpush1.bf16.msra.mxu0 %v2042
    %2536 = vmatprep.subr.bf16.mxu0 %v2046
    %2537 = vmatpush1.bf16.msra.mxu0 %v2045
    %2538 = vmatprep.subr.bf16.mxu0 %v2049
    %2539 = vmatpush1.bf16.msra.mxu0 %v2048
    %2540 = vmatprep.subr.bf16.mxu0 0
    %2541 = vmatpush1.bf16.msra.mxu0 0
    %2542 = vmatprep.subr.bf16.mxu0 0
    %2543 = vmatpush1.bf16.msra.mxu0 0
    %2544 = vmatprep.subr.bf16.mxu0 0
    %2545 = vmatpush1.bf16.msra.mxu0 0
    %2546 = vmatprep.subr.bf16.mxu0 0
    %2547 = vmatpush1.bf16.msra.mxu0 0
    %2548 = vmatprep.subr.bf16.mxu0 0
    %2549 = vmatpush1.bf16.msra.mxu0 0
    %2550 = vmatprep.subr.bf16.mxu0 0
    %2551 = vmatpush1.bf16.msra.mxu0 0
    %2552 = vmatprep.subr.bf16.mxu0 0
    %2553 = vmatpush1.bf16.msra.mxu0 0
    %2554 = vmatprep.subr.bf16.mxu0 0
    %2555 = vmatpush1.bf16.msra.mxu0 0
    %2556 = vmatprep.mubr.bf16.mxu0 0
    %2557 = vmatmul.mubr.bf16.gmra.mrb[0].mxu0 %v2523
    %v2558 = vpop.f32.mrb[0].mxu0
    %v2559 = vadd.f32 0.0, %v2558
    %v2560 = vpop.f32.mrb[0].mxu0
    %v2561 = vadd.f32 0.0, %v2560
    %v2562 = vpop.f32.mrb[0].mxu0
    %v2563 = vpop.f32.mrb[0].mxu0
    %2564 = vdwg.mxu0
    %2565 = vmatprep.subr.bf16.mxu0 0
    %2566 = vmatpush1.bf16.msra.mxu0 %v2029
    %2567 = vmatprep.subr.bf16.mxu0 0
    %2568 = vmatpush1.bf16.msra.mxu0 %v2032
    %2569 = vmatprep.subr.bf16.mxu0 0
    %2570 = vmatpush1.bf16.msra.mxu0 %v2035
    %2571 = vmatprep.subr.bf16.mxu0 0
    %2572 = vmatpush1.bf16.msra.mxu0 %v2038
    %2573 = vmatprep.subr.bf16.mxu0 0
    %2574 = vmatpush1.bf16.msra.mxu0 %v2041
    %2575 = vmatprep.subr.bf16.mxu0 0
    %2576 = vmatpush1.bf16.msra.mxu0 %v2044
    %2577 = vmatprep.subr.bf16.mxu0 0
    %2578 = vmatpush1.bf16.msra.mxu0 %v2047
    %2579 = vmatprep.subr.bf16.mxu0 0
    %2580 = vmatpush1.bf16.msra.mxu0 %v2050
    %2581 = vmatprep.subr.bf16.mxu0 0
    %2582 = vmatpush1.bf16.msra.mxu0 0
    %2583 = vmatprep.subr.bf16.mxu0 0
    %2584 = vmatpush1.bf16.msra.mxu0 0
    %2585 = vmatprep.subr.bf16.mxu0 0
    %2586 = vmatpush1.bf16.msra.mxu0 0
    %2587 = vmatprep.subr.bf16.mxu0 0
    %2588 = vmatpush1.bf16.msra.mxu0 0
    %2589 = vmatprep.subr.bf16.mxu0 0
    %2590 = vmatpush1.bf16.msra.mxu0 0
    %2591 = vmatprep.subr.bf16.mxu0 0
    %2592 = vmatpush1.bf16.msra.mxu0 0
    %2593 = vmatprep.subr.bf16.mxu0 0
    %2594 = vmatpush1.bf16.msra.mxu0 0
    %2595 = vmatprep.subr.bf16.mxu0 0
    %2596 = vmatpush1.bf16.msra.mxu0 0
    %2597 = vmatprep.mubr.bf16.mxu0 0
    %2598 = vmatmul.mubr.bf16.gmra.mrb[0].mxu0 %v2523
    %v2599 = vpop.f32.mrb[0].mxu0
    %v2600 = vadd.f32 0.0, %v2599
    %v2601 = vpop.f32.mrb[0].mxu0
    %v2602 = vpop.f32.mrb[0].mxu0
    %v2603 = vpop.f32.mrb[0].mxu0
    %2604 = vdwg.mxu0
    %v2605 = vadd.f32 %v2519, %v2559
    %v2606 = vxor.u32 %v2605, 2147483648
    %v2607 = vmul.f32 %v2606, 1.442695
    %v2608 = vpow.pop %v2607
    %v2609 = vadd.f32 %v2608, 1.0
    %v2610 = vrcp.pop %v2609
    %v2611 = vmul.f32 1.0, %v2610
    %v2612 = vadd.f32 %v2520, %v2561
    %v2613 = vxor.u32 %v2612, 2147483648
    %v2614 = vmul.f32 %v2613, 1.442695
    %v2615 = vpow.pop %v2614
    %v2616 = vadd.f32 %v2615, 1.0
    %v2617 = vrcp.pop %v2616
    %v2618 = vmul.f32 1.0, %v2617
    %v2619 = vadd.f32 %v2600, %v2174
    %v2620 = vmul.f32 %v2611, %v2619
    %v2621 = vadd.f32 %v2521, %v2620
    %v2622 = vtanh.pop %v2621
    %v2623 = vsub.f32 1.0, %v2618
    %v2624 = vmul.f32 %v2623, %v2622
    %v2625 = vmul.f32 %v2618, %v2522
    %v2626 = vadd.f32 %v2624, %v2625
    %2627 = vst [vmem:[#allocation4] sm:$0xff] %v2626
    %s2628 = scalar_lea.vmem [#allocation14], 32
    %2629 = vst [vmem:[%s2628] sm:$0xff] %v2626
    %v2630 = vld [vmem:[%s1215] sm:$0xff]
    %v2631 = vld [vmem:[%s1215 + $0x8] sm:$0xff]
    %v2632 = vld [vmem:[%s1215 + $0x10] sm:$0xff]
    %v2633 = vld [vmem:[#allocation4] sm:$0xff]
    %v2634 = vpack.c.bf16 %v2633, %v2633
    %2635 = vmatprep.subr.bf16.mxu0 %v2028
    %2636 = vmatpush1.bf16.msra.mxu0 %v2027
    %2637 = vmatprep.subr.bf16.mxu0 %v2031
    %2638 = vmatpush1.bf16.msra.mxu0 %v2030
    %2639 = vmatprep.subr.bf16.mxu0 %v2034
    %2640 = vmatpush1.bf16.msra.mxu0 %v2033
    %2641 = vmatprep.subr.bf16.mxu0 %v2037
    %2642 = vmatpush1.bf16.msra.mxu0 %v2036
    %2643 = vmatprep.subr.bf16.mxu0 %v2040
    %2644 = vmatpush1.bf16.msra.mxu0 %v2039
    %2645 = vmatprep.subr.bf16.mxu0 %v2043
    %2646 = vmatpush1.bf16.msra.mxu0 %v2042
    %2647 = vmatprep.subr.bf16.mxu0 %v2046
    %2648 = vmatpush1.bf16.msra.mxu0 %v2045
    %2649 = vmatprep.subr.bf16.mxu0 %v2049
    %2650 = vmatpush1.bf16.msra.mxu0 %v2048
    %2651 = vmatprep.subr.bf16.mxu0 0
    %2652 = vmatpush1.bf16.msra.mxu0 0
    %2653 = vmatprep.subr.bf16.mxu0 0
    %2654 = vmatpush1.bf16.msra.mxu0 0
    %2655 = vmatprep.subr.bf16.mxu0 0
    %2656 = vmatpush1.bf16.msra.mxu0 0
    %2657 = vmatprep.subr.bf16.mxu0 0
    %2658 = vmatpush1.bf16.msra.mxu0 0
    %2659 = vmatprep.subr.bf16.mxu0 0
    %2660 = vmatpush1.bf16.msra.mxu0 0
    %2661 = vmatprep.subr.bf16.mxu0 0
    %2662 = vmatpush1.bf16.msra.mxu0 0
    %2663 = vmatprep.subr.bf16.mxu0 0
    %2664 = vmatpush1.bf16.msra.mxu0 0
    %2665 = vmatprep.subr.bf16.mxu0 0
    %2666 = vmatpush1.bf16.msra.mxu0 0
    %2667 = vmatprep.mubr.bf16.mxu0 0
    %2668 = vmatmul.mubr.bf16.gmra.mrb[0].mxu0 %v2634
    %v2669 = vpop.f32.mrb[0].mxu0
    %v2670 = vadd.f32 0.0, %v2669
    %v2671 = vpop.f32.mrb[0].mxu0
    %v2672 = vadd.f32 0.0, %v2671
    %v2673 = vpop.f32.mrb[0].mxu0
    %v2674 = vpop.f32.mrb[0].mxu0
    %2675 = vdwg.mxu0
    %2676 = vmatprep.subr.bf16.mxu0 0
    %2677 = vmatpush1.bf16.msra.mxu0 %v2029
    %2678 = vmatprep.subr.bf16.mxu0 0
    %2679 = vmatpush1.bf16.msra.mxu0 %v2032
    %2680 = vmatprep.subr.bf16.mxu0 0
    %2681 = vmatpush1.bf16.msra.mxu0 %v2035
    %2682 = vmatprep.subr.bf16.mxu0 0
    %2683 = vmatpush1.bf16.msra.mxu0 %v2038
    %2684 = vmatprep.subr.bf16.mxu0 0
    %2685 = vmatpush1.bf16.msra.mxu0 %v2041
    %2686 = vmatprep.subr.bf16.mxu0 0
    %2687 = vmatpush1.bf16.msra.mxu0 %v2044
    %2688 = vmatprep.subr.bf16.mxu0 0
    %2689 = vmatpush1.bf16.msra.mxu0 %v2047
    %2690 = vmatprep.subr.bf16.mxu0 0
    %2691 = vmatpush1.bf16.msra.mxu0 %v2050
    %2692 = vmatprep.subr.bf16.mxu0 0
    %2693 = vmatpush1.bf16.msra.mxu0 0
    %2694 = vmatprep.subr.bf16.mxu0 0
    %2695 = vmatpush1.bf16.msra.mxu0 0
    %2696 = vmatprep.subr.bf16.mxu0 0
    %2697 = vmatpush1.bf16.msra.mxu0 0
    %2698 = vmatprep.subr.bf16.mxu0 0
    %2699 = vmatpush1.bf16.msra.mxu0 0
    %2700 = vmatprep.subr.bf16.mxu0 0
    %2701 = vmatpush1.bf16.msra.mxu0 0
    %2702 = vmatprep.subr.bf16.mxu0 0
    %2703 = vmatpush1.bf16.msra.mxu0 0
    %2704 = vmatprep.subr.bf16.mxu0 0
    %2705 = vmatpush1.bf16.msra.mxu0 0
    %2706 = vmatprep.subr.bf16.mxu0 0
    %2707 = vmatpush1.bf16.msra.mxu0 0
    %2708 = vmatprep.mubr.bf16.mxu0 0
    %2709 = vmatmul.mubr.bf16.gmra.mrb[0].mxu0 %v2634
    %v2710 = vpop.f32.mrb[0].mxu0
    %v2711 = vadd.f32 0.0, %v2710
    %v2712 = vpop.f32.mrb[0].mxu0
    %v2713 = vpop.f32.mrb[0].mxu0
    %v2714 = vpop.f32.mrb[0].mxu0
    %2715 = vdwg.mxu0
    %v2716 = vadd.f32 %v2630, %v2670
    %v2717 = vxor.u32 %v2716, 2147483648
    %v2718 = vmul.f32 %v2717, 1.442695
    %v2719 = vpow.pop %v2718
    %v2720 = vadd.f32 %v2719, 1.0
    %v2721 = vrcp.pop %v2720
    %v2722 = vmul.f32 1.0, %v2721
    %v2723 = vadd.f32 %v2631, %v2672
    %v2724 = vxor.u32 %v2723, 2147483648
    %v2725 = vmul.f32 %v2724, 1.442695
    %v2726 = vpow.pop %v2725
    %v2727 = vadd.f32 %v2726, 1.0
    %v2728 = vrcp.pop %v2727
    %v2729 = vmul.f32 1.0, %v2728
    %v2730 = vadd.f32 %v2711, %v2174
    %v2731 = vmul.f32 %v2722, %v2730
    %v2732 = vadd.f32 %v2632, %v2731
    %v2733 = vtanh.pop %v2732
    %v2734 = vsub.f32 1.0, %v2729
    %v2735 = vmul.f32 %v2734, %v2733
    %v2736 = vmul.f32 %v2729, %v2633
    %v2737 = vadd.f32 %v2735, %v2736
    %2738 = vst [vmem:[#allocation4] sm:$0xff] %v2737
    %s2739 = scalar_lea.vmem [#allocation14], 40
    %2740 = vst [vmem:[%s2739] sm:$0xff] %v2737
    %v2741 = vld [vmem:[%s1329] sm:$0xff]
    %v2742 = vld [vmem:[%s1329 + $0x8] sm:$0xff]
    %v2743 = vld [vmem:[%s1329 + $0x10] sm:$0xff]
    %v2744 = vld [vmem:[#allocation4] sm:$0xff]
    %v2745 = vpack.c.bf16 %v2744, %v2744
    %2746 = vmatprep.subr.bf16.mxu0 %v2028
    %2747 = vmatpush1.bf16.msra.mxu0 %v2027
    %2748 = vmatprep.subr.bf16.mxu0 %v2031
    %2749 = vmatpush1.bf16.msra.mxu0 %v2030
    %2750 = vmatprep.subr.bf16.mxu0 %v2034
    %2751 = vmatpush1.bf16.msra.mxu0 %v2033
    %2752 = vmatprep.subr.bf16.mxu0 %v2037
    %2753 = vmatpush1.bf16.msra.mxu0 %v2036
    %2754 = vmatprep.subr.bf16.mxu0 %v2040
    %2755 = vmatpush1.bf16.msra.mxu0 %v2039
    %2756 = vmatprep.subr.bf16.mxu0 %v2043
    %2757 = vmatpush1.bf16.msra.mxu0 %v2042
    %2758 = vmatprep.subr.bf16.mxu0 %v2046
    %2759 = vmatpush1.bf16.msra.mxu0 %v2045
    %2760 = vmatprep.subr.bf16.mxu0 %v2049
    %2761 = vmatpush1.bf16.msra.mxu0 %v2048
    %2762 = vmatprep.subr.bf16.mxu0 0
    %2763 = vmatpush1.bf16.msra.mxu0 0
    %2764 = vmatprep.subr.bf16.mxu0 0
    %2765 = vmatpush1.bf16.msra.mxu0 0
    %2766 = vmatprep.subr.bf16.mxu0 0
    %2767 = vmatpush1.bf16.msra.mxu0 0
    %2768 = vmatprep.subr.bf16.mxu0 0
    %2769 = vmatpush1.bf16.msra.mxu0 0
    %2770 = vmatprep.subr.bf16.mxu0 0
    %2771 = vmatpush1.bf16.msra.mxu0 0
    %2772 = vmatprep.subr.bf16.mxu0 0
    %2773 = vmatpush1.bf16.msra.mxu0 0
    %2774 = vmatprep.subr.bf16.mxu0 0
    %2775 = vmatpush1.bf16.msra.mxu0 0
    %2776 = vmatprep.subr.bf16.mxu0 0
    %2777 = vmatpush1.bf16.msra.mxu0 0
    %2778 = vmatprep.mubr.bf16.mxu0 0
    %2779 = vmatmul.mubr.bf16.gmra.mrb[0].mxu0 %v2745
    %v2780 = vpop.f32.mrb[0].mxu0
    %v2781 = vadd.f32 0.0, %v2780
    %v2782 = vpop.f32.mrb[0].mxu0
    %v2783 = vadd.f32 0.0, %v2782
    %v2784 = vpop.f32.mrb[0].mxu0
    %v2785 = vpop.f32.mrb[0].mxu0
    %2786 = vdwg.mxu0
    %2787 = vmatprep.subr.bf16.mxu0 0
    %2788 = vmatpush1.bf16.msra.mxu0 %v2029
    %2789 = vmatprep.subr.bf16.mxu0 0
    %2790 = vmatpush1.bf16.msra.mxu0 %v2032
    %2791 = vmatprep.subr.bf16.mxu0 0
    %2792 = vmatpush1.bf16.msra.mxu0 %v2035
    %2793 = vmatprep.subr.bf16.mxu0 0
    %2794 = vmatpush1.bf16.msra.mxu0 %v2038
    %2795 = vmatprep.subr.bf16.mxu0 0
    %2796 = vmatpush1.bf16.msra.mxu0 %v2041
    %2797 = vmatprep.subr.bf16.mxu0 0
    %2798 = vmatpush1.bf16.msra.mxu0 %v2044
    %2799 = vmatprep.subr.bf16.mxu0 0
    %2800 = vmatpush1.bf16.msra.mxu0 %v2047
    %2801 = vmatprep.subr.bf16.mxu0 0
    %2802 = vmatpush1.bf16.msra.mxu0 %v2050
    %2803 = vmatprep.subr.bf16.mxu0 0
    %2804 = vmatpush1.bf16.msra.mxu0 0
    %2805 = vmatprep.subr.bf16.mxu0 0
    %2806 = vmatpush1.bf16.msra.mxu0 0
    %2807 = vmatprep.subr.bf16.mxu0 0
    %2808 = vmatpush1.bf16.msra.mxu0 0
    %2809 = vmatprep.subr.bf16.mxu0 0
    %2810 = vmatpush1.bf16.msra.mxu0 0
    %2811 = vmatprep.subr.bf16.mxu0 0
    %2812 = vmatpush1.bf16.msra.mxu0 0
    %2813 = vmatprep.subr.bf16.mxu0 0
    %2814 = vmatpush1.bf16.msra.mxu0 0
    %2815 = vmatprep.subr.bf16.mxu0 0
    %2816 = vmatpush1.bf16.msra.mxu0 0
    %2817 = vmatprep.subr.bf16.mxu0 0
    %2818 = vmatpush1.bf16.msra.mxu0 0
    %2819 = vmatprep.mubr.bf16.mxu0 0
    %2820 = vmatmul.mubr.bf16.gmra.mrb[0].mxu0 %v2745
    %v2821 = vpop.f32.mrb[0].mxu0
    %v2822 = vadd.f32 0.0, %v2821
    %v2823 = vpop.f32.mrb[0].mxu0
    %v2824 = vpop.f32.mrb[0].mxu0
    %v2825 = vpop.f32.mrb[0].mxu0
    %2826 = vdwg.mxu0
    %v2827 = vadd.f32 %v2741, %v2781
    %v2828 = vxor.u32 %v2827, 2147483648
    %v2829 = vmul.f32 %v2828, 1.442695
    %v2830 = vpow.pop %v2829
    %v2831 = vadd.f32 %v2830, 1.0
    %v2832 = vrcp.pop %v2831
    %v2833 = vmul.f32 1.0, %v2832
    %v2834 = vadd.f32 %v2742, %v2783
    %v2835 = vxor.u32 %v2834, 2147483648
    %v2836 = vmul.f32 %v2835, 1.442695
    %v2837 = vpow.pop %v2836
    %v2838 = vadd.f32 %v2837, 1.0
    %v2839 = vrcp.pop %v2838
    %v2840 = vmul.f32 1.0, %v2839
    %v2841 = vadd.f32 %v2822, %v2174
    %v2842 = vmul.f32 %v2833, %v2841
    %v2843 = vadd.f32 %v2743, %v2842
    %v2844 = vtanh.pop %v2843
    %v2845 = vsub.f32 1.0, %v2840
    %v2846 = vmul.f32 %v2845, %v2844
    %v2847 = vmul.f32 %v2840, %v2744
    %v2848 = vadd.f32 %v2846, %v2847
    %2849 = vst [vmem:[#allocation4] sm:$0xff] %v2848
    %s2850 = scalar_lea.vmem [#allocation14], 48
    %2851 = vst [vmem:[%s2850] sm:$0xff] %v2848
    %v2852 = vld [vmem:[%s1443] sm:$0xff]
    %v2853 = vld [vmem:[%s1443 + $0x8] sm:$0xff]
    %v2854 = vld [vmem:[%s1443 + $0x10] sm:$0xff]
    %v2855 = vld [vmem:[#allocation4] sm:$0xff]
    %v2856 = vpack.c.bf16 %v2855, %v2855
    %2857 = vmatprep.subr.bf16.mxu0 %v2028
    %2858 = vmatpush1.bf16.msra.mxu0 %v2027
    %2859 = vmatprep.subr.bf16.mxu0 %v2031
    %2860 = vmatpush1.bf16.msra.mxu0 %v2030
    %2861 = vmatprep.subr.bf16.mxu0 %v2034
    %2862 = vmatpush1.bf16.msra.mxu0 %v2033
    %2863 = vmatprep.subr.bf16.mxu0 %v2037
    %2864 = vmatpush1.bf16.msra.mxu0 %v2036
    %2865 = vmatprep.subr.bf16.mxu0 %v2040
    %2866 = vmatpush1.bf16.msra.mxu0 %v2039
    %2867 = vmatprep.subr.bf16.mxu0 %v2043
    %2868 = vmatpush1.bf16.msra.mxu0 %v2042
    %2869 = vmatprep.subr.bf16.mxu0 %v2046
    %2870 = vmatpush1.bf16.msra.mxu0 %v2045
    %2871 = vmatprep.subr.bf16.mxu0 %v2049
    %2872 = vmatpush1.bf16.msra.mxu0 %v2048
    %2873 = vmatprep.subr.bf16.mxu0 0
    %2874 = vmatpush1.bf16.msra.mxu0 0
    %2875 = vmatprep.subr.bf16.mxu0 0
    %2876 = vmatpush1.bf16.msra.mxu0 0
    %2877 = vmatprep.subr.bf16.mxu0 0
    %2878 = vmatpush1.bf16.msra.mxu0 0
    %2879 = vmatprep.subr.bf16.mxu0 0
    %2880 = vmatpush1.bf16.msra.mxu0 0
    %2881 = vmatprep.subr.bf16.mxu0 0
    %2882 = vmatpush1.bf16.msra.mxu0 0
    %2883 = vmatprep.subr.bf16.mxu0 0
    %2884 = vmatpush1.bf16.msra.mxu0 0
    %2885 = vmatprep.subr.bf16.mxu0 0
    %2886 = vmatpush1.bf16.msra.mxu0 0
    %2887 = vmatprep.subr.bf16.mxu0 0
    %2888 = vmatpush1.bf16.msra.mxu0 0
    %2889 = vmatprep.mubr.bf16.mxu0 0
    %2890 = vmatmul.mubr.bf16.gmra.mrb[0].mxu0 %v2856
    %v2891 = vpop.f32.mrb[0].mxu0
    %v2892 = vadd.f32 0.0, %v2891
    %v2893 = vpop.f32.mrb[0].mxu0
    %v2894 = vadd.f32 0.0, %v2893
    %v2895 = vpop.f32.mrb[0].mxu0
    %v2896 = vpop.f32.mrb[0].mxu0
    %2897 = vdwg.mxu0
    %2898 = vmatprep.subr.bf16.mxu0 0
    %2899 = vmatpush1.bf16.msra.mxu0 %v2029
    %2900 = vmatprep.subr.bf16.mxu0 0
    %2901 = vmatpush1.bf16.msra.mxu0 %v2032
    %2902 = vmatprep.subr.bf16.mxu0 0
    %2903 = vmatpush1.bf16.msra.mxu0 %v2035
    %2904 = vmatprep.subr.bf16.mxu0 0
    %2905 = vmatpush1.bf16.msra.mxu0 %v2038
    %2906 = vmatprep.subr.bf16.mxu0 0
    %2907 = vmatpush1.bf16.msra.mxu0 %v2041
    %2908 = vmatprep.subr.bf16.mxu0 0
    %2909 = vmatpush1.bf16.msra.mxu0 %v2044
    %2910 = vmatprep.subr.bf16.mxu0 0
    %2911 = vmatpush1.bf16.msra.mxu0 %v2047
    %2912 = vmatprep.subr.bf16.mxu0 0
    %2913 = vmatpush1.bf16.msra.mxu0 %v2050
    %2914 = vmatprep.subr.bf16.mxu0 0
    %2915 = vmatpush1.bf16.msra.mxu0 0
    %2916 = vmatprep.subr.bf16.mxu0 0
    %2917 = vmatpush1.bf16.msra.mxu0 0
    %2918 = vmatprep.subr.bf16.mxu0 0
    %2919 = vmatpush1.bf16.msra.mxu0 0
    %2920 = vmatprep.subr.bf16.mxu0 0
    %2921 = vmatpush1.bf16.msra.mxu0 0
    %2922 = vmatprep.subr.bf16.mxu0 0
    %2923 = vmatpush1.bf16.msra.mxu0 0
    %2924 = vmatprep.subr.bf16.mxu0 0
    %2925 = vmatpush1.bf16.msra.mxu0 0
    %2926 = vmatprep.subr.bf16.mxu0 0
    %2927 = vmatpush1.bf16.msra.mxu0 0
    %2928 = vmatprep.subr.bf16.mxu0 0
    %2929 = vmatpush1.bf16.msra.mxu0 0
    %2930 = vmatprep.mubr.bf16.mxu0 0
    %2931 = vmatmul.mubr.bf16.gmra.mrb[0].mxu0 %v2856
    %v2932 = vpop.f32.mrb[0].mxu0
    %v2933 = vadd.f32 0.0, %v2932
    %v2934 = vpop.f32.mrb[0].mxu0
    %v2935 = vpop.f32.mrb[0].mxu0
    %v2936 = vpop.f32.mrb[0].mxu0
    %2937 = vdwg.mxu0
    %v2938 = vadd.f32 %v2852, %v2892
    %v2939 = vxor.u32 %v2938, 2147483648
    %v2940 = vmul.f32 %v2939, 1.442695
    %v2941 = vpow.pop %v2940
    %v2942 = vadd.f32 %v2941, 1.0
    %v2943 = vrcp.pop %v2942
    %v2944 = vmul.f32 1.0, %v2943
    %v2945 = vadd.f32 %v2853, %v2894
    %v2946 = vxor.u32 %v2945, 2147483648
    %v2947 = vmul.f32 %v2946, 1.442695
    %v2948 = vpow.pop %v2947
    %v2949 = vadd.f32 %v2948, 1.0
    %v2950 = vrcp.pop %v2949
    %v2951 = vmul.f32 1.0, %v2950
    %v2952 = vadd.f32 %v2933, %v2174
    %v2953 = vmul.f32 %v2944, %v2952
    %v2954 = vadd.f32 %v2854, %v2953
    %v2955 = vtanh.pop %v2954
    %v2956 = vsub.f32 1.0, %v2951
    %v2957 = vmul.f32 %v2956, %v2955
    %v2958 = vmul.f32 %v2951, %v2855
    %v2959 = vadd.f32 %v2957, %v2958
    %2960 = vst [vmem:[#allocation4] sm:$0xff] %v2959
    %s2961 = scalar_lea.vmem [#allocation14], 56
    %2962 = vst [vmem:[%s2961] sm:$0xff] %v2959
    %v2963 = vld [vmem:[#allocation4] sm:$0xff]
    %2964 = vst [vmem:[#allocation15 + $0x8] sm:$0xff] %v2963
    // Predicated region
    $region58: #{tpu_custom_call.1} parent=1 // pred_check
      _
    $region59: #{tpu_custom_call.1} parent=1 // pred_check_branch
      %2966 = sbr.rel (0) target = $region61
    $region60: #{tpu_custom_call.1} parent=1 // pred_region
      %s2968 = ssub.s32 1024, 1024
      %2969 = vsyncadd [#allocation7], %s2968
      %s2970 = sshll.u32 [#allocation14], 4
      %s2971 = int_to_ptr.vmem [resolvable:$true] %s2970
      %2976 = dma.vmem_to_hbm [thread:$0]  %s2971, 1024, %s9, [#allocation7], 128, 128, 8
    $region61: #{tpu_custom_call.1} parent=1 // pred_fallthru
      _
    // Predicated region
    $region62: #{tpu_custom_call.1} parent=1 // pred_check
      _
    $region63: #{tpu_custom_call.1} parent=1 // pred_check_branch
      %2978 = sbr.rel (0) target = $region65
    $region64: #{tpu_custom_call.1} parent=1 // pred_region
      %s2980 = ssub.s32 256, 256
      %2981 = vsyncadd [#allocation16], %s2980
      %s2982 = sshll.u32 [#allocation15], 4
      %s2983 = int_to_ptr.vmem [resolvable:$true] %s2982
      %2988 = dma.vmem_to_hbm [thread:$0]  %s2983, 256, %s10, [#allocation16], 128, 128, 8
    $region65: #{tpu_custom_call.1} parent=1 // pred_fallthru
      _
    // Predicated region
    $region66: #{tpu_custom_call.1} parent=1 // pred_check
      _
    $region67: #{tpu_custom_call.1} parent=1 // pred_check_branch
      %2990 = sbr.rel (0) target = $region69
    $region68: #{tpu_custom_call.1} parent=1 // pred_region
      %2991 = dma.done [#allocation7], 1024
    $region69: #{tpu_custom_call.1} parent=1 // pred_fallthru
      _
    // Predicated region
    $region70: #{tpu_custom_call.1} parent=1 // pred_check
      _
    $region71: #{tpu_custom_call.1} parent=1 // pred_check_branch
      %2993 = sbr.rel (0) target = $region73
    $region72: #{tpu_custom_call.1} parent=1 // pred_region
      %2994 = dma.done [#allocation16], 256
    $region73: #{tpu_custom_call.1} parent=1 // pred_fallthru
      _
    %2995 = vsyncpa [#allocation6], 1
    %2996 = vsyncpa [#allocation9], 1
    %2997 = vsyncpa [#allocation12], 1
    %2998 = vsyncpa [#allocation7], 1
    %2999 = vsyncpa [#allocation16], 1

</llo_original>
